<compile_context>
chip_gen: v5e
topology: v5e:2x2
jax: 0.10.0
libtpu: 0.0.40
codegen_flags: <defaults>
</compile_context>

<pallas_src>
import functools
import math

import jax
import jax.numpy as jnp
from jax import lax
from jax.experimental import pallas as pl
from jax.experimental.pallas import tpu as pltpu

EPS = 1e-5


def _fold_bn(gamma, beta, mean, var, eps=EPS):
  scale = gamma / jnp.sqrt(var + eps)
  shift = beta - mean * scale
  return scale, shift


def _round_up(x, m):
  return ((x + m - 1) // m) * m


# --------------------------- fused stem kernel -------------------------------
def _stem_kernel(slab_ref, w_ref, shift_ref, o_ref, *, tp, wp, hc, wc, kpp):
  """conv(7x7,s2,p3)+BN+ReLU+maxpool(3x3,s2,p1) for one (batch, row-tile).

  slab_ref : (tp+3, sc, 16*Cin) bf16   4x4 space-to-depth input super-rows
  w_ref    : (2, 2, 9*16*Cin, Cout) bf16  phase-decomposed, BN-folded weights
  shift_ref: (1, Cout) f32             folded BN shift
  o_ref    : (tp, wp, Cout) f32        pooled output rows of this tile
  """
  p_tile = pl.program_id(1)
  sc = slab_ref.shape[1]
  nc_pad = sc - 3                       # 8-aligned conv-column count
  cout = o_ref.shape[-1]
  shift = shift_ref[...]                # (1, Cout)

  def conv_phase(rp, cp):
    # Conv rows 2*g + rp, cols 2*u + cp of this tile (phase -> stride-free).
    n_r = tp + rp                       # even rows: tp, odd rows: tp + 1
    n_c = wp + cp                       # columns actually needed (<= nc_pad)
    r0 = 1 - rp
    c0 = 1 - cp
    m_rows = n_r * nc_pad
    acc = jnp.zeros((m_rows, cout), jnp.float32)
    for dr in range(3):                 # 3x3 stride-1 conv over super-pixels
      for dc in range(3):
        piece = slab_ref[r0 + dr:r0 + dr + n_r,
                         c0 + dc:c0 + dc + nc_pad, :]      # (n_r, nc_pad, kpp)
        idx = dr * 3 + dc
        acc = acc + jnp.dot(
            piece.reshape(m_rows, kpp),
            w_ref[rp, cp, idx * kpp:(idx + 1) * kpp, :],
            preferred_element_type=jnp.float32)
    conv = jnp.maximum(acc + shift, 0.0).reshape(n_r, nc_pad, cout)
    conv = conv[:, :n_c, :]
    # Zero out pool-padding / out-of-range conv positions.  ReLU output >= 0
    # and the centre pool tap is always valid, so 0 is a safe identity.
    if rp == 1:
      gi = p_tile * tp + lax.broadcasted_iota(jnp.int32, (n_r, n_c, cout), 0)
      row = 2 * gi - 1
      conv = jnp.where((row >= 0) & (row < hc), conv, 0.0)
    if cp == 1:
      col = 2 * lax.broadcasted_iota(jnp.int32, (n_r, n_c, cout), 1) - 1
      conv = jnp.where((col >= 0) & (col < wc), conv, 0.0)
    return conv

  cee = conv_phase(0, 0)    # (tp,   wp,   C)  conv rows 2g,   cols 2u
  ceo = conv_phase(0, 1)    # (tp,   wp+1, C)  conv rows 2g,   cols 2u-1
  coe = conv_phase(1, 0)    # (tp+1, wp,   C)  conv rows 2g-1, cols 2u
  coo = conv_phase(1, 1)    # (tp+1, wp+1, C)  conv rows 2g-1, cols 2u-1

  # 3x3/s2 max-pool == 9-way max of unit-shifted phase slices.
  m = cee
  m = jnp.maximum(m, ceo[:, 0:wp, :])
  m = jnp.maximum(m, ceo[:, 1:wp + 1, :])
  m = jnp.maximum(m, coe[0:tp, :, :])
  m = jnp.maximum(m, coe[1:tp + 1, :, :])
  m = jnp.maximum(m, coo[0:tp, 0:wp, :])
  m = jnp.maximum(m, coo[0:tp, 1:wp + 1, :])
  m = jnp.maximum(m, coo[1:tp + 1, 0:wp, :])
  m = jnp.maximum(m, coo[1:tp + 1, 1:wp + 1, :])
  o_ref[...] = m


# ------------------------------- wrapper --------------------------------------
def basic_stem_forward(x_nchw, robot_joint_angles, params):
  """BasicStem.forward; `robot_joint_angles` is accepted but unused (as in PyTorch)."""
  del robot_joint_angles
  B, cin, H, W = x_nchw.shape
  w = params["conv_w"]                                  # (Cout, Cin, 7, 7)
  cout = w.shape[0]
  scale, shift = _fold_bn(params["bn_g"], params["bn_b"],
                          params["bn_m"], params["bn_v"])

  hc = (H + 2 * 3 - 7) // 2 + 1                         # conv output H
  wc = (W + 2 * 3 - 7) // 2 + 1                         # conv output W
  hp = (hc - 1) // 2 + 1                                # pooled output H
  wp = (wc - 1) // 2 + 1                                # pooled output W
  tp = math.gcd(hp, 8)                                  # pooled rows / grid step
  n_tiles = hp // tp

  # Fold BN scale into the conv weights; single bf16 quantisation point.
  w_fold = (w * scale[:, None, None, None]).astype(jnp.bfloat16)   # OIHW

  # Phase-decomposed weight matrices: the stride-2 7x7 conv equals four
  # stride-1 3x3 convs over the 4x4 space-to-depth input (one per output
  # parity phase (rp, cp)).  kh = 4*dr + a - 2*rp, kw = 4*dc + b - 2*cp.
  kpp = 16 * cin
  phase_rows = []
  for rp in (0, 1):
    phase_cols = []
    for cp in (0, 1):
      wpad = jnp.pad(w_fold, ((0, 0), (0, 0),
                              (2 * rp, 5 - 2 * rp), (2 * cp, 5 - 2 * cp)))
      wpad = wpad.reshape(cout, cin, 3, 4, 3, 4).transpose(2, 4, 3, 5, 1, 0)
      phase_cols.append(wpad.reshape(9 * kpp, cout))    # (dr,dc,a,b,ci) x o
    phase_rows.append(jnp.stack(phase_cols, axis=0))
  w_ph = jnp.stack(phase_rows, axis=0)                  # (2, 2, 9*kpp, Cout) bf16

  # 4x4 space-to-depth of the (conv-padded + phase-aligned) input.
  nc_pad = _round_up(wp + 1, 8)                         # 8-aligned column count
  sr = hp + 3                                           # super-rows
  sc = nc_pad + 3                                       # super-cols
  pad_top = 3 + 4                                       # conv pad + 1 super-row
  pad_left = 3 + 4
  pad_bottom = 4 * sr - (H + pad_top)
  pad_right = 4 * sc - (W + pad_left)
  x_nhwc = jnp.transpose(x_nchw, (0, 2, 3, 1))
  xq = jnp.pad(x_nhwc, ((0, 0), (pad_top, pad_bottom),
                        (pad_left, pad_right), (0, 0)))
  xs4 = xq.reshape(B, sr, 4, sc, 4, cin).transpose(0, 1, 3, 2, 4, 5)
  xs4 = xs4.reshape(B, sr, sc, kpp).astype(jnp.bfloat16)

  # Per-row-tile slabs with a 3-super-row halo (tiny duplication, no im2col).
  slabs = jnp.stack([xs4[:, t * tp:t * tp + tp + 3] for t in range(n_tiles)],
                    axis=1)                             # (B, n_tiles, tp+3, sc, kpp)

  shift2d = shift.reshape(1, cout).astype(jnp.float32)

  kern = functools.partial(_stem_kernel, tp=tp, wp=wp, hc=hc, wc=wc, kpp=kpp)
  out_nhwc = pl.pallas_call(
      kern,
      out_shape=jax.ShapeDtypeStruct((B, hp, wp, cout), jnp.float32),
      grid_spec=pltpu.PrefetchScalarGridSpec(
          num_scalar_prefetch=0,
          grid=(B, n_tiles),
          in_specs=[
              pl.BlockSpec((None, None, tp + 3, sc, kpp),
                           lambda b, t: (b, t, 0, 0, 0)),
              pl.BlockSpec((2, 2, 9 * kpp, cout), lambda b, t: (0, 0, 0, 0)),
              pl.BlockSpec((1, cout), lambda b, t: (0, 0)),
          ],
          out_specs=pl.BlockSpec((None, tp, wp, cout),
                                 lambda b, t: (b, t, 0, 0)),
      ),
      compiler_params=pltpu.CompilerParams(
          dimension_semantics=("parallel", "parallel")),
  )(slabs, w_ph, shift2d)
  return jnp.transpose(out_nhwc, (0, 3, 1, 2))          # NCHW


# ------------------------------ parameters ------------------------------------
def init_params(key, in_channels=3, out_channels=64):
  ks = jax.random.split(key, 5)
  f32 = jnp.float32
  p = {}
  p["conv_w"] = 0.05 * jax.random.normal(
      ks[0], (out_channels, in_channels, 7, 7), f32)
  p["bn_g"] = 1.0 + 0.1 * jax.random.normal(ks[1], (out_channels,), f32)
  p["bn_b"] = 0.1 * jax.random.normal(ks[2], (out_channels,), f32)
  p["bn_m"] = 0.1 * jax.random.normal(ks[3], (out_channels,), f32)
  p["bn_v"] = jax.random.uniform(ks[4], (out_channels,), f32,
                                 minval=0.5, maxval=1.5)
  return p


# --------------------------- pure-JAX reference -------------------------------
def reference_forward(x_nchw, robot_joint_angles, params):
  del robot_joint_angles
  scale, shift = _fold_bn(params["bn_g"], params["bn_b"],
                          params["bn_m"], params["bn_v"])
  # Same bf16 quantisation of (weights * BN scale) and input as the kernel.
  w_fold = (params["conv_w"] * scale[:, None, None, None]).astype(jnp.bfloat16)
  y = lax.conv_general_dilated(
      x_nchw.astype(jnp.bfloat16), w_fold, window_strides=(2, 2),
      padding=((3, 3), (3, 3)), dimension_numbers=("NCHW", "OIHW", "NCHW"),
      preferred_element_type=jnp.float32)
  y = jnp.maximum(y + shift[None, :, None, None], 0.0)
  y = lax.reduce_window(y, -jnp.inf, lax.max, (1, 1, 3, 3), (1, 1, 2, 2),
                        padding=((0, 0), (0, 0), (1, 1), (1, 1)))
  return y


if __name__ == "__main__":
  key = jax.random.PRNGKey(0)
  kx, kj, kp = jax.random.split(key, 3)

  B, Cin, H, W = 2, 3, 16, 16
  x = jax.random.normal(kx, (B, Cin, H, W), jnp.float32)
  robot_joint_angles = jax.random.normal(kj, (B, 8), jnp.float32)  # unused
  params = init_params(kp, in_channels=Cin, out_channels=64)

  out = jax.block_until_ready(basic_stem_forward(x, robot_joint_angles, params))
  ref = jax.block_until_ready(reference_forward(x, robot_joint_angles, params))

  assert out.shape == (B, 64, H // 4, W // 4), out.shape
  max_err = float(jnp.max(jnp.abs(out - ref)))
  assert jnp.allclose(out, ref, rtol=1e-3, atol=1e-3), max_err

  print("KERNEL_OK")
</pallas_src>

<mosaic_0001>
module attributes {stable_mosaic.version = 11 : i64} {
  func.func @_stem_kernel(%arg0: i32, %arg1: i32, %arg2: memref<1x1x7x11x48xbf16, #tpu.memory_space<vmem>>, %arg3: memref<2x2x432x64xbf16, #tpu.memory_space<vmem>>, %arg4: memref<1x64xf32, #tpu.memory_space<vmem>>, %arg5: memref<1x4x4x64xf32, #tpu.memory_space<vmem>>) attributes {dimension_semantics = [#tpu.dimension_semantics<parallel>, #tpu.dimension_semantics<parallel>], iteration_bounds = array<i64: 2, 1>, scalar_prefetch = 0 : i64, scratch_operands = 0 : i64, tpu.core_type = #tpu.core_type<tc>, window_params = [{transform_indices = @transform_0, window_bounds = array<i64: 1, 1, 7, 11, 48>}, {pipeline_mode = #tpu.pipeline_mode<synchronous>, transform_indices = @transform_1, window_bounds = array<i64: 2, 2, 432, 64>}, {pipeline_mode = #tpu.pipeline_mode<synchronous>, transform_indices = @transform_2, window_bounds = array<i64: 1, 64>}, {transform_indices = @transform_3, window_bounds = array<i64: 1, 4, 4, 64>}]} {
    %c0 = arith.constant 0 : index
    %c0_0 = arith.constant 0 : index
    %0 = vector.load %arg4[%c0, %c0_0] : memref<1x64xf32, #tpu.memory_space<vmem>>, vector<1x64xf32>
    %cst = arith.constant 0.000000e+00 : f32
    %1 = vector.broadcast %cst : f32 to vector<32x64xf32>
    %c0_1 = arith.constant 0 : index
    %c0_2 = arith.constant 0 : index
    %c1 = arith.constant 1 : index
    %c1_3 = arith.constant 1 : index
    %c0_4 = arith.constant 0 : index
    %2 = vector.load %arg2[%c0_1, %c0_2, %c1, %c1_3, %c0_4] : memref<1x1x7x11x48xbf16, #tpu.memory_space<vmem>>, vector<1x1x4x8x48xbf16>
    %3 = vector.shape_cast %2 : vector<1x1x4x8x48xbf16> to vector<4x8x48xbf16>
    %4 = vector.shape_cast %3 : vector<4x8x48xbf16> to vector<32x48xbf16>
    %c0_5 = arith.constant 0 : index
    %c0_6 = arith.constant 0 : index
    %c0_7 = arith.constant 0 : index
    %c0_8 = arith.constant 0 : index
    %5 = vector.load %arg3[%c0_5, %c0_6, %c0_7, %c0_8] : memref<2x2x432x64xbf16, #tpu.memory_space<vmem>>, vector<1x1x48x64xbf16>
    %6 = vector.shape_cast %5 : vector<1x1x48x64xbf16> to vector<48x64xbf16>
    %cst_9 = arith.constant dense<0.000000e+00> : vector<32x64xf32>
    %7 = tpu.matmul %4, %6, %cst_9 {dimension_numbers = #tpu.dot_dimension_numbers<[1], [0], [0], [1], [0, 0, 1, 1], [], []>} : vector<32x48xbf16>, vector<48x64xbf16>, vector<32x64xf32> -> vector<32x64xf32>
    %8 = arith.addf %1, %7 : vector<32x64xf32>
    %c0_10 = arith.constant 0 : index
    %c0_11 = arith.constant 0 : index
    %c1_12 = arith.constant 1 : index
    %c2 = arith.constant 2 : index
    %c0_13 = arith.constant 0 : index
    %9 = vector.load %arg2[%c0_10, %c0_11, %c1_12, %c2, %c0_13] : memref<1x1x7x11x48xbf16, #tpu.memory_space<vmem>>, vector<1x1x4x8x48xbf16>
    %10 = vector.shape_cast %9 : vector<1x1x4x8x48xbf16> to vector<4x8x48xbf16>
    %11 = vector.shape_cast %10 : vector<4x8x48xbf16> to vector<32x48xbf16>
    %c0_14 = arith.constant 0 : index
    %c0_15 = arith.constant 0 : index
    %c48 = arith.constant 48 : index
    %c0_16 = arith.constant 0 : index
    %12 = vector.load %arg3[%c0_14, %c0_15, %c48, %c0_16] : memref<2x2x432x64xbf16, #tpu.memory_space<vmem>>, vector<1x1x48x64xbf16>
    %13 = vector.shape_cast %12 : vector<1x1x48x64xbf16> to vector<48x64xbf16>
    %cst_17 = arith.constant dense<0.000000e+00> : vector<32x64xf32>
    %14 = tpu.matmul %11, %13, %cst_17 {dimension_numbers = #tpu.dot_dimension_numbers<[1], [0], [0], [1], [0, 0, 1, 1], [], []>} : vector<32x48xbf16>, vector<48x64xbf16>, vector<32x64xf32> -> vector<32x64xf32>
    %15 = arith.addf %8, %14 : vector<32x64xf32>
    %c0_18 = arith.constant 0 : index
    %c0_19 = arith.constant 0 : index
    %c1_20 = arith.constant 1 : index
    %c3 = arith.constant 3 : index
    %c0_21 = arith.constant 0 : index
    %16 = vector.load %arg2[%c0_18, %c0_19, %c1_20, %c3, %c0_21] : memref<1x1x7x11x48xbf16, #tpu.memory_space<vmem>>, vector<1x1x4x8x48xbf16>
    %17 = vector.shape_cast %16 : vector<1x1x4x8x48xbf16> to vector<4x8x48xbf16>
    %18 = vector.shape_cast %17 : vector<4x8x48xbf16> to vector<32x48xbf16>
    %c0_22 = arith.constant 0 : index
    %c0_23 = arith.constant 0 : index
    %c96 = arith.constant 96 : index
    %c0_24 = arith.constant 0 : index
    %19 = vector.load %arg3[%c0_22, %c0_23, %c96, %c0_24] : memref<2x2x432x64xbf16, #tpu.memory_space<vmem>>, vector<1x1x48x64xbf16>
    %20 = vector.shape_cast %19 : vector<1x1x48x64xbf16> to vector<48x64xbf16>
    %cst_25 = arith.constant dense<0.000000e+00> : vector<32x64xf32>
    %21 = tpu.matmul %18, %20, %cst_25 {dimension_numbers = #tpu.dot_dimension_numbers<[1], [0], [0], [1], [0, 0, 1, 1], [], []>} : vector<32x48xbf16>, vector<48x64xbf16>, vector<32x64xf32> -> vector<32x64xf32>
    %22 = arith.addf %15, %21 : vector<32x64xf32>
    %c0_26 = arith.constant 0 : index
    %c0_27 = arith.constant 0 : index
    %c2_28 = arith.constant 2 : index
    %c1_29 = arith.constant 1 : index
    %c0_30 = arith.constant 0 : index
    %23 = vector.load %arg2[%c0_26, %c0_27, %c2_28, %c1_29, %c0_30] : memref<1x1x7x11x48xbf16, #tpu.memory_space<vmem>>, vector<1x1x4x8x48xbf16>
    %24 = vector.shape_cast %23 : vector<1x1x4x8x48xbf16> to vector<4x8x48xbf16>
    %25 = vector.shape_cast %24 : vector<4x8x48xbf16> to vector<32x48xbf16>
    %c0_31 = arith.constant 0 : index
    %c0_32 = arith.constant 0 : index
    %c144 = arith.constant 144 : index
    %c0_33 = arith.constant 0 : index
    %26 = vector.load %arg3[%c0_31, %c0_32, %c144, %c0_33] : memref<2x2x432x64xbf16, #tpu.memory_space<vmem>>, vector<1x1x48x64xbf16>
    %27 = vector.shape_cast %26 : vector<1x1x48x64xbf16> to vector<48x64xbf16>
    %cst_34 = arith.constant dense<0.000000e+00> : vector<32x64xf32>
    %28 = tpu.matmul %25, %27, %cst_34 {dimension_numbers = #tpu.dot_dimension_numbers<[1], [0], [0], [1], [0, 0, 1, 1], [], []>} : vector<32x48xbf16>, vector<48x64xbf16>, vector<32x64xf32> -> vector<32x64xf32>
    %29 = arith.addf %22, %28 : vector<32x64xf32>
    %c0_35 = arith.constant 0 : index
    %c0_36 = arith.constant 0 : index
    %c2_37 = arith.constant 2 : index
    %c2_38 = arith.constant 2 : index
    %c0_39 = arith.constant 0 : index
    %30 = vector.load %arg2[%c0_35, %c0_36, %c2_37, %c2_38, %c0_39] : memref<1x1x7x11x48xbf16, #tpu.memory_space<vmem>>, vector<1x1x4x8x48xbf16>
    %31 = vector.shape_cast %30 : vector<1x1x4x8x48xbf16> to vector<4x8x48xbf16>
    %32 = vector.shape_cast %31 : vector<4x8x48xbf16> to vector<32x48xbf16>
    %c0_40 = arith.constant 0 : index
    %c0_41 = arith.constant 0 : index
    %c192 = arith.constant 192 : index
    %c0_42 = arith.constant 0 : index
    %33 = vector.load %arg3[%c0_40, %c0_41, %c192, %c0_42] : memref<2x2x432x64xbf16, #tpu.memory_space<vmem>>, vector<1x1x48x64xbf16>
    %34 = vector.shape_cast %33 : vector<1x1x48x64xbf16> to vector<48x64xbf16>
    %cst_43 = arith.constant dense<0.000000e+00> : vector<32x64xf32>
    %35 = tpu.matmul %32, %34, %cst_43 {dimension_numbers = #tpu.dot_dimension_numbers<[1], [0], [0], [1], [0, 0, 1, 1], [], []>} : vector<32x48xbf16>, vector<48x64xbf16>, vector<32x64xf32> -> vector<32x64xf32>
    %36 = arith.addf %29, %35 : vector<32x64xf32>
    %c0_44 = arith.constant 0 : index
    %c0_45 = arith.constant 0 : index
    %c2_46 = arith.constant 2 : index
    %c3_47 = arith.constant 3 : index
    %c0_48 = arith.constant 0 : index
    %37 = vector.load %arg2[%c0_44, %c0_45, %c2_46, %c3_47, %c0_48] : memref<1x1x7x11x48xbf16, #tpu.memory_space<vmem>>, vector<1x1x4x8x48xbf16>
    %38 = vector.shape_cast %37 : vector<1x1x4x8x48xbf16> to vector<4x8x48xbf16>
    %39 = vector.shape_cast %38 : vector<4x8x48xbf16> to vector<32x48xbf16>
    %c0_49 = arith.constant 0 : index
    %c0_50 = arith.constant 0 : index
    %c240 = arith.constant 240 : index
    %c0_51 = arith.constant 0 : index
    %40 = vector.load %arg3[%c0_49, %c0_50, %c240, %c0_51] : memref<2x2x432x64xbf16, #tpu.memory_space<vmem>>, vector<1x1x48x64xbf16>
    %41 = vector.shape_cast %40 : vector<1x1x48x64xbf16> to vector<48x64xbf16>
    %cst_52 = arith.constant dense<0.000000e+00> : vector<32x64xf32>
    %42 = tpu.matmul %39, %41, %cst_52 {dimension_numbers = #tpu.dot_dimension_numbers<[1], [0], [0], [1], [0, 0, 1, 1], [], []>} : vector<32x48xbf16>, vector<48x64xbf16>, vector<32x64xf32> -> vector<32x64xf32>
    %43 = arith.addf %36, %42 : vector<32x64xf32>
    %c0_53 = arith.constant 0 : index
    %c0_54 = arith.constant 0 : index
    %c3_55 = arith.constant 3 : index
    %c1_56 = arith.constant 1 : index
    %c0_57 = arith.constant 0 : index
    %44 = vector.load %arg2[%c0_53, %c0_54, %c3_55, %c1_56, %c0_57] : memref<1x1x7x11x48xbf16, #tpu.memory_space<vmem>>, vector<1x1x4x8x48xbf16>
    %45 = vector.shape_cast %44 : vector<1x1x4x8x48xbf16> to vector<4x8x48xbf16>
    %46 = vector.shape_cast %45 : vector<4x8x48xbf16> to vector<32x48xbf16>
    %c0_58 = arith.constant 0 : index
    %c0_59 = arith.constant 0 : index
    %c288 = arith.constant 288 : index
    %c0_60 = arith.constant 0 : index
    %47 = vector.load %arg3[%c0_58, %c0_59, %c288, %c0_60] : memref<2x2x432x64xbf16, #tpu.memory_space<vmem>>, vector<1x1x48x64xbf16>
    %48 = vector.shape_cast %47 : vector<1x1x48x64xbf16> to vector<48x64xbf16>
    %cst_61 = arith.constant dense<0.000000e+00> : vector<32x64xf32>
    %49 = tpu.matmul %46, %48, %cst_61 {dimension_numbers = #tpu.dot_dimension_numbers<[1], [0], [0], [1], [0, 0, 1, 1], [], []>} : vector<32x48xbf16>, vector<48x64xbf16>, vector<32x64xf32> -> vector<32x64xf32>
    %50 = arith.addf %43, %49 : vector<32x64xf32>
    %c0_62 = arith.constant 0 : index
    %c0_63 = arith.constant 0 : index
    %c3_64 = arith.constant 3 : index
    %c2_65 = arith.constant 2 : index
    %c0_66 = arith.constant 0 : index
    %51 = vector.load %arg2[%c0_62, %c0_63, %c3_64, %c2_65, %c0_66] : memref<1x1x7x11x48xbf16, #tpu.memory_space<vmem>>, vector<1x1x4x8x48xbf16>
    %52 = vector.shape_cast %51 : vector<1x1x4x8x48xbf16> to vector<4x8x48xbf16>
    %53 = vector.shape_cast %52 : vector<4x8x48xbf16> to vector<32x48xbf16>
    %c0_67 = arith.constant 0 : index
    %c0_68 = arith.constant 0 : index
    %c336 = arith.constant 336 : index
    %c0_69 = arith.constant 0 : index
    %54 = vector.load %arg3[%c0_67, %c0_68, %c336, %c0_69] : memref<2x2x432x64xbf16, #tpu.memory_space<vmem>>, vector<1x1x48x64xbf16>
    %55 = vector.shape_cast %54 : vector<1x1x48x64xbf16> to vector<48x64xbf16>
    %cst_70 = arith.constant dense<0.000000e+00> : vector<32x64xf32>
    %56 = tpu.matmul %53, %55, %cst_70 {dimension_numbers = #tpu.dot_dimension_numbers<[1], [0], [0], [1], [0, 0, 1, 1], [], []>} : vector<32x48xbf16>, vector<48x64xbf16>, vector<32x64xf32> -> vector<32x64xf32>
    %57 = arith.addf %50, %56 : vector<32x64xf32>
    %c0_71 = arith.constant 0 : index
    %c0_72 = arith.constant 0 : index
    %c3_73 = arith.constant 3 : index
    %c3_74 = arith.constant 3 : index
    %c0_75 = arith.constant 0 : index
    %58 = vector.load %arg2[%c0_71, %c0_72, %c3_73, %c3_74, %c0_75] : memref<1x1x7x11x48xbf16, #tpu.memory_space<vmem>>, vector<1x1x4x8x48xbf16>
    %59 = vector.shape_cast %58 : vector<1x1x4x8x48xbf16> to vector<4x8x48xbf16>
    %60 = vector.shape_cast %59 : vector<4x8x48xbf16> to vector<32x48xbf16>
    %c0_76 = arith.constant 0 : index
    %c0_77 = arith.constant 0 : index
    %c384 = arith.constant 384 : index
    %c0_78 = arith.constant 0 : index
    %61 = vector.load %arg3[%c0_76, %c0_77, %c384, %c0_78] : memref<2x2x432x64xbf16, #tpu.memory_space<vmem>>, vector<1x1x48x64xbf16>
    %62 = vector.shape_cast %61 : vector<1x1x48x64xbf16> to vector<48x64xbf16>
    %cst_79 = arith.constant dense<0.000000e+00> : vector<32x64xf32>
    %63 = tpu.matmul %60, %62, %cst_79 {dimension_numbers = #tpu.dot_dimension_numbers<[1], [0], [0], [1], [0, 0, 1, 1], [], []>} : vector<32x48xbf16>, vector<48x64xbf16>, vector<32x64xf32> -> vector<32x64xf32>
    %64 = arith.addf %57, %63 : vector<32x64xf32>
    %65 = vector.broadcast %0 : vector<1x64xf32> to vector<32x64xf32>
    %66 = arith.addf %64, %65 : vector<32x64xf32>
    %cst_80 = arith.constant 0.000000e+00 : f32
    %67 = vector.broadcast %cst_80 : f32 to vector<32x64xf32>
    %68 = arith.maximumf %66, %67 : vector<32x64xf32>
    %69 = vector.shape_cast %68 : vector<32x64xf32> to vector<4x8x64xf32>
    %70 = vector.extract_strided_slice %69 {offsets = [0, 0, 0], sizes = [4, 4, 64], strides = [1, 1, 1]} : vector<4x8x64xf32> to vector<4x4x64xf32>
    %cst_81 = arith.constant 0.000000e+00 : f32
    %71 = vector.broadcast %cst_81 : f32 to vector<32x64xf32>
    %c0_82 = arith.constant 0 : index
    %c0_83 = arith.constant 0 : index
    %c1_84 = arith.constant 1 : index
    %c0_85 = arith.constant 0 : index
    %c0_86 = arith.constant 0 : index
    %72 = vector.load %arg2[%c0_82, %c0_83, %c1_84, %c0_85, %c0_86] : memref<1x1x7x11x48xbf16, #tpu.memory_space<vmem>>, vector<1x1x4x8x48xbf16>
    %73 = vector.shape_cast %72 : vector<1x1x4x8x48xbf16> to vector<4x8x48xbf16>
    %74 = vector.shape_cast %73 : vector<4x8x48xbf16> to vector<32x48xbf16>
    %c0_87 = arith.constant 0 : index
    %c1_88 = arith.constant 1 : index
    %c0_89 = arith.constant 0 : index
    %c0_90 = arith.constant 0 : index
    %75 = vector.load %arg3[%c0_87, %c1_88, %c0_89, %c0_90] : memref<2x2x432x64xbf16, #tpu.memory_space<vmem>>, vector<1x1x48x64xbf16>
    %76 = vector.shape_cast %75 : vector<1x1x48x64xbf16> to vector<48x64xbf16>
    %cst_91 = arith.constant dense<0.000000e+00> : vector<32x64xf32>
    %77 = tpu.matmul %74, %76, %cst_91 {dimension_numbers = #tpu.dot_dimension_numbers<[1], [0], [0], [1], [0, 0, 1, 1], [], []>} : vector<32x48xbf16>, vector<48x64xbf16>, vector<32x64xf32> -> vector<32x64xf32>
    %78 = arith.addf %71, %77 : vector<32x64xf32>
    %c0_92 = arith.constant 0 : index
    %c0_93 = arith.constant 0 : index
    %c1_94 = arith.constant 1 : index
    %c1_95 = arith.constant 1 : index
    %c0_96 = arith.constant 0 : index
    %79 = vector.load %arg2[%c0_92, %c0_93, %c1_94, %c1_95, %c0_96] : memref<1x1x7x11x48xbf16, #tpu.memory_space<vmem>>, vector<1x1x4x8x48xbf16>
    %80 = vector.shape_cast %79 : vector<1x1x4x8x48xbf16> to vector<4x8x48xbf16>
    %81 = vector.shape_cast %80 : vector<4x8x48xbf16> to vector<32x48xbf16>
    %c0_97 = arith.constant 0 : index
    %c1_98 = arith.constant 1 : index
    %c48_99 = arith.constant 48 : index
    %c0_100 = arith.constant 0 : index
    %82 = vector.load %arg3[%c0_97, %c1_98, %c48_99, %c0_100] : memref<2x2x432x64xbf16, #tpu.memory_space<vmem>>, vector<1x1x48x64xbf16>
    %83 = vector.shape_cast %82 : vector<1x1x48x64xbf16> to vector<48x64xbf16>
    %cst_101 = arith.constant dense<0.000000e+00> : vector<32x64xf32>
    %84 = tpu.matmul %81, %83, %cst_101 {dimension_numbers = #tpu.dot_dimension_numbers<[1], [0], [0], [1], [0, 0, 1, 1], [], []>} : vector<32x48xbf16>, vector<48x64xbf16>, vector<32x64xf32> -> vector<32x64xf32>
    %85 = arith.addf %78, %84 : vector<32x64xf32>
    %c0_102 = arith.constant 0 : index
    %c0_103 = arith.constant 0 : index
    %c1_104 = arith.constant 1 : index
    %c2_105 = arith.constant 2 : index
    %c0_106 = arith.constant 0 : index
    %86 = vector.load %arg2[%c0_102, %c0_103, %c1_104, %c2_105, %c0_106] : memref<1x1x7x11x48xbf16, #tpu.memory_space<vmem>>, vector<1x1x4x8x48xbf16>
    %87 = vector.shape_cast %86 : vector<1x1x4x8x48xbf16> to vector<4x8x48xbf16>
    %88 = vector.shape_cast %87 : vector<4x8x48xbf16> to vector<32x48xbf16>
    %c0_107 = arith.constant 0 : index
    %c1_108 = arith.constant 1 : index
    %c96_109 = arith.constant 96 : index
    %c0_110 = arith.constant 0 : index
    %89 = vector.load %arg3[%c0_107, %c1_108, %c96_109, %c0_110] : memref<2x2x432x64xbf16, #tpu.memory_space<vmem>>, vector<1x1x48x64xbf16>
    %90 = vector.shape_cast %89 : vector<1x1x48x64xbf16> to vector<48x64xbf16>
    %cst_111 = arith.constant dense<0.000000e+00> : vector<32x64xf32>
    %91 = tpu.matmul %88, %90, %cst_111 {dimension_numbers = #tpu.dot_dimension_numbers<[1], [0], [0], [1], [0, 0, 1, 1], [], []>} : vector<32x48xbf16>, vector<48x64xbf16>, vector<32x64xf32> -> vector<32x64xf32>
    %92 = arith.addf %85, %91 : vector<32x64xf32>
    %c0_112 = arith.constant 0 : index
    %c0_113 = arith.constant 0 : index
    %c2_114 = arith.constant 2 : index
    %c0_115 = arith.constant 0 : index
    %c0_116 = arith.constant 0 : index
    %93 = vector.load %arg2[%c0_112, %c0_113, %c2_114, %c0_115, %c0_116] : memref<1x1x7x11x48xbf16, #tpu.memory_space<vmem>>, vector<1x1x4x8x48xbf16>
    %94 = vector.shape_cast %93 : vector<1x1x4x8x48xbf16> to vector<4x8x48xbf16>
    %95 = vector.shape_cast %94 : vector<4x8x48xbf16> to vector<32x48xbf16>
    %c0_117 = arith.constant 0 : index
    %c1_118 = arith.constant 1 : index
    %c144_119 = arith.constant 144 : index
    %c0_120 = arith.constant 0 : index
    %96 = vector.load %arg3[%c0_117, %c1_118, %c144_119, %c0_120] : memref<2x2x432x64xbf16, #tpu.memory_space<vmem>>, vector<1x1x48x64xbf16>
    %97 = vector.shape_cast %96 : vector<1x1x48x64xbf16> to vector<48x64xbf16>
    %cst_121 = arith.constant dense<0.000000e+00> : vector<32x64xf32>
    %98 = tpu.matmul %95, %97, %cst_121 {dimension_numbers = #tpu.dot_dimension_numbers<[1], [0], [0], [1], [0, 0, 1, 1], [], []>} : vector<32x48xbf16>, vector<48x64xbf16>, vector<32x64xf32> -> vector<32x64xf32>
    %99 = arith.addf %92, %98 : vector<32x64xf32>
    %c0_122 = arith.constant 0 : index
    %c0_123 = arith.constant 0 : index
    %c2_124 = arith.constant 2 : index
    %c1_125 = arith.constant 1 : index
    %c0_126 = arith.constant 0 : index
    %100 = vector.load %arg2[%c0_122, %c0_123, %c2_124, %c1_125, %c0_126] : memref<1x1x7x11x48xbf16, #tpu.memory_space<vmem>>, vector<1x1x4x8x48xbf16>
    %101 = vector.shape_cast %100 : vector<1x1x4x8x48xbf16> to vector<4x8x48xbf16>
    %102 = vector.shape_cast %101 : vector<4x8x48xbf16> to vector<32x48xbf16>
    %c0_127 = arith.constant 0 : index
    %c1_128 = arith.constant 1 : index
    %c192_129 = arith.constant 192 : index
    %c0_130 = arith.constant 0 : index
    %103 = vector.load %arg3[%c0_127, %c1_128, %c192_129, %c0_130] : memref<2x2x432x64xbf16, #tpu.memory_space<vmem>>, vector<1x1x48x64xbf16>
    %104 = vector.shape_cast %103 : vector<1x1x48x64xbf16> to vector<48x64xbf16>
    %cst_131 = arith.constant dense<0.000000e+00> : vector<32x64xf32>
    %105 = tpu.matmul %102, %104, %cst_131 {dimension_numbers = #tpu.dot_dimension_numbers<[1], [0], [0], [1], [0, 0, 1, 1], [], []>} : vector<32x48xbf16>, vector<48x64xbf16>, vector<32x64xf32> -> vector<32x64xf32>
    %106 = arith.addf %99, %105 : vector<32x64xf32>
    %c0_132 = arith.constant 0 : index
    %c0_133 = arith.constant 0 : index
    %c2_134 = arith.constant 2 : index
    %c2_135 = arith.constant 2 : index
    %c0_136 = arith.constant 0 : index
    %107 = vector.load %arg2[%c0_132, %c0_133, %c2_134, %c2_135, %c0_136] : memref<1x1x7x11x48xbf16, #tpu.memory_space<vmem>>, vector<1x1x4x8x48xbf16>
    %108 = vector.shape_cast %107 : vector<1x1x4x8x48xbf16> to vector<4x8x48xbf16>
    %109 = vector.shape_cast %108 : vector<4x8x48xbf16> to vector<32x48xbf16>
    %c0_137 = arith.constant 0 : index
    %c1_138 = arith.constant 1 : index
    %c240_139 = arith.constant 240 : index
    %c0_140 = arith.constant 0 : index
    %110 = vector.load %arg3[%c0_137, %c1_138, %c240_139, %c0_140] : memref<2x2x432x64xbf16, #tpu.memory_space<vmem>>, vector<1x1x48x64xbf16>
    %111 = vector.shape_cast %110 : vector<1x1x48x64xbf16> to vector<48x64xbf16>
    %cst_141 = arith.constant dense<0.000000e+00> : vector<32x64xf32>
    %112 = tpu.matmul %109, %111, %cst_141 {dimension_numbers = #tpu.dot_dimension_numbers<[1], [0], [0], [1], [0, 0, 1, 1], [], []>} : vector<32x48xbf16>, vector<48x64xbf16>, vector<32x64xf32> -> vector<32x64xf32>
    %113 = arith.addf %106, %112 : vector<32x64xf32>
    %c0_142 = arith.constant 0 : index
    %c0_143 = arith.constant 0 : index
    %c3_144 = arith.constant 3 : index
    %c0_145 = arith.constant 0 : index
    %c0_146 = arith.constant 0 : index
    %114 = vector.load %arg2[%c0_142, %c0_143, %c3_144, %c0_145, %c0_146] : memref<1x1x7x11x48xbf16, #tpu.memory_space<vmem>>, vector<1x1x4x8x48xbf16>
    %115 = vector.shape_cast %114 : vector<1x1x4x8x48xbf16> to vector<4x8x48xbf16>
    %116 = vector.shape_cast %115 : vector<4x8x48xbf16> to vector<32x48xbf16>
    %c0_147 = arith.constant 0 : index
    %c1_148 = arith.constant 1 : index
    %c288_149 = arith.constant 288 : index
    %c0_150 = arith.constant 0 : index
    %117 = vector.load %arg3[%c0_147, %c1_148, %c288_149, %c0_150] : memref<2x2x432x64xbf16, #tpu.memory_space<vmem>>, vector<1x1x48x64xbf16>
    %118 = vector.shape_cast %117 : vector<1x1x48x64xbf16> to vector<48x64xbf16>
    %cst_151 = arith.constant dense<0.000000e+00> : vector<32x64xf32>
    %119 = tpu.matmul %116, %118, %cst_151 {dimension_numbers = #tpu.dot_dimension_numbers<[1], [0], [0], [1], [0, 0, 1, 1], [], []>} : vector<32x48xbf16>, vector<48x64xbf16>, vector<32x64xf32> -> vector<32x64xf32>
    %120 = arith.addf %113, %119 : vector<32x64xf32>
    %c0_152 = arith.constant 0 : index
    %c0_153 = arith.constant 0 : index
    %c3_154 = arith.constant 3 : index
    %c1_155 = arith.constant 1 : index
    %c0_156 = arith.constant 0 : index
    %121 = vector.load %arg2[%c0_152, %c0_153, %c3_154, %c1_155, %c0_156] : memref<1x1x7x11x48xbf16, #tpu.memory_space<vmem>>, vector<1x1x4x8x48xbf16>
    %122 = vector.shape_cast %121 : vector<1x1x4x8x48xbf16> to vector<4x8x48xbf16>
    %123 = vector.shape_cast %122 : vector<4x8x48xbf16> to vector<32x48xbf16>
    %c0_157 = arith.constant 0 : index
    %c1_158 = arith.constant 1 : index
    %c336_159 = arith.constant 336 : index
    %c0_160 = arith.constant 0 : index
    %124 = vector.load %arg3[%c0_157, %c1_158, %c336_159, %c0_160] : memref<2x2x432x64xbf16, #tpu.memory_space<vmem>>, vector<1x1x48x64xbf16>
    %125 = vector.shape_cast %124 : vector<1x1x48x64xbf16> to vector<48x64xbf16>
    %cst_161 = arith.constant dense<0.000000e+00> : vector<32x64xf32>
    %126 = tpu.matmul %123, %125, %cst_161 {dimension_numbers = #tpu.dot_dimension_numbers<[1], [0], [0], [1], [0, 0, 1, 1], [], []>} : vector<32x48xbf16>, vector<48x64xbf16>, vector<32x64xf32> -> vector<32x64xf32>
    %127 = arith.addf %120, %126 : vector<32x64xf32>
    %c0_162 = arith.constant 0 : index
    %c0_163 = arith.constant 0 : index
    %c3_164 = arith.constant 3 : index
    %c2_165 = arith.constant 2 : index
    %c0_166 = arith.constant 0 : index
    %128 = vector.load %arg2[%c0_162, %c0_163, %c3_164, %c2_165, %c0_166] : memref<1x1x7x11x48xbf16, #tpu.memory_space<vmem>>, vector<1x1x4x8x48xbf16>
    %129 = vector.shape_cast %128 : vector<1x1x4x8x48xbf16> to vector<4x8x48xbf16>
    %130 = vector.shape_cast %129 : vector<4x8x48xbf16> to vector<32x48xbf16>
    %c0_167 = arith.constant 0 : index
    %c1_168 = arith.constant 1 : index
    %c384_169 = arith.constant 384 : index
    %c0_170 = arith.constant 0 : index
    %131 = vector.load %arg3[%c0_167, %c1_168, %c384_169, %c0_170] : memref<2x2x432x64xbf16, #tpu.memory_space<vmem>>, vector<1x1x48x64xbf16>
    %132 = vector.shape_cast %131 : vector<1x1x48x64xbf16> to vector<48x64xbf16>
    %cst_171 = arith.constant dense<0.000000e+00> : vector<32x64xf32>
    %133 = tpu.matmul %130, %132, %cst_171 {dimension_numbers = #tpu.dot_dimension_numbers<[1], [0], [0], [1], [0, 0, 1, 1], [], []>} : vector<32x48xbf16>, vector<48x64xbf16>, vector<32x64xf32> -> vector<32x64xf32>
    %134 = arith.addf %127, %133 : vector<32x64xf32>
    %135 = vector.broadcast %0 : vector<1x64xf32> to vector<32x64xf32>
    %136 = arith.addf %134, %135 : vector<32x64xf32>
    %cst_172 = arith.constant 0.000000e+00 : f32
    %137 = vector.broadcast %cst_172 : f32 to vector<32x64xf32>
    %138 = arith.maximumf %136, %137 : vector<32x64xf32>
    %139 = vector.shape_cast %138 : vector<32x64xf32> to vector<4x8x64xf32>
    %140 = vector.extract_strided_slice %139 {offsets = [0, 0, 0], sizes = [4, 5, 64], strides = [1, 1, 1]} : vector<4x8x64xf32> to vector<4x5x64xf32>
    %141 = tpu.iota {dimensions = array<i32: 1>} : vector<4x5x64xi32>
    %c2_i32 = arith.constant 2 : i32
    %142 = vector.broadcast %c2_i32 : i32 to vector<4x5x64xi32>
    %143 = arith.muli %142, %141 : vector<4x5x64xi32>
    %c1_i32 = arith.constant 1 : i32
    %144 = vector.broadcast %c1_i32 : i32 to vector<4x5x64xi32>
    %145 = arith.subi %143, %144 : vector<4x5x64xi32>
    %c0_i32 = arith.constant 0 : i32
    %146 = vector.broadcast %c0_i32 : i32 to vector<4x5x64xi32>
    %147 = arith.cmpi sge, %145, %146 : vector<4x5x64xi32>
    %c8_i32 = arith.constant 8 : i32
    %148 = vector.broadcast %c8_i32 : i32 to vector<4x5x64xi32>
    %149 = arith.cmpi slt, %145, %148 : vector<4x5x64xi32>
    %150 = arith.andi %147, %149 : vector<4x5x64xi1>
    %cst_173 = arith.constant 0.000000e+00 : f32
    %151 = vector.broadcast %cst_173 : f32 to vector<4x5x64xf32>
    %152 = arith.select %150, %140, %151 : vector<4x5x64xi1>, vector<4x5x64xf32>
    %cst_174 = arith.constant 0.000000e+00 : f32
    %153 = vector.broadcast %cst_174 : f32 to vector<40x64xf32>
    %c0_175 = arith.constant 0 : index
    %c0_176 = arith.constant 0 : index
    %c0_177 = arith.constant 0 : index
    %c1_178 = arith.constant 1 : index
    %c0_179 = arith.constant 0 : index
    %154 = vector.load %arg2[%c0_175, %c0_176, %c0_177, %c1_178, %c0_179] : memref<1x1x7x11x48xbf16, #tpu.memory_space<vmem>>, vector<1x1x5x8x48xbf16>
    %155 = vector.shape_cast %154 : vector<1x1x5x8x48xbf16> to vector<5x8x48xbf16>
    %156 = vector.shape_cast %155 : vector<5x8x48xbf16> to vector<40x48xbf16>
    %c1_180 = arith.constant 1 : index
    %c0_181 = arith.constant 0 : index
    %c0_182 = arith.constant 0 : index
    %c0_183 = arith.constant 0 : index
    %157 = vector.load %arg3[%c1_180, %c0_181, %c0_182, %c0_183] : memref<2x2x432x64xbf16, #tpu.memory_space<vmem>>, vector<1x1x48x64xbf16>
    %158 = vector.shape_cast %157 : vector<1x1x48x64xbf16> to vector<48x64xbf16>
    %cst_184 = arith.constant dense<0.000000e+00> : vector<40x64xf32>
    %159 = tpu.matmul %156, %158, %cst_184 {dimension_numbers = #tpu.dot_dimension_numbers<[1], [0], [0], [1], [0, 0, 1, 1], [], []>} : vector<40x48xbf16>, vector<48x64xbf16>, vector<40x64xf32> -> vector<40x64xf32>
    %160 = arith.addf %153, %159 : vector<40x64xf32>
    %c0_185 = arith.constant 0 : index
    %c0_186 = arith.constant 0 : index
    %c0_187 = arith.constant 0 : index
    %c2_188 = arith.constant 2 : index
    %c0_189 = arith.constant 0 : index
    %161 = vector.load %arg2[%c0_185, %c0_186, %c0_187, %c2_188, %c0_189] : memref<1x1x7x11x48xbf16, #tpu.memory_space<vmem>>, vector<1x1x5x8x48xbf16>
    %162 = vector.shape_cast %161 : vector<1x1x5x8x48xbf16> to vector<5x8x48xbf16>
    %163 = vector.shape_cast %162 : vector<5x8x48xbf16> to vector<40x48xbf16>
    %c1_190 = arith.constant 1 : index
    %c0_191 = arith.constant 0 : index
    %c48_192 = arith.constant 48 : index
    %c0_193 = arith.constant 0 : index
    %164 = vector.load %arg3[%c1_190, %c0_191, %c48_192, %c0_193] : memref<2x2x432x64xbf16, #tpu.memory_space<vmem>>, vector<1x1x48x64xbf16>
    %165 = vector.shape_cast %164 : vector<1x1x48x64xbf16> to vector<48x64xbf16>
    %cst_194 = arith.constant dense<0.000000e+00> : vector<40x64xf32>
    %166 = tpu.matmul %163, %165, %cst_194 {dimension_numbers = #tpu.dot_dimension_numbers<[1], [0], [0], [1], [0, 0, 1, 1], [], []>} : vector<40x48xbf16>, vector<48x64xbf16>, vector<40x64xf32> -> vector<40x64xf32>
    %167 = arith.addf %160, %166 : vector<40x64xf32>
    %c0_195 = arith.constant 0 : index
    %c0_196 = arith.constant 0 : index
    %c0_197 = arith.constant 0 : index
    %c3_198 = arith.constant 3 : index
    %c0_199 = arith.constant 0 : index
    %168 = vector.load %arg2[%c0_195, %c0_196, %c0_197, %c3_198, %c0_199] : memref<1x1x7x11x48xbf16, #tpu.memory_space<vmem>>, vector<1x1x5x8x48xbf16>
    %169 = vector.shape_cast %168 : vector<1x1x5x8x48xbf16> to vector<5x8x48xbf16>
    %170 = vector.shape_cast %169 : vector<5x8x48xbf16> to vector<40x48xbf16>
    %c1_200 = arith.constant 1 : index
    %c0_201 = arith.constant 0 : index
    %c96_202 = arith.constant 96 : index
    %c0_203 = arith.constant 0 : index
    %171 = vector.load %arg3[%c1_200, %c0_201, %c96_202, %c0_203] : memref<2x2x432x64xbf16, #tpu.memory_space<vmem>>, vector<1x1x48x64xbf16>
    %172 = vector.shape_cast %171 : vector<1x1x48x64xbf16> to vector<48x64xbf16>
    %cst_204 = arith.constant dense<0.000000e+00> : vector<40x64xf32>
    %173 = tpu.matmul %170, %172, %cst_204 {dimension_numbers = #tpu.dot_dimension_numbers<[1], [0], [0], [1], [0, 0, 1, 1], [], []>} : vector<40x48xbf16>, vector<48x64xbf16>, vector<40x64xf32> -> vector<40x64xf32>
    %174 = arith.addf %167, %173 : vector<40x64xf32>
    %c0_205 = arith.constant 0 : index
    %c0_206 = arith.constant 0 : index
    %c1_207 = arith.constant 1 : index
    %c1_208 = arith.constant 1 : index
    %c0_209 = arith.constant 0 : index
    %175 = vector.load %arg2[%c0_205, %c0_206, %c1_207, %c1_208, %c0_209] : memref<1x1x7x11x48xbf16, #tpu.memory_space<vmem>>, vector<1x1x5x8x48xbf16>
    %176 = vector.shape_cast %175 : vector<1x1x5x8x48xbf16> to vector<5x8x48xbf16>
    %177 = vector.shape_cast %176 : vector<5x8x48xbf16> to vector<40x48xbf16>
    %c1_210 = arith.constant 1 : index
    %c0_211 = arith.constant 0 : index
    %c144_212 = arith.constant 144 : index
    %c0_213 = arith.constant 0 : index
    %178 = vector.load %arg3[%c1_210, %c0_211, %c144_212, %c0_213] : memref<2x2x432x64xbf16, #tpu.memory_space<vmem>>, vector<1x1x48x64xbf16>
    %179 = vector.shape_cast %178 : vector<1x1x48x64xbf16> to vector<48x64xbf16>
    %cst_214 = arith.constant dense<0.000000e+00> : vector<40x64xf32>
    %180 = tpu.matmul %177, %179, %cst_214 {dimension_numbers = #tpu.dot_dimension_numbers<[1], [0], [0], [1], [0, 0, 1, 1], [], []>} : vector<40x48xbf16>, vector<48x64xbf16>, vector<40x64xf32> -> vector<40x64xf32>
    %181 = arith.addf %174, %180 : vector<40x64xf32>
    %c0_215 = arith.constant 0 : index
    %c0_216 = arith.constant 0 : index
    %c1_217 = arith.constant 1 : index
    %c2_218 = arith.constant 2 : index
    %c0_219 = arith.constant 0 : index
    %182 = vector.load %arg2[%c0_215, %c0_216, %c1_217, %c2_218, %c0_219] : memref<1x1x7x11x48xbf16, #tpu.memory_space<vmem>>, vector<1x1x5x8x48xbf16>
    %183 = vector.shape_cast %182 : vector<1x1x5x8x48xbf16> to vector<5x8x48xbf16>
    %184 = vector.shape_cast %183 : vector<5x8x48xbf16> to vector<40x48xbf16>
    %c1_220 = arith.constant 1 : index
    %c0_221 = arith.constant 0 : index
    %c192_222 = arith.constant 192 : index
    %c0_223 = arith.constant 0 : index
    %185 = vector.load %arg3[%c1_220, %c0_221, %c192_222, %c0_223] : memref<2x2x432x64xbf16, #tpu.memory_space<vmem>>, vector<1x1x48x64xbf16>
    %186 = vector.shape_cast %185 : vector<1x1x48x64xbf16> to vector<48x64xbf16>
    %cst_224 = arith.constant dense<0.000000e+00> : vector<40x64xf32>
    %187 = tpu.matmul %184, %186, %cst_224 {dimension_numbers = #tpu.dot_dimension_numbers<[1], [0], [0], [1], [0, 0, 1, 1], [], []>} : vector<40x48xbf16>, vector<48x64xbf16>, vector<40x64xf32> -> vector<40x64xf32>
    %188 = arith.addf %181, %187 : vector<40x64xf32>
    %c0_225 = arith.constant 0 : index
    %c0_226 = arith.constant 0 : index
    %c1_227 = arith.constant 1 : index
    %c3_228 = arith.constant 3 : index
    %c0_229 = arith.constant 0 : index
    %189 = vector.load %arg2[%c0_225, %c0_226, %c1_227, %c3_228, %c0_229] : memref<1x1x7x11x48xbf16, #tpu.memory_space<vmem>>, vector<1x1x5x8x48xbf16>
    %190 = vector.shape_cast %189 : vector<1x1x5x8x48xbf16> to vector<5x8x48xbf16>
    %191 = vector.shape_cast %190 : vector<5x8x48xbf16> to vector<40x48xbf16>
    %c1_230 = arith.constant 1 : index
    %c0_231 = arith.constant 0 : index
    %c240_232 = arith.constant 240 : index
    %c0_233 = arith.constant 0 : index
    %192 = vector.load %arg3[%c1_230, %c0_231, %c240_232, %c0_233] : memref<2x2x432x64xbf16, #tpu.memory_space<vmem>>, vector<1x1x48x64xbf16>
    %193 = vector.shape_cast %192 : vector<1x1x48x64xbf16> to vector<48x64xbf16>
    %cst_234 = arith.constant dense<0.000000e+00> : vector<40x64xf32>
    %194 = tpu.matmul %191, %193, %cst_234 {dimension_numbers = #tpu.dot_dimension_numbers<[1], [0], [0], [1], [0, 0, 1, 1], [], []>} : vector<40x48xbf16>, vector<48x64xbf16>, vector<40x64xf32> -> vector<40x64xf32>
    %195 = arith.addf %188, %194 : vector<40x64xf32>
    %c0_235 = arith.constant 0 : index
    %c0_236 = arith.constant 0 : index
    %c2_237 = arith.constant 2 : index
    %c1_238 = arith.constant 1 : index
    %c0_239 = arith.constant 0 : index
    %196 = vector.load %arg2[%c0_235, %c0_236, %c2_237, %c1_238, %c0_239] : memref<1x1x7x11x48xbf16, #tpu.memory_space<vmem>>, vector<1x1x5x8x48xbf16>
    %197 = vector.shape_cast %196 : vector<1x1x5x8x48xbf16> to vector<5x8x48xbf16>
    %198 = vector.shape_cast %197 : vector<5x8x48xbf16> to vector<40x48xbf16>
    %c1_240 = arith.constant 1 : index
    %c0_241 = arith.constant 0 : index
    %c288_242 = arith.constant 288 : index
    %c0_243 = arith.constant 0 : index
    %199 = vector.load %arg3[%c1_240, %c0_241, %c288_242, %c0_243] : memref<2x2x432x64xbf16, #tpu.memory_space<vmem>>, vector<1x1x48x64xbf16>
    %200 = vector.shape_cast %199 : vector<1x1x48x64xbf16> to vector<48x64xbf16>
    %cst_244 = arith.constant dense<0.000000e+00> : vector<40x64xf32>
    %201 = tpu.matmul %198, %200, %cst_244 {dimension_numbers = #tpu.dot_dimension_numbers<[1], [0], [0], [1], [0, 0, 1, 1], [], []>} : vector<40x48xbf16>, vector<48x64xbf16>, vector<40x64xf32> -> vector<40x64xf32>
    %202 = arith.addf %195, %201 : vector<40x64xf32>
    %c0_245 = arith.constant 0 : index
    %c0_246 = arith.constant 0 : index
    %c2_247 = arith.constant 2 : index
    %c2_248 = arith.constant 2 : index
    %c0_249 = arith.constant 0 : index
    %203 = vector.load %arg2[%c0_245, %c0_246, %c2_247, %c2_248, %c0_249] : memref<1x1x7x11x48xbf16, #tpu.memory_space<vmem>>, vector<1x1x5x8x48xbf16>
    %204 = vector.shape_cast %203 : vector<1x1x5x8x48xbf16> to vector<5x8x48xbf16>
    %205 = vector.shape_cast %204 : vector<5x8x48xbf16> to vector<40x48xbf16>
    %c1_250 = arith.constant 1 : index
    %c0_251 = arith.constant 0 : index
    %c336_252 = arith.constant 336 : index
    %c0_253 = arith.constant 0 : index
    %206 = vector.load %arg3[%c1_250, %c0_251, %c336_252, %c0_253] : memref<2x2x432x64xbf16, #tpu.memory_space<vmem>>, vector<1x1x48x64xbf16>
    %207 = vector.shape_cast %206 : vector<1x1x48x64xbf16> to vector<48x64xbf16>
    %cst_254 = arith.constant dense<0.000000e+00> : vector<40x64xf32>
    %208 = tpu.matmul %205, %207, %cst_254 {dimension_numbers = #tpu.dot_dimension_numbers<[1], [0], [0], [1], [0, 0, 1, 1], [], []>} : vector<40x48xbf16>, vector<48x64xbf16>, vector<40x64xf32> -> vector<40x64xf32>
    %209 = arith.addf %202, %208 : vector<40x64xf32>
    %c0_255 = arith.constant 0 : index
    %c0_256 = arith.constant 0 : index
    %c2_257 = arith.constant 2 : index
    %c3_258 = arith.constant 3 : index
    %c0_259 = arith.constant 0 : index
    %210 = vector.load %arg2[%c0_255, %c0_256, %c2_257, %c3_258, %c0_259] : memref<1x1x7x11x48xbf16, #tpu.memory_space<vmem>>, vector<1x1x5x8x48xbf16>
    %211 = vector.shape_cast %210 : vector<1x1x5x8x48xbf16> to vector<5x8x48xbf16>
    %212 = vector.shape_cast %211 : vector<5x8x48xbf16> to vector<40x48xbf16>
    %c1_260 = arith.constant 1 : index
    %c0_261 = arith.constant 0 : index
    %c384_262 = arith.constant 384 : index
    %c0_263 = arith.constant 0 : index
    %213 = vector.load %arg3[%c1_260, %c0_261, %c384_262, %c0_263] : memref<2x2x432x64xbf16, #tpu.memory_space<vmem>>, vector<1x1x48x64xbf16>
    %214 = vector.shape_cast %213 : vector<1x1x48x64xbf16> to vector<48x64xbf16>
    %cst_264 = arith.constant dense<0.000000e+00> : vector<40x64xf32>
    %215 = tpu.matmul %212, %214, %cst_264 {dimension_numbers = #tpu.dot_dimension_numbers<[1], [0], [0], [1], [0, 0, 1, 1], [], []>} : vector<40x48xbf16>, vector<48x64xbf16>, vector<40x64xf32> -> vector<40x64xf32>
    %216 = arith.addf %209, %215 : vector<40x64xf32>
    %217 = vector.broadcast %0 : vector<1x64xf32> to vector<40x64xf32>
    %218 = arith.addf %216, %217 : vector<40x64xf32>
    %cst_265 = arith.constant 0.000000e+00 : f32
    %219 = vector.broadcast %cst_265 : f32 to vector<40x64xf32>
    %220 = arith.maximumf %218, %219 : vector<40x64xf32>
    %221 = vector.shape_cast %220 : vector<40x64xf32> to vector<5x8x64xf32>
    %222 = vector.extract_strided_slice %221 {offsets = [0, 0, 0], sizes = [5, 4, 64], strides = [1, 1, 1]} : vector<5x8x64xf32> to vector<5x4x64xf32>
    %c4_i32 = arith.constant 4 : i32
    %223 = arith.muli %arg1, %c4_i32 : i32
    %224 = tpu.iota {dimensions = array<i32: 0>} : vector<5x4x64xi32>
    %225 = vector.broadcast %223 : i32 to vector<5x4x64xi32>
    %226 = arith.addi %225, %224 : vector<5x4x64xi32>
    %c2_i32_266 = arith.constant 2 : i32
    %227 = vector.broadcast %c2_i32_266 : i32 to vector<5x4x64xi32>
    %228 = arith.muli %227, %226 : vector<5x4x64xi32>
    %c1_i32_267 = arith.constant 1 : i32
    %229 = vector.broadcast %c1_i32_267 : i32 to vector<5x4x64xi32>
    %230 = arith.subi %228, %229 : vector<5x4x64xi32>
    %c0_i32_268 = arith.constant 0 : i32
    %231 = vector.broadcast %c0_i32_268 : i32 to vector<5x4x64xi32>
    %232 = arith.cmpi sge, %230, %231 : vector<5x4x64xi32>
    %c8_i32_269 = arith.constant 8 : i32
    %233 = vector.broadcast %c8_i32_269 : i32 to vector<5x4x64xi32>
    %234 = arith.cmpi slt, %230, %233 : vector<5x4x64xi32>
    %235 = arith.andi %232, %234 : vector<5x4x64xi1>
    %cst_270 = arith.constant 0.000000e+00 : f32
    %236 = vector.broadcast %cst_270 : f32 to vector<5x4x64xf32>
    %237 = arith.select %235, %222, %236 : vector<5x4x64xi1>, vector<5x4x64xf32>
    %cst_271 = arith.constant 0.000000e+00 : f32
    %238 = vector.broadcast %cst_271 : f32 to vector<40x64xf32>
    %c0_272 = arith.constant 0 : index
    %c0_273 = arith.constant 0 : index
    %c0_274 = arith.constant 0 : index
    %c0_275 = arith.constant 0 : index
    %c0_276 = arith.constant 0 : index
    %239 = vector.load %arg2[%c0_272, %c0_273, %c0_274, %c0_275, %c0_276] : memref<1x1x7x11x48xbf16, #tpu.memory_space<vmem>>, vector<1x1x5x8x48xbf16>
    %240 = vector.shape_cast %239 : vector<1x1x5x8x48xbf16> to vector<5x8x48xbf16>
    %241 = vector.shape_cast %240 : vector<5x8x48xbf16> to vector<40x48xbf16>
    %c1_277 = arith.constant 1 : index
    %c1_278 = arith.constant 1 : index
    %c0_279 = arith.constant 0 : index
    %c0_280 = arith.constant 0 : index
    %242 = vector.load %arg3[%c1_277, %c1_278, %c0_279, %c0_280] : memref<2x2x432x64xbf16, #tpu.memory_space<vmem>>, vector<1x1x48x64xbf16>
    %243 = vector.shape_cast %242 : vector<1x1x48x64xbf16> to vector<48x64xbf16>
    %cst_281 = arith.constant dense<0.000000e+00> : vector<40x64xf32>
    %244 = tpu.matmul %241, %243, %cst_281 {dimension_numbers = #tpu.dot_dimension_numbers<[1], [0], [0], [1], [0, 0, 1, 1], [], []>} : vector<40x48xbf16>, vector<48x64xbf16>, vector<40x64xf32> -> vector<40x64xf32>
    %245 = arith.addf %238, %244 : vector<40x64xf32>
    %c0_282 = arith.constant 0 : index
    %c0_283 = arith.constant 0 : index
    %c0_284 = arith.constant 0 : index
    %c1_285 = arith.constant 1 : index
    %c0_286 = arith.constant 0 : index
    %246 = vector.load %arg2[%c0_282, %c0_283, %c0_284, %c1_285, %c0_286] : memref<1x1x7x11x48xbf16, #tpu.memory_space<vmem>>, vector<1x1x5x8x48xbf16>
    %247 = vector.shape_cast %246 : vector<1x1x5x8x48xbf16> to vector<5x8x48xbf16>
    %248 = vector.shape_cast %247 : vector<5x8x48xbf16> to vector<40x48xbf16>
    %c1_287 = arith.constant 1 : index
    %c1_288 = arith.constant 1 : index
    %c48_289 = arith.constant 48 : index
    %c0_290 = arith.constant 0 : index
    %249 = vector.load %arg3[%c1_287, %c1_288, %c48_289, %c0_290] : memref<2x2x432x64xbf16, #tpu.memory_space<vmem>>, vector<1x1x48x64xbf16>
    %250 = vector.shape_cast %249 : vector<1x1x48x64xbf16> to vector<48x64xbf16>
    %cst_291 = arith.constant dense<0.000000e+00> : vector<40x64xf32>
    %251 = tpu.matmul %248, %250, %cst_291 {dimension_numbers = #tpu.dot_dimension_numbers<[1], [0], [0], [1], [0, 0, 1, 1], [], []>} : vector<40x48xbf16>, vector<48x64xbf16>, vector<40x64xf32> -> vector<40x64xf32>
    %252 = arith.addf %245, %251 : vector<40x64xf32>
    %c0_292 = arith.constant 0 : index
    %c0_293 = arith.constant 0 : index
    %c0_294 = arith.constant 0 : index
    %c2_295 = arith.constant 2 : index
    %c0_296 = arith.constant 0 : index
    %253 = vector.load %arg2[%c0_292, %c0_293, %c0_294, %c2_295, %c0_296] : memref<1x1x7x11x48xbf16, #tpu.memory_space<vmem>>, vector<1x1x5x8x48xbf16>
    %254 = vector.shape_cast %253 : vector<1x1x5x8x48xbf16> to vector<5x8x48xbf16>
    %255 = vector.shape_cast %254 : vector<5x8x48xbf16> to vector<40x48xbf16>
    %c1_297 = arith.constant 1 : index
    %c1_298 = arith.constant 1 : index
    %c96_299 = arith.constant 96 : index
    %c0_300 = arith.constant 0 : index
    %256 = vector.load %arg3[%c1_297, %c1_298, %c96_299, %c0_300] : memref<2x2x432x64xbf16, #tpu.memory_space<vmem>>, vector<1x1x48x64xbf16>
    %257 = vector.shape_cast %256 : vector<1x1x48x64xbf16> to vector<48x64xbf16>
    %cst_301 = arith.constant dense<0.000000e+00> : vector<40x64xf32>
    %258 = tpu.matmul %255, %257, %cst_301 {dimension_numbers = #tpu.dot_dimension_numbers<[1], [0], [0], [1], [0, 0, 1, 1], [], []>} : vector<40x48xbf16>, vector<48x64xbf16>, vector<40x64xf32> -> vector<40x64xf32>
    %259 = arith.addf %252, %258 : vector<40x64xf32>
    %c0_302 = arith.constant 0 : index
    %c0_303 = arith.constant 0 : index
    %c1_304 = arith.constant 1 : index
    %c0_305 = arith.constant 0 : index
    %c0_306 = arith.constant 0 : index
    %260 = vector.load %arg2[%c0_302, %c0_303, %c1_304, %c0_305, %c0_306] : memref<1x1x7x11x48xbf16, #tpu.memory_space<vmem>>, vector<1x1x5x8x48xbf16>
    %261 = vector.shape_cast %260 : vector<1x1x5x8x48xbf16> to vector<5x8x48xbf16>
    %262 = vector.shape_cast %261 : vector<5x8x48xbf16> to vector<40x48xbf16>
    %c1_307 = arith.constant 1 : index
    %c1_308 = arith.constant 1 : index
    %c144_309 = arith.constant 144 : index
    %c0_310 = arith.constant 0 : index
    %263 = vector.load %arg3[%c1_307, %c1_308, %c144_309, %c0_310] : memref<2x2x432x64xbf16, #tpu.memory_space<vmem>>, vector<1x1x48x64xbf16>
    %264 = vector.shape_cast %263 : vector<1x1x48x64xbf16> to vector<48x64xbf16>
    %cst_311 = arith.constant dense<0.000000e+00> : vector<40x64xf32>
    %265 = tpu.matmul %262, %264, %cst_311 {dimension_numbers = #tpu.dot_dimension_numbers<[1], [0], [0], [1], [0, 0, 1, 1], [], []>} : vector<40x48xbf16>, vector<48x64xbf16>, vector<40x64xf32> -> vector<40x64xf32>
    %266 = arith.addf %259, %265 : vector<40x64xf32>
    %c0_312 = arith.constant 0 : index
    %c0_313 = arith.constant 0 : index
    %c1_314 = arith.constant 1 : index
    %c1_315 = arith.constant 1 : index
    %c0_316 = arith.constant 0 : index
    %267 = vector.load %arg2[%c0_312, %c0_313, %c1_314, %c1_315, %c0_316] : memref<1x1x7x11x48xbf16, #tpu.memory_space<vmem>>, vector<1x1x5x8x48xbf16>
    %268 = vector.shape_cast %267 : vector<1x1x5x8x48xbf16> to vector<5x8x48xbf16>
    %269 = vector.shape_cast %268 : vector<5x8x48xbf16> to vector<40x48xbf16>
    %c1_317 = arith.constant 1 : index
    %c1_318 = arith.constant 1 : index
    %c192_319 = arith.constant 192 : index
    %c0_320 = arith.constant 0 : index
    %270 = vector.load %arg3[%c1_317, %c1_318, %c192_319, %c0_320] : memref<2x2x432x64xbf16, #tpu.memory_space<vmem>>, vector<1x1x48x64xbf16>
    %271 = vector.shape_cast %270 : vector<1x1x48x64xbf16> to vector<48x64xbf16>
    %cst_321 = arith.constant dense<0.000000e+00> : vector<40x64xf32>
    %272 = tpu.matmul %269, %271, %cst_321 {dimension_numbers = #tpu.dot_dimension_numbers<[1], [0], [0], [1], [0, 0, 1, 1], [], []>} : vector<40x48xbf16>, vector<48x64xbf16>, vector<40x64xf32> -> vector<40x64xf32>
    %273 = arith.addf %266, %272 : vector<40x64xf32>
    %c0_322 = arith.constant 0 : index
    %c0_323 = arith.constant 0 : index
    %c1_324 = arith.constant 1 : index
    %c2_325 = arith.constant 2 : index
    %c0_326 = arith.constant 0 : index
    %274 = vector.load %arg2[%c0_322, %c0_323, %c1_324, %c2_325, %c0_326] : memref<1x1x7x11x48xbf16, #tpu.memory_space<vmem>>, vector<1x1x5x8x48xbf16>
    %275 = vector.shape_cast %274 : vector<1x1x5x8x48xbf16> to vector<5x8x48xbf16>
    %276 = vector.shape_cast %275 : vector<5x8x48xbf16> to vector<40x48xbf16>
    %c1_327 = arith.constant 1 : index
    %c1_328 = arith.constant 1 : index
    %c240_329 = arith.constant 240 : index
    %c0_330 = arith.constant 0 : index
    %277 = vector.load %arg3[%c1_327, %c1_328, %c240_329, %c0_330] : memref<2x2x432x64xbf16, #tpu.memory_space<vmem>>, vector<1x1x48x64xbf16>
    %278 = vector.shape_cast %277 : vector<1x1x48x64xbf16> to vector<48x64xbf16>
    %cst_331 = arith.constant dense<0.000000e+00> : vector<40x64xf32>
    %279 = tpu.matmul %276, %278, %cst_331 {dimension_numbers = #tpu.dot_dimension_numbers<[1], [0], [0], [1], [0, 0, 1, 1], [], []>} : vector<40x48xbf16>, vector<48x64xbf16>, vector<40x64xf32> -> vector<40x64xf32>
    %280 = arith.addf %273, %279 : vector<40x64xf32>
    %c0_332 = arith.constant 0 : index
    %c0_333 = arith.constant 0 : index
    %c2_334 = arith.constant 2 : index
    %c0_335 = arith.constant 0 : index
    %c0_336 = arith.constant 0 : index
    %281 = vector.load %arg2[%c0_332, %c0_333, %c2_334, %c0_335, %c0_336] : memref<1x1x7x11x48xbf16, #tpu.memory_space<vmem>>, vector<1x1x5x8x48xbf16>
    %282 = vector.shape_cast %281 : vector<1x1x5x8x48xbf16> to vector<5x8x48xbf16>
    %283 = vector.shape_cast %282 : vector<5x8x48xbf16> to vector<40x48xbf16>
    %c1_337 = arith.constant 1 : index
    %c1_338 = arith.constant 1 : index
    %c288_339 = arith.constant 288 : index
    %c0_340 = arith.constant 0 : index
    %284 = vector.load %arg3[%c1_337, %c1_338, %c288_339, %c0_340] : memref<2x2x432x64xbf16, #tpu.memory_space<vmem>>, vector<1x1x48x64xbf16>
    %285 = vector.shape_cast %284 : vector<1x1x48x64xbf16> to vector<48x64xbf16>
    %cst_341 = arith.constant dense<0.000000e+00> : vector<40x64xf32>
    %286 = tpu.matmul %283, %285, %cst_341 {dimension_numbers = #tpu.dot_dimension_numbers<[1], [0], [0], [1], [0, 0, 1, 1], [], []>} : vector<40x48xbf16>, vector<48x64xbf16>, vector<40x64xf32> -> vector<40x64xf32>
    %287 = arith.addf %280, %286 : vector<40x64xf32>
    %c0_342 = arith.constant 0 : index
    %c0_343 = arith.constant 0 : index
    %c2_344 = arith.constant 2 : index
    %c1_345 = arith.constant 1 : index
    %c0_346 = arith.constant 0 : index
    %288 = vector.load %arg2[%c0_342, %c0_343, %c2_344, %c1_345, %c0_346] : memref<1x1x7x11x48xbf16, #tpu.memory_space<vmem>>, vector<1x1x5x8x48xbf16>
    %289 = vector.shape_cast %288 : vector<1x1x5x8x48xbf16> to vector<5x8x48xbf16>
    %290 = vector.shape_cast %289 : vector<5x8x48xbf16> to vector<40x48xbf16>
    %c1_347 = arith.constant 1 : index
    %c1_348 = arith.constant 1 : index
    %c336_349 = arith.constant 336 : index
    %c0_350 = arith.constant 0 : index
    %291 = vector.load %arg3[%c1_347, %c1_348, %c336_349, %c0_350] : memref<2x2x432x64xbf16, #tpu.memory_space<vmem>>, vector<1x1x48x64xbf16>
    %292 = vector.shape_cast %291 : vector<1x1x48x64xbf16> to vector<48x64xbf16>
    %cst_351 = arith.constant dense<0.000000e+00> : vector<40x64xf32>
    %293 = tpu.matmul %290, %292, %cst_351 {dimension_numbers = #tpu.dot_dimension_numbers<[1], [0], [0], [1], [0, 0, 1, 1], [], []>} : vector<40x48xbf16>, vector<48x64xbf16>, vector<40x64xf32> -> vector<40x64xf32>
    %294 = arith.addf %287, %293 : vector<40x64xf32>
    %c0_352 = arith.constant 0 : index
    %c0_353 = arith.constant 0 : index
    %c2_354 = arith.constant 2 : index
    %c2_355 = arith.constant 2 : index
    %c0_356 = arith.constant 0 : index
    %295 = vector.load %arg2[%c0_352, %c0_353, %c2_354, %c2_355, %c0_356] : memref<1x1x7x11x48xbf16, #tpu.memory_space<vmem>>, vector<1x1x5x8x48xbf16>
    %296 = vector.shape_cast %295 : vector<1x1x5x8x48xbf16> to vector<5x8x48xbf16>
    %297 = vector.shape_cast %296 : vector<5x8x48xbf16> to vector<40x48xbf16>
    %c1_357 = arith.constant 1 : index
    %c1_358 = arith.constant 1 : index
    %c384_359 = arith.constant 384 : index
    %c0_360 = arith.constant 0 : index
    %298 = vector.load %arg3[%c1_357, %c1_358, %c384_359, %c0_360] : memref<2x2x432x64xbf16, #tpu.memory_space<vmem>>, vector<1x1x48x64xbf16>
    %299 = vector.shape_cast %298 : vector<1x1x48x64xbf16> to vector<48x64xbf16>
    %cst_361 = arith.constant dense<0.000000e+00> : vector<40x64xf32>
    %300 = tpu.matmul %297, %299, %cst_361 {dimension_numbers = #tpu.dot_dimension_numbers<[1], [0], [0], [1], [0, 0, 1, 1], [], []>} : vector<40x48xbf16>, vector<48x64xbf16>, vector<40x64xf32> -> vector<40x64xf32>
    %301 = arith.addf %294, %300 : vector<40x64xf32>
    %302 = vector.broadcast %0 : vector<1x64xf32> to vector<40x64xf32>
    %303 = arith.addf %301, %302 : vector<40x64xf32>
    %cst_362 = arith.constant 0.000000e+00 : f32
    %304 = vector.broadcast %cst_362 : f32 to vector<40x64xf32>
    %305 = arith.maximumf %303, %304 : vector<40x64xf32>
    %306 = vector.shape_cast %305 : vector<40x64xf32> to vector<5x8x64xf32>
    %307 = vector.extract_strided_slice %306 {offsets = [0, 0, 0], sizes = [5, 5, 64], strides = [1, 1, 1]} : vector<5x8x64xf32> to vector<5x5x64xf32>
    %c4_i32_363 = arith.constant 4 : i32
    %308 = arith.muli %arg1, %c4_i32_363 : i32
    %309 = tpu.iota {dimensions = array<i32: 0>} : vector<5x5x64xi32>
    %310 = vector.broadcast %308 : i32 to vector<5x5x64xi32>
    %311 = arith.addi %310, %309 : vector<5x5x64xi32>
    %c2_i32_364 = arith.constant 2 : i32
    %312 = vector.broadcast %c2_i32_364 : i32 to vector<5x5x64xi32>
    %313 = arith.muli %312, %311 : vector<5x5x64xi32>
    %c1_i32_365 = arith.constant 1 : i32
    %314 = vector.broadcast %c1_i32_365 : i32 to vector<5x5x64xi32>
    %315 = arith.subi %313, %314 : vector<5x5x64xi32>
    %c0_i32_366 = arith.constant 0 : i32
    %316 = vector.broadcast %c0_i32_366 : i32 to vector<5x5x64xi32>
    %317 = arith.cmpi sge, %315, %316 : vector<5x5x64xi32>
    %c8_i32_367 = arith.constant 8 : i32
    %318 = vector.broadcast %c8_i32_367 : i32 to vector<5x5x64xi32>
    %319 = arith.cmpi slt, %315, %318 : vector<5x5x64xi32>
    %320 = arith.andi %317, %319 : vector<5x5x64xi1>
    %cst_368 = arith.constant 0.000000e+00 : f32
    %321 = vector.broadcast %cst_368 : f32 to vector<5x5x64xf32>
    %322 = arith.select %320, %307, %321 : vector<5x5x64xi1>, vector<5x5x64xf32>
    %323 = tpu.iota {dimensions = array<i32: 1>} : vector<5x5x64xi32>
    %c2_i32_369 = arith.constant 2 : i32
    %324 = vector.broadcast %c2_i32_369 : i32 to vector<5x5x64xi32>
    %325 = arith.muli %324, %323 : vector<5x5x64xi32>
    %c1_i32_370 = arith.constant 1 : i32
    %326 = vector.broadcast %c1_i32_370 : i32 to vector<5x5x64xi32>
    %327 = arith.subi %325, %326 : vector<5x5x64xi32>
    %c0_i32_371 = arith.constant 0 : i32
    %328 = vector.broadcast %c0_i32_371 : i32 to vector<5x5x64xi32>
    %329 = arith.cmpi sge, %327, %328 : vector<5x5x64xi32>
    %c8_i32_372 = arith.constant 8 : i32
    %330 = vector.broadcast %c8_i32_372 : i32 to vector<5x5x64xi32>
    %331 = arith.cmpi slt, %327, %330 : vector<5x5x64xi32>
    %332 = arith.andi %329, %331 : vector<5x5x64xi1>
    %cst_373 = arith.constant 0.000000e+00 : f32
    %333 = vector.broadcast %cst_373 : f32 to vector<5x5x64xf32>
    %334 = arith.select %332, %322, %333 : vector<5x5x64xi1>, vector<5x5x64xf32>
    %335 = vector.extract_strided_slice %152 {offsets = [0, 0, 0], sizes = [4, 4, 64], strides = [1, 1, 1]} : vector<4x5x64xf32> to vector<4x4x64xf32>
    %336 = arith.maximumf %70, %335 : vector<4x4x64xf32>
    %337 = vector.extract_strided_slice %152 {offsets = [0, 1, 0], sizes = [4, 4, 64], strides = [1, 1, 1]} : vector<4x5x64xf32> to vector<4x4x64xf32>
    %338 = arith.maximumf %336, %337 : vector<4x4x64xf32>
    %339 = vector.extract_strided_slice %237 {offsets = [0, 0, 0], sizes = [4, 4, 64], strides = [1, 1, 1]} : vector<5x4x64xf32> to vector<4x4x64xf32>
    %340 = arith.maximumf %338, %339 : vector<4x4x64xf32>
    %341 = vector.extract_strided_slice %237 {offsets = [1, 0, 0], sizes = [4, 4, 64], strides = [1, 1, 1]} : vector<5x4x64xf32> to vector<4x4x64xf32>
    %342 = arith.maximumf %340, %341 : vector<4x4x64xf32>
    %343 = vector.extract_strided_slice %334 {offsets = [0, 0, 0], sizes = [4, 4, 64], strides = [1, 1, 1]} : vector<5x5x64xf32> to vector<4x4x64xf32>
    %344 = arith.maximumf %342, %343 : vector<4x4x64xf32>
    %345 = vector.extract_strided_slice %334 {offsets = [0, 1, 0], sizes = [4, 4, 64], strides = [1, 1, 1]} : vector<5x5x64xf32> to vector<4x4x64xf32>
    %346 = arith.maximumf %344, %345 : vector<4x4x64xf32>
    %347 = vector.extract_strided_slice %334 {offsets = [1, 0, 0], sizes = [4, 4, 64], strides = [1, 1, 1]} : vector<5x5x64xf32> to vector<4x4x64xf32>
    %348 = arith.maximumf %346, %347 : vector<4x4x64xf32>
    %349 = vector.extract_strided_slice %334 {offsets = [1, 1, 0], sizes = [4, 4, 64], strides = [1, 1, 1]} : vector<5x5x64xf32> to vector<4x4x64xf32>
    %350 = arith.maximumf %348, %349 : vector<4x4x64xf32>
    %c0_374 = arith.constant 0 : index
    %c0_375 = arith.constant 0 : index
    %c0_376 = arith.constant 0 : index
    %c0_377 = arith.constant 0 : index
    %351 = vector.load %arg5[%c0_374, %c0_375, %c0_376, %c0_377] : memref<1x4x4x64xf32, #tpu.memory_space<vmem>>, vector<1x4x4x64xf32>
    %352 = vector.shape_cast %351 : vector<1x4x4x64xf32> to vector<4x4x64xf32>
    %353 = vector.shape_cast %350 : vector<4x4x64xf32> to vector<1x4x4x64xf32>
    tpu.vector_store %arg5[%c0_374, %c0_375, %c0_376, %c0_377], %353 {strides = array<i32>} : memref<1x4x4x64xf32, #tpu.memory_space<vmem>>, vector<1x4x4x64xf32>,
    return
  }
  func.func @transform_0(%arg0: i32, %arg1: i32) -> (i32, i32, i32, i32, i32) {
    %c0_i32 = arith.constant 0 : i32
    %c0_i32_0 = arith.constant 0 : i32
    %c0_i32_1 = arith.constant 0 : i32
    %c0_i32_2 = arith.constant 0 : i32
    return %arg0, %arg1, %c0_i32, %c0_i32_0, %c0_i32_1 : i32, i32, i32, i32, i32
  }
  func.func @transform_1(%arg0: i32, %arg1: i32) -> (i32, i32, i32, i32) {
    %c0_i32 = arith.constant 0 : i32
    %c0_i32_0 = arith.constant 0 : i32
    %c0_i32_1 = arith.constant 0 : i32
    %c0_i32_2 = arith.constant 0 : i32
    %c0_i32_3 = arith.constant 0 : i32
    return %c0_i32, %c0_i32_0, %c0_i32_1, %c0_i32_2 : i32, i32, i32, i32
  }
  func.func @transform_2(%arg0: i32, %arg1: i32) -> (i32, i32) {
    %c0_i32 = arith.constant 0 : i32
    %c0_i32_0 = arith.constant 0 : i32
    %c0_i32_1 = arith.constant 0 : i32
    return %c0_i32, %c0_i32_0 : i32, i32
  }
  func.func @transform_3(%arg0: i32, %arg1: i32) -> (i32, i32, i32, i32) {
    %c0_i32 = arith.constant 0 : i32
    %c0_i32_0 = arith.constant 0 : i32
    %c0_i32_1 = arith.constant 0 : i32
    return %arg0, %arg1, %c0_i32, %c0_i32_0 : i32, i32, i32, i32
  }
}

</mosaic_0001>

<llo_original>
// kernel: tpu_custom_call.1
$region0: #{tpu_custom_call.1}
  #allocation0 [shape = 'u32[]', space=smem, size = 0x4, offset = 0x4, fixed_abs, tag = 'smem constant byte address 0x4 - core index']
  #allocation1 [shape = 'u32[72,128]{1,0:T(1,128)}', space=vmem, size = 0x9000, scoped, tag = 'internal scratch']
  %s0 = inlined_call_operand.vmem [shape: bf16[2,1,7,11,48], index: 0, kind: input, shape index: {}]
  %s1 = inlined_call_operand.vmem [shape: bf16[2,2,432,64], index: 1, kind: input, shape index: {}]
  %s2 = inlined_call_operand.vmem [shape: f32[1,64], index: 2, kind: input, shape index: {}]
  %s3 = inlined_call_operand.hbm [shape: f32[2,4,4,64], index: 3, kind: output, shape index: {}]
  %s4 = sld [smem:[#allocation0]]
  $region45: #{tpu_custom_call.1} parent=0
    _
  %s6 = ssub.s32 1, %s4
  %s7 = scalar_select 0, %s6, %s4
  $region1: #{tpu_custom_call.1} parent=0
    #allocation2 [shape = 'u8[16384]{0}', space=vmem, size = 0x4000, scoped, tag = 'output window, operand 0']
    #allocation3 [shape = 's32[2]{0}', space=sflag, size = 0x8, scoped, tag = 'scoped memory for tpu_custom_call.1']
    %8 = vsyncpa [#allocation3], 0
    %s9 = scalar_lea.sflag [#allocation3], 1
    %10 = vsyncpa %s9, 0
    loop: start=0, step=1, limit=4
    $region2: #{tpu_custom_call.1} parent=1 // loop_pre_header
      _
    $region3: #{tpu_custom_call.1} parent=1 // loop_header
      %s12 = sphi 0, %s16
      %p13 = scmp.ge.s32.totalorder %s12, 4
      %s19 = sphi 0, %s31
      %s20 = sphi 0, %s27
      %s21 = sphi 0, %s19
      %s22 = sphi 0, %s20
      %s23 = sphi 0, %s21
      %s24 = sphi 0, %s22
      %s36 = sphi 0, %s38
      %s39 = sphi 0, %s36
      %s40 = sphi 0, %s39
      %s56 = sphi 0, %s40
      %s60 = sphi 0, %s60
      %s62 = sphi 0, %s60
      %s63 = sphi 0, %s62
      %s77 = sphi 0, %s63
      %s81 = sphi 0, %s81
      %s83 = sphi 0, %s81
      %s84 = sphi 0, %s83
      %s98 = sphi 0, %s84
      %s106 = sphi 0, %s108
      %s109 = sphi 0, %s106
      %s110 = sphi 0, %s109
      %s126 = sphi 0, %s110
    $region4: #{tpu_custom_call.1} parent=1 // loop_header_branch
      %15 = sbr.rel (%p13) target = $region8
    $region5: #{tpu_custom_call.1} parent=1 // loop_body
      %s17 = ssub.s32 %s12, 1
      %s18 = ssub.s32 %s12, 2
      %s25 = sadd.s32 1, %s20
      %p26 = scmp.ge.s32.totalorder %s25, 1
      %s27 = scalar_select %p26, 0, %s25
      %s28 = sadd.s32 1, %s19
      %s29 = scalar_select %p26, %s28, %s19
      %p30 = scmp.ge.s32.totalorder %s29, 2
      %s31 = scalar_select %p30, 0, %s29
      %s32 = ssub.s32 %s19, %s31
      %s33 = ssub.s32 %s20, %s27
      %s34 = sor.u32 %s32, %s33
      %p35 = scmp.eq.s32.totalorder %s34, 0
      %s37 = sadd.s32 %s36, 1
      %s38 = scalar_select %p35, %s36, %s37
      %p41 = pneg %p35
      %p42 = scmp.eq.s32.totalorder %s12, 1
      %p43 = por %p41, %p42
      %p44 = scmp.ne.s32.totalorder %s36, %s39
      %p45 = scmp.eq.s32.totalorder %s12, 0
      %p46 = por %p44, %p45
      %p47 = scmp.ne.s32.totalorder %s36, %s39
      %p48 = scmp.eq.s32.totalorder %s17, 1
      %p49 = por %p47, %p48
      %p50 = scmp.ne.s32.totalorder %s39, %s40
      %p51 = scmp.eq.s32.totalorder %s17, 0
      %p52 = por %p50, %p51
      %p53 = scmp.ne.s32.totalorder %s39, %s40
      %p54 = scmp.eq.s32.totalorder %s18, 1
      %p55 = por %p53, %p54
      %p57 = scmp.ne.s32.totalorder %s40, %s56
      %p58 = scmp.eq.s32.totalorder %s18, 0
      %p59 = por %p57, %p58
      %s61 = sadd.s32 %s60, 1
      %p64 = scmp.eq.s32.totalorder %s12, 1
      %p65 = scmp.ne.s32.totalorder %s60, %s62
      %p66 = scmp.eq.s32.totalorder %s12, 0
      %p67 = por %p65, %p66
      %p68 = scmp.ne.s32.totalorder %s60, %s62
      %p69 = scmp.eq.s32.totalorder %s17, 1
      %p70 = por %p68, %p69
      %p71 = scmp.ne.s32.totalorder %s62, %s63
      %p72 = scmp.eq.s32.totalorder %s17, 0
      %p73 = por %p71, %p72
      %p74 = scmp.ne.s32.totalorder %s62, %s63
      %p75 = scmp.eq.s32.totalorder %s18, 1
      %p76 = por %p74, %p75
      %p78 = scmp.ne.s32.totalorder %s63, %s77
      %p79 = scmp.eq.s32.totalorder %s18, 0
      %p80 = por %p78, %p79
      %s82 = sadd.s32 %s81, 1
      %p85 = scmp.eq.s32.totalorder %s12, 1
      %p86 = scmp.ne.s32.totalorder %s81, %s83
      %p87 = scmp.eq.s32.totalorder %s12, 0
      %p88 = por %p86, %p87
      %p89 = scmp.ne.s32.totalorder %s81, %s83
      %p90 = scmp.eq.s32.totalorder %s17, 1
      %p91 = por %p89, %p90
      %p92 = scmp.ne.s32.totalorder %s83, %s84
      %p93 = scmp.eq.s32.totalorder %s17, 0
      %p94 = por %p92, %p93
      %p95 = scmp.ne.s32.totalorder %s83, %s84
      %p96 = scmp.eq.s32.totalorder %s18, 1
      %p97 = por %p95, %p96
      %p99 = scmp.ne.s32.totalorder %s84, %s98
      %p100 = scmp.eq.s32.totalorder %s18, 0
      %p101 = por %p99, %p100
      %s102 = ssub.s32 %s19, %s31
      %s103 = ssub.s32 %s20, %s27
      %s104 = sor.u32 %s102, %s103
      %p105 = scmp.eq.s32.totalorder %s104, 0
      %s107 = sadd.s32 %s106, 1
      %s108 = scalar_select %p105, %s106, %s107
      %p111 = pneg %p105
      %p112 = scmp.eq.s32.totalorder %s12, 1
      %p113 = por %p111, %p112
      %p114 = scmp.ne.s32.totalorder %s106, %s109
      %p115 = scmp.eq.s32.totalorder %s12, 0
      %p116 = por %p114, %p115
      %p117 = scmp.ne.s32.totalorder %s106, %s109
      %p118 = scmp.eq.s32.totalorder %s17, 1
      %p119 = por %p117, %p118
      %p120 = scmp.ne.s32.totalorder %s109, %s110
      %p121 = scmp.eq.s32.totalorder %s17, 0
      %p122 = por %p120, %p121
      %p123 = scmp.ne.s32.totalorder %s109, %s110
      %p124 = scmp.eq.s32.totalorder %s18, 1
      %p125 = por %p123, %p124
      %p127 = scmp.ne.s32.totalorder %s110, %s126
      %p128 = scmp.eq.s32.totalorder %s18, 0
      %p129 = por %p127, %p128
      %p130 = scmp.le.s32.totalorder 1, %s12
      %p131 = scmp.lt.s32.totalorder %s12, 3
      %p132 = pnand %p130, %p131
      %p133 = pneg %p132
      // Predicated region
      $region9: #{tpu_custom_call.1} parent=5 // pred_check
        _
      $region10: #{tpu_custom_call.1} parent=5 // pred_check_branch
        %135 = sbr.rel (%p132) target = $region12
      $region11: #{tpu_custom_call.1} parent=5 // pred_region
        %s136 = ssub.s32 %s12, 1
        // Predicated region
        $region13: #{tpu_custom_call.1} parent=11 // pred_check
          %p137 = pneg %p73
        $region14: #{tpu_custom_call.1} parent=11 // pred_check_branch
          %139 = sbr.rel (%p137) target = $region16
        $region15: #{tpu_custom_call.1} parent=11 // pred_region
          _
        $region16: #{tpu_custom_call.1} parent=11 // pred_fallthru
          _
        // Predicated region
        $region17: #{tpu_custom_call.1} parent=11 // pred_check
          %p140 = pneg %p94
        $region18: #{tpu_custom_call.1} parent=11 // pred_check_branch
          %142 = sbr.rel (%p140) target = $region20
        $region19: #{tpu_custom_call.1} parent=11 // pred_region
          _
        $region20: #{tpu_custom_call.1} parent=11 // pred_fallthru
          _
      $region12: #{tpu_custom_call.1} parent=5 // pred_fallthru
        _
      %p143 = scmp.lt.s32.totalorder %s12, 2
      // Predicated region
      $region21: #{tpu_custom_call.1} parent=5 // pred_check
        %p144 = pneg %p143
      $region22: #{tpu_custom_call.1} parent=5 // pred_check_branch
        %146 = sbr.rel (%p144) target = $region24
      $region23: #{tpu_custom_call.1} parent=5 // pred_region
        // Predicated region
        $region25: #{tpu_custom_call.1} parent=23 // pred_check
          %p147 = pneg %p46
        $region26: #{tpu_custom_call.1} parent=23 // pred_check_branch
          %149 = sbr.rel (%p147) target = $region28
        $region27: #{tpu_custom_call.1} parent=23 // pred_region
          %p150 = scmp.lt.s32.totalorder %s19, 1
          %s151 = scalar_select %p150, %s19, 1
          %p152 = scmp.lt.s32.totalorder %s20, 0
          %s153 = scalar_select %p152, %s20, 0
          %s154 = smul.addr %s153, 14
          %s155 = smul.addr %s151, 14
          %s156 = sadd.s32 %s154, %s155
          %s157 = smul.addr %s156, 4
          %s158 = scalar_lea.vmem %s0, %s157
        $region28: #{tpu_custom_call.1} parent=23 // pred_fallthru
          _
      $region24: #{tpu_custom_call.1} parent=5 // pred_fallthru
        _
      %p159 = scmp.le.s32.totalorder 1, %s12
      %p160 = scmp.lt.s32.totalorder %s12, 3
      %p161 = pnand %p159, %p160
      %p162 = pneg %p161
      // Predicated region
      $region29: #{tpu_custom_call.1} parent=5 // pred_check
        _
      $region30: #{tpu_custom_call.1} parent=5 // pred_check_branch
        %164 = sbr.rel (%p161) target = $region32
      $region31: #{tpu_custom_call.1} parent=5 // pred_region
        %s165 = ssub.s32 %s12, 1
        %p166 = scmp.lt.s32.totalorder %s21, 1
        %s167 = scalar_select %p166, %s21, 1
        %p168 = scmp.lt.s32.totalorder %s22, 0
        %s169 = scalar_select %p168, %s22, 0
        %s170 = smul.addr %s169, 14
        %s171 = smul.addr %s167, 14
        %s172 = sadd.s32 %s170, %s171
        %s173 = smul.addr %s172, 4
        %s174 = scalar_lea.vmem %s0, %s173
        %p175 = pneg %p52
        %p176 = pneg %p49
        %p177 = pneg %p73
        %p178 = pneg %p70
        %p179 = pneg %p94
        %p180 = pneg %p91
        %p181 = pneg %p122
        %p182 = pneg %p119
        %s183 = sand.u32 %s109, 1
        %s184 = scalar_lea.sflag [#allocation3], %s183
        %s185 = sand.u32 %s109, 1
        %s186 = smul.addr %s185, 16
        %s187 = scalar_lea.vmem [#allocation2], %s186
        %p188 = scmp.lt.s32.totalorder %s21, 1
        %s189 = scalar_select %p188, %s21, 1
        %p190 = scmp.lt.s32.totalorder %s22, 0
        %s191 = scalar_select %p190, %s22, 0
        %s192 = smul.addr %s191, 14
        %s193 = smul.addr %s189, 14
        %s194 = sadd.s32 %s192, %s193
        %s195 = smul.addr %s194, 4
        %s196 = scalar_lea.vmem %s0, %s195
        %s197 = smul.u32 4, %s22
        %v199 = vld [vmem:[%s2] sm:$0x1]
        %s200 = scalar_lea.vmem %s196, 8
        %v201 = vld [vmem:[%s200] sm:$0xf]
        %v202 = vld [vmem:[%s200 + $0x4] sm:$0x1]
        %v203 = vld [vmem:[%s200 + $0x8] sm:$0xf]
        %v204 = vld [vmem:[%s200 + $0xc] sm:$0x1]
        %v205 = vld [vmem:[%s200 + $0x10] sm:$0xf]
        %v206 = vld [vmem:[%s200 + $0x14] sm:$0x1]
        %v207 = vld [vmem:[%s200 + $0x18] sm:$0xf]
        %v208 = vld [vmem:[%s200 + $0x1c] sm:$0x1]
        %vm209 = vsmask.f32 3328
        %vm210 = vsmask.f32 7440
        %vm211 = vmor %vm209, %vm210
        %v213 = vshrl.u32 %v201, 16
        %v215 = vrot.slane %v213, 4
        %v216 = vshll.u32 %v201, 16
        %v218 = vrot.slane %v216, 5
        %v219 = vor.u32 %v215, %v218
        %v220 = vrot.slane %v219, 4
        %v222 = vshll.u32 %v202, 16
        %v224 = vrot.slane %v222, 5
        %v225 = vsel %vm211, %v220, %v224
        %v227 = vshrl.u32 %v203, 16
        %v229 = vrot.slane %v227, 4
        %v230 = vshll.u32 %v203, 16
        %v232 = vrot.slane %v230, 5
        %v233 = vor.u32 %v229, %v232
        %v234 = vrot.slane %v233, 4
        %v236 = vshll.u32 %v204, 16
        %v238 = vrot.slane %v236, 5
        %v239 = vsel %vm211, %v234, %v238
        %v241 = vshrl.u32 %v205, 16
        %v243 = vrot.slane %v241, 4
        %v244 = vshll.u32 %v205, 16
        %v246 = vrot.slane %v244, 5
        %v247 = vor.u32 %v243, %v246
        %v248 = vrot.slane %v247, 4
        %v250 = vshll.u32 %v206, 16
        %v252 = vrot.slane %v250, 5
        %v253 = vsel %vm211, %v248, %v252
        %v255 = vshrl.u32 %v207, 16
        %v257 = vrot.slane %v255, 4
        %v258 = vshll.u32 %v207, 16
        %v260 = vrot.slane %v258, 5
        %v261 = vor.u32 %v257, %v260
        %v262 = vrot.slane %v261, 4
        %v264 = vshll.u32 %v208, 16
        %v266 = vrot.slane %v264, 5
        %v267 = vsel %vm211, %v262, %v266
        %v268 = vld [vmem:[%s1] sm:$0xf]
        %v269 = vld [vmem:[%s1 + $0x4] sm:$0xf]
        %v270 = vld [vmem:[%s1 + $0x8] sm:$0xf]
        %v271 = vld [vmem:[%s1 + $0xc] sm:$0xf]
        %v272 = vld [vmem:[%s1 + $0x10] sm:$0xf]
        %v273 = vld [vmem:[%s1 + $0x14] sm:$0xf]
        %v274 = vld [vmem:[%s200] sm:$0xe]
        %v275 = vld [vmem:[%s200 + $0x8] sm:$0xe]
        %v276 = vld [vmem:[%s200 + $0x10] sm:$0xe]
        %v277 = vld [vmem:[%s200 + $0x18] sm:$0xe]
        %vm286 = vcmask 1042432
        %vm287 = vcmask 1046532
        %vm288 = vmor %vm286, %vm287
        %v289 = vrot.slane %v274, 5
        %v290 = vrot.slane %v289, 4
        %v291 = vrot.slane %v202, 5
        %v292 = vsel %vm288, %v290, %v291
        %v293 = vrot.slane %v275, 5
        %v294 = vrot.slane %v293, 4
        %v295 = vrot.slane %v204, 5
        %v296 = vsel %vm288, %v294, %v295
        %v297 = vrot.slane %v276, 5
        %v298 = vrot.slane %v297, 4
        %v299 = vrot.slane %v206, 5
        %v300 = vsel %vm288, %v298, %v299
        %v301 = vrot.slane %v277, 5
        %v302 = vrot.slane %v301, 4
        %v303 = vrot.slane %v208, 5
        %v304 = vsel %vm288, %v302, %v303
        %v305 = vld [vmem:[%s1 + $0x18] sm:$0xf]
        %v306 = vld [vmem:[%s1 + $0x1c] sm:$0xf]
        %v307 = vld [vmem:[%s1 + $0x20] sm:$0xf]
        %v308 = vld [vmem:[%s1 + $0x24] sm:$0xf]
        %v309 = vld [vmem:[%s1 + $0x28] sm:$0xf]
        %v310 = vld [vmem:[%s1 + $0x2c] sm:$0xf]
        %v311 = vunpack.c.l.b16 %v292
        %v312 = vunpack.c.l.b16 %v296
        %v313 = vunpack.c.l.b16 %v300
        %v314 = vunpack.c.l.b16 %v304
        %v315 = vpack.c.b16 %v312, %v311
        %v316 = vpack.c.b16 %v314, %v313
        %v323 = vunpack.c.l.b16 %v305
        %v324 = vunpack.c.l.b16 %v306
        %v325 = vunpack.c.l.b16 %v307
        %v326 = vunpack.c.l.b16 %v308
        %v327 = vunpack.c.l.b16 %v309
        %v328 = vunpack.c.l.b16 %v310
        %v329 = vpack.c.b16 %v324, %v323
        %v330 = vpack.c.b16 %v326, %v325
        %v331 = vpack.c.b16 %v328, %v327
        %vm335 = vcmask 392192
        %v337 = vsel %vm335, %v315, 0
        %v340 = vsel %vm335, %v316, 0
        %342 = vmatpush.bf16.msra.mxu0 0
        %343 = vmatpush.bf16.msra.mxu0 0
        %344 = vmatpush.bf16.msra.mxu0 0
        %345 = vmatpush.bf16.msra.mxu0 0
        %346 = vmatpush.bf16.msra.mxu0 0
        %347 = vmatpush.bf16.msra.mxu0 %v331
        %348 = vmatpush.bf16.msra.mxu0 %v330
        %349 = vmatpush.bf16.msra.mxu0 %v329
        %350 = vmatmul.bf16.gmra.mxu0 %v337
        %v351 = vpop.f32.mrf.mxu0
        %v352 = vadd.f32 0.0, %v351
        %v353 = vpop.f32.mrf.mxu0
        %v354 = vadd.f32 0.0, %v353
        %355 = vmatmul.bf16.gmra.mxu0 %v340
        %v356 = vpop.f32.mrf.mxu0
        %v357 = vadd.f32 0.0, %v356
        %v358 = vpop.f32.mrf.mxu0
        %v359 = vadd.f32 0.0, %v358
        %360 = vdwg.mxu0
        %v361 = vunpack.c.l.b16 %v225
        %v362 = vunpack.c.l.b16 %v239
        %v363 = vunpack.c.l.b16 %v253
        %v364 = vunpack.c.l.b16 %v267
        %v365 = vpack.c.b16 %v362, %v361
        %v366 = vpack.c.b16 %v364, %v363
        %v373 = vunpack.c.l.b16 %v268
        %v374 = vunpack.c.l.b16 %v269
        %v375 = vunpack.c.l.b16 %v270
        %v376 = vunpack.c.l.b16 %v271
        %v377 = vunpack.c.l.b16 %v272
        %v378 = vunpack.c.l.b16 %v273
        %v379 = vpack.c.b16 %v374, %v373
        %v380 = vpack.c.b16 %v376, %v375
        %v381 = vpack.c.b16 %v378, %v377
        %v386 = vsel %vm335, %v365, 0
        %v389 = vsel %vm335, %v366, 0
        %391 = vmatpush.bf16.msra.mxu0 0
        %392 = vmatpush.bf16.msra.mxu0 0
        %393 = vmatpush.bf16.msra.mxu0 0
        %394 = vmatpush.bf16.msra.mxu0 0
        %395 = vmatpush.bf16.msra.mxu0 0
        %396 = vmatpush.bf16.msra.mxu0 %v381
        %397 = vmatpush.bf16.msra.mxu0 %v380
        %398 = vmatpush.bf16.msra.mxu0 %v379
        %399 = vmatmul.bf16.gmra.mxu0 %v386
        %v400 = vpop.f32.mrf.mxu0
        %v401 = vadd.f32 %v352, %v400
        %v402 = vpop.f32.mrf.mxu0
        %v403 = vadd.f32 %v354, %v402
        %404 = vmatmul.bf16.gmra.mxu0 %v389
        %v405 = vpop.f32.mrf.mxu0
        %v406 = vadd.f32 %v357, %v405
        %v407 = vpop.f32.mrf.mxu0
        %v408 = vadd.f32 %v359, %v407
        %409 = vdwg.mxu0
        %v410 = vld [vmem:[%s200 + $0x4] sm:$0x3]
        %v411 = vld [vmem:[%s200 + $0xc] sm:$0x3]
        %v412 = vld [vmem:[%s200 + $0x14] sm:$0x3]
        %v413 = vld [vmem:[%s200 + $0x1c] sm:$0x3]
        %vm414 = vsmask.f32 2304
        %vm415 = vsmask.f32 6416
        %vm416 = vmor %vm414, %vm415
        %v418 = vshrl.u32 %v274, 16
        %v420 = vrot.slane %v418, 5
        %v421 = vshll.u32 %v274, 16
        %v423 = vrot.slane %v421, 6
        %v424 = vor.u32 %v420, %v423
        %v425 = vrot.slane %v424, 4
        %v427 = vshrl.u32 %v410, 16
        %v429 = vrot.slane %v427, 5
        %v430 = vshll.u32 %v410, 16
        %v432 = vrot.slane %v430, 6
        %v433 = vor.u32 %v429, %v432
        %v434 = vsel %vm416, %v425, %v433
        %v436 = vshrl.u32 %v275, 16
        %v438 = vrot.slane %v436, 5
        %v439 = vshll.u32 %v275, 16
        %v441 = vrot.slane %v439, 6
        %v442 = vor.u32 %v438, %v441
        %v443 = vrot.slane %v442, 4
        %v445 = vshrl.u32 %v411, 16
        %v447 = vrot.slane %v445, 5
        %v448 = vshll.u32 %v411, 16
        %v450 = vrot.slane %v448, 6
        %v451 = vor.u32 %v447, %v450
        %v452 = vsel %vm416, %v443, %v451
        %v454 = vshrl.u32 %v276, 16
        %v456 = vrot.slane %v454, 5
        %v457 = vshll.u32 %v276, 16
        %v459 = vrot.slane %v457, 6
        %v460 = vor.u32 %v456, %v459
        %v461 = vrot.slane %v460, 4
        %v463 = vshrl.u32 %v412, 16
        %v465 = vrot.slane %v463, 5
        %v466 = vshll.u32 %v412, 16
        %v468 = vrot.slane %v466, 6
        %v469 = vor.u32 %v465, %v468
        %v470 = vsel %vm416, %v461, %v469
        %v472 = vshrl.u32 %v277, 16
        %v474 = vrot.slane %v472, 5
        %v475 = vshll.u32 %v277, 16
        %v477 = vrot.slane %v475, 6
        %v478 = vor.u32 %v474, %v477
        %v479 = vrot.slane %v478, 4
        %v481 = vshrl.u32 %v413, 16
        %v483 = vrot.slane %v481, 5
        %v484 = vshll.u32 %v413, 16
        %v486 = vrot.slane %v484, 6
        %v487 = vor.u32 %v483, %v486
        %v488 = vsel %vm416, %v479, %v487
        %v489 = vld [vmem:[%s1 + $0x30] sm:$0xf]
        %v490 = vld [vmem:[%s1 + $0x34] sm:$0xf]
        %v491 = vld [vmem:[%s1 + $0x38] sm:$0xf]
        %v492 = vld [vmem:[%s1 + $0x3c] sm:$0xf]
        %v493 = vld [vmem:[%s1 + $0x40] sm:$0xf]
        %v494 = vld [vmem:[%s1 + $0x44] sm:$0xf]
        %v495 = vunpack.c.l.b16 %v434
        %v496 = vunpack.c.l.b16 %v452
        %v497 = vunpack.c.l.b16 %v470
        %v498 = vunpack.c.l.b16 %v488
        %v499 = vpack.c.b16 %v496, %v495
        %v500 = vpack.c.b16 %v498, %v497
        %v507 = vunpack.c.l.b16 %v489
        %v508 = vunpack.c.l.b16 %v490
        %v509 = vunpack.c.l.b16 %v491
        %v510 = vunpack.c.l.b16 %v492
        %v511 = vunpack.c.l.b16 %v493
        %v512 = vunpack.c.l.b16 %v494
        %v513 = vpack.c.b16 %v508, %v507
        %v514 = vpack.c.b16 %v510, %v509
        %v515 = vpack.c.b16 %v512, %v511
        %v520 = vsel %vm335, %v499, 0
        %v523 = vsel %vm335, %v500, 0
        %525 = vmatpush.bf16.msra.mxu0 0
        %526 = vmatpush.bf16.msra.mxu0 0
        %527 = vmatpush.bf16.msra.mxu0 0
        %528 = vmatpush.bf16.msra.mxu0 0
        %529 = vmatpush.bf16.msra.mxu0 0
        %530 = vmatpush.bf16.msra.mxu0 %v515
        %531 = vmatpush.bf16.msra.mxu0 %v514
        %532 = vmatpush.bf16.msra.mxu0 %v513
        %533 = vmatmul.bf16.gmra.mxu0 %v520
        %v534 = vpop.f32.mrf.mxu0
        %v535 = vadd.f32 0.0, %v534
        %v536 = vpop.f32.mrf.mxu0
        %v537 = vadd.f32 0.0, %v536
        %538 = vmatmul.bf16.gmra.mxu0 %v523
        %v539 = vpop.f32.mrf.mxu0
        %v540 = vadd.f32 0.0, %v539
        %v541 = vpop.f32.mrf.mxu0
        %v542 = vadd.f32 0.0, %v541
        %543 = vdwg.mxu0
        %v544 = vadd.f32 %v401, %v535
        %v545 = vadd.f32 %v403, %v537
        %v546 = vadd.f32 %v406, %v540
        %v547 = vadd.f32 %v408, %v542
        %s548 = scalar_lea.vmem %s196, 16
        %v549 = vld [vmem:[%s548] sm:$0xf]
        %v550 = vld [vmem:[%s548 + $0x4] sm:$0x1]
        %v551 = vld [vmem:[%s548 + $0x8] sm:$0xf]
        %v552 = vld [vmem:[%s548 + $0xc] sm:$0x1]
        %v553 = vld [vmem:[%s548 + $0x10] sm:$0xf]
        %v554 = vld [vmem:[%s548 + $0x14] sm:$0x1]
        %v555 = vld [vmem:[%s548 + $0x18] sm:$0xf]
        %v556 = vld [vmem:[%s548 + $0x1c] sm:$0x1]
        %v558 = vshrl.u32 %v549, 16
        %v560 = vrot.slane %v558, 4
        %v561 = vshll.u32 %v549, 16
        %v563 = vrot.slane %v561, 5
        %v564 = vor.u32 %v560, %v563
        %v565 = vrot.slane %v564, 4
        %v567 = vshll.u32 %v550, 16
        %v569 = vrot.slane %v567, 5
        %v570 = vsel %vm211, %v565, %v569
        %v572 = vshrl.u32 %v551, 16
        %v574 = vrot.slane %v572, 4
        %v575 = vshll.u32 %v551, 16
        %v577 = vrot.slane %v575, 5
        %v578 = vor.u32 %v574, %v577
        %v579 = vrot.slane %v578, 4
        %v581 = vshll.u32 %v552, 16
        %v583 = vrot.slane %v581, 5
        %v584 = vsel %vm211, %v579, %v583
        %v586 = vshrl.u32 %v553, 16
        %v588 = vrot.slane %v586, 4
        %v589 = vshll.u32 %v553, 16
        %v591 = vrot.slane %v589, 5
        %v592 = vor.u32 %v588, %v591
        %v593 = vrot.slane %v592, 4
        %v595 = vshll.u32 %v554, 16
        %v597 = vrot.slane %v595, 5
        %v598 = vsel %vm211, %v593, %v597
        %v600 = vshrl.u32 %v555, 16
        %v602 = vrot.slane %v600, 4
        %v603 = vshll.u32 %v555, 16
        %v605 = vrot.slane %v603, 5
        %v606 = vor.u32 %v602, %v605
        %v607 = vrot.slane %v606, 4
        %v609 = vshll.u32 %v556, 16
        %v611 = vrot.slane %v609, 5
        %v612 = vsel %vm211, %v607, %v611
        %v613 = vld [vmem:[%s1 + $0x48] sm:$0xf]
        %v614 = vld [vmem:[%s1 + $0x4c] sm:$0xf]
        %v615 = vld [vmem:[%s1 + $0x50] sm:$0xf]
        %v616 = vld [vmem:[%s1 + $0x54] sm:$0xf]
        %v617 = vld [vmem:[%s1 + $0x58] sm:$0xf]
        %v618 = vld [vmem:[%s1 + $0x5c] sm:$0xf]
        %v619 = vunpack.c.l.b16 %v570
        %v620 = vunpack.c.l.b16 %v584
        %v621 = vunpack.c.l.b16 %v598
        %v622 = vunpack.c.l.b16 %v612
        %v623 = vpack.c.b16 %v620, %v619
        %v624 = vpack.c.b16 %v622, %v621
        %v631 = vunpack.c.l.b16 %v613
        %v632 = vunpack.c.l.b16 %v614
        %v633 = vunpack.c.l.b16 %v615
        %v634 = vunpack.c.l.b16 %v616
        %v635 = vunpack.c.l.b16 %v617
        %v636 = vunpack.c.l.b16 %v618
        %v637 = vpack.c.b16 %v632, %v631
        %v638 = vpack.c.b16 %v634, %v633
        %v639 = vpack.c.b16 %v636, %v635
        %v644 = vsel %vm335, %v623, 0
        %v647 = vsel %vm335, %v624, 0
        %649 = vmatpush.bf16.msra.mxu0 0
        %650 = vmatpush.bf16.msra.mxu0 0
        %651 = vmatpush.bf16.msra.mxu0 0
        %652 = vmatpush.bf16.msra.mxu0 0
        %653 = vmatpush.bf16.msra.mxu0 0
        %654 = vmatpush.bf16.msra.mxu0 %v639
        %655 = vmatpush.bf16.msra.mxu0 %v638
        %656 = vmatpush.bf16.msra.mxu0 %v637
        %657 = vmatmul.bf16.gmra.mxu0 %v644
        %v658 = vpop.f32.mrf.mxu0
        %v659 = vadd.f32 0.0, %v658
        %v660 = vpop.f32.mrf.mxu0
        %v661 = vadd.f32 0.0, %v660
        %662 = vmatmul.bf16.gmra.mxu0 %v647
        %v663 = vpop.f32.mrf.mxu0
        %v664 = vadd.f32 0.0, %v663
        %v665 = vpop.f32.mrf.mxu0
        %v666 = vadd.f32 0.0, %v665
        %667 = vdwg.mxu0
        %v668 = vadd.f32 %v544, %v659
        %v669 = vadd.f32 %v545, %v661
        %v670 = vadd.f32 %v546, %v664
        %v671 = vadd.f32 %v547, %v666
        %v672 = vld [vmem:[%s548] sm:$0xe]
        %v673 = vld [vmem:[%s548 + $0x8] sm:$0xe]
        %v674 = vld [vmem:[%s548 + $0x10] sm:$0xe]
        %v675 = vld [vmem:[%s548 + $0x18] sm:$0xe]
        %v684 = vrot.slane %v672, 5
        %v685 = vrot.slane %v684, 4
        %v686 = vrot.slane %v550, 5
        %v687 = vsel %vm288, %v685, %v686
        %v688 = vrot.slane %v673, 5
        %v689 = vrot.slane %v688, 4
        %v690 = vrot.slane %v552, 5
        %v691 = vsel %vm288, %v689, %v690
        %v692 = vrot.slane %v674, 5
        %v693 = vrot.slane %v692, 4
        %v694 = vrot.slane %v554, 5
        %v695 = vsel %vm288, %v693, %v694
        %v696 = vrot.slane %v675, 5
        %v697 = vrot.slane %v696, 4
        %v698 = vrot.slane %v556, 5
        %v699 = vsel %vm288, %v697, %v698
        %v700 = vld [vmem:[%s1 + $0x60] sm:$0xf]
        %v701 = vld [vmem:[%s1 + $0x64] sm:$0xf]
        %v702 = vld [vmem:[%s1 + $0x68] sm:$0xf]
        %v703 = vld [vmem:[%s1 + $0x6c] sm:$0xf]
        %v704 = vld [vmem:[%s1 + $0x70] sm:$0xf]
        %v705 = vld [vmem:[%s1 + $0x74] sm:$0xf]
        %v706 = vunpack.c.l.b16 %v687
        %v707 = vunpack.c.l.b16 %v691
        %v708 = vunpack.c.l.b16 %v695
        %v709 = vunpack.c.l.b16 %v699
        %v710 = vpack.c.b16 %v707, %v706
        %v711 = vpack.c.b16 %v709, %v708
        %v718 = vunpack.c.l.b16 %v700
        %v719 = vunpack.c.l.b16 %v701
        %v720 = vunpack.c.l.b16 %v702
        %v721 = vunpack.c.l.b16 %v703
        %v722 = vunpack.c.l.b16 %v704
        %v723 = vunpack.c.l.b16 %v705
        %v724 = vpack.c.b16 %v719, %v718
        %v725 = vpack.c.b16 %v721, %v720
        %v726 = vpack.c.b16 %v723, %v722
        %v731 = vsel %vm335, %v710, 0
        %v734 = vsel %vm335, %v711, 0
        %736 = vmatpush.bf16.msra.mxu0 0
        %737 = vmatpush.bf16.msra.mxu0 0
        %738 = vmatpush.bf16.msra.mxu0 0
        %739 = vmatpush.bf16.msra.mxu0 0
        %740 = vmatpush.bf16.msra.mxu0 0
        %741 = vmatpush.bf16.msra.mxu0 %v726
        %742 = vmatpush.bf16.msra.mxu0 %v725
        %743 = vmatpush.bf16.msra.mxu0 %v724
        %744 = vmatmul.bf16.gmra.mxu0 %v731
        %v745 = vpop.f32.mrf.mxu0
        %v746 = vadd.f32 0.0, %v745
        %v747 = vpop.f32.mrf.mxu0
        %v748 = vadd.f32 0.0, %v747
        %749 = vmatmul.bf16.gmra.mxu0 %v734
        %v750 = vpop.f32.mrf.mxu0
        %v751 = vadd.f32 0.0, %v750
        %v752 = vpop.f32.mrf.mxu0
        %v753 = vadd.f32 0.0, %v752
        %754 = vdwg.mxu0
        %v755 = vadd.f32 %v668, %v746
        %v756 = vadd.f32 %v669, %v748
        %v757 = vadd.f32 %v670, %v751
        %v758 = vadd.f32 %v671, %v753
        %v759 = vld [vmem:[%s548 + $0x4] sm:$0x3]
        %v760 = vld [vmem:[%s548 + $0xc] sm:$0x3]
        %v761 = vld [vmem:[%s548 + $0x14] sm:$0x3]
        %v762 = vld [vmem:[%s548 + $0x1c] sm:$0x3]
        %v764 = vshrl.u32 %v672, 16
        %v766 = vrot.slane %v764, 5
        %v767 = vshll.u32 %v672, 16
        %v769 = vrot.slane %v767, 6
        %v770 = vor.u32 %v766, %v769
        %v771 = vrot.slane %v770, 4
        %v773 = vshrl.u32 %v759, 16
        %v775 = vrot.slane %v773, 5
        %v776 = vshll.u32 %v759, 16
        %v778 = vrot.slane %v776, 6
        %v779 = vor.u32 %v775, %v778
        %v780 = vsel %vm416, %v771, %v779
        %v782 = vshrl.u32 %v673, 16
        %v784 = vrot.slane %v782, 5
        %v785 = vshll.u32 %v673, 16
        %v787 = vrot.slane %v785, 6
        %v788 = vor.u32 %v784, %v787
        %v789 = vrot.slane %v788, 4
        %v791 = vshrl.u32 %v760, 16
        %v793 = vrot.slane %v791, 5
        %v794 = vshll.u32 %v760, 16
        %v796 = vrot.slane %v794, 6
        %v797 = vor.u32 %v793, %v796
        %v798 = vsel %vm416, %v789, %v797
        %v800 = vshrl.u32 %v674, 16
        %v802 = vrot.slane %v800, 5
        %v803 = vshll.u32 %v674, 16
        %v805 = vrot.slane %v803, 6
        %v806 = vor.u32 %v802, %v805
        %v807 = vrot.slane %v806, 4
        %v809 = vshrl.u32 %v761, 16
        %v811 = vrot.slane %v809, 5
        %v812 = vshll.u32 %v761, 16
        %v814 = vrot.slane %v812, 6
        %v815 = vor.u32 %v811, %v814
        %v816 = vsel %vm416, %v807, %v815
        %v818 = vshrl.u32 %v675, 16
        %v820 = vrot.slane %v818, 5
        %v821 = vshll.u32 %v675, 16
        %v823 = vrot.slane %v821, 6
        %v824 = vor.u32 %v820, %v823
        %v825 = vrot.slane %v824, 4
        %v827 = vshrl.u32 %v762, 16
        %v829 = vrot.slane %v827, 5
        %v830 = vshll.u32 %v762, 16
        %v832 = vrot.slane %v830, 6
        %v833 = vor.u32 %v829, %v832
        %v834 = vsel %vm416, %v825, %v833
        %v835 = vld [vmem:[%s1 + $0x78] sm:$0xf]
        %v836 = vld [vmem:[%s1 + $0x7c] sm:$0xf]
        %v837 = vld [vmem:[%s1 + $0x80] sm:$0xf]
        %v838 = vld [vmem:[%s1 + $0x84] sm:$0xf]
        %v839 = vld [vmem:[%s1 + $0x88] sm:$0xf]
        %v840 = vld [vmem:[%s1 + $0x8c] sm:$0xf]
        %v841 = vunpack.c.l.b16 %v780
        %v842 = vunpack.c.l.b16 %v798
        %v843 = vunpack.c.l.b16 %v816
        %v844 = vunpack.c.l.b16 %v834
        %v845 = vpack.c.b16 %v842, %v841
        %v846 = vpack.c.b16 %v844, %v843
        %v853 = vunpack.c.l.b16 %v835
        %v854 = vunpack.c.l.b16 %v836
        %v855 = vunpack.c.l.b16 %v837
        %v856 = vunpack.c.l.b16 %v838
        %v857 = vunpack.c.l.b16 %v839
        %v858 = vunpack.c.l.b16 %v840
        %v859 = vpack.c.b16 %v854, %v853
        %v860 = vpack.c.b16 %v856, %v855
        %v861 = vpack.c.b16 %v858, %v857
        %v866 = vsel %vm335, %v845, 0
        %v869 = vsel %vm335, %v846, 0
        %871 = vmatpush.bf16.msra.mxu0 0
        %872 = vmatpush.bf16.msra.mxu0 0
        %873 = vmatpush.bf16.msra.mxu0 0
        %874 = vmatpush.bf16.msra.mxu0 0
        %875 = vmatpush.bf16.msra.mxu0 0
        %876 = vmatpush.bf16.msra.mxu0 %v861
        %877 = vmatpush.bf16.msra.mxu0 %v860
        %878 = vmatpush.bf16.msra.mxu0 %v859
        %879 = vmatmul.bf16.gmra.mxu0 %v866
        %v880 = vpop.f32.mrf.mxu0
        %v881 = vadd.f32 0.0, %v880
        %v882 = vpop.f32.mrf.mxu0
        %v883 = vadd.f32 0.0, %v882
        %884 = vmatmul.bf16.gmra.mxu0 %v869
        %v885 = vpop.f32.mrf.mxu0
        %v886 = vadd.f32 0.0, %v885
        %v887 = vpop.f32.mrf.mxu0
        %v888 = vadd.f32 0.0, %v887
        %889 = vdwg.mxu0
        %v890 = vadd.f32 %v755, %v881
        %v891 = vadd.f32 %v756, %v883
        %v892 = vadd.f32 %v757, %v886
        %v893 = vadd.f32 %v758, %v888
        %s894 = scalar_lea.vmem %s196, 24
        %v895 = vld [vmem:[%s894] sm:$0xf]
        %v896 = vld [vmem:[%s894 + $0x4] sm:$0x1]
        %v897 = vld [vmem:[%s894 + $0x8] sm:$0xf]
        %v898 = vld [vmem:[%s894 + $0xc] sm:$0x1]
        %v899 = vld [vmem:[%s894 + $0x10] sm:$0xf]
        %v900 = vld [vmem:[%s894 + $0x14] sm:$0x1]
        %v901 = vld [vmem:[%s894 + $0x18] sm:$0xf]
        %v902 = vld [vmem:[%s894 + $0x1c] sm:$0x1]
        %v904 = vshrl.u32 %v895, 16
        %v906 = vrot.slane %v904, 4
        %v907 = vshll.u32 %v895, 16
        %v909 = vrot.slane %v907, 5
        %v910 = vor.u32 %v906, %v909
        %v911 = vrot.slane %v910, 4
        %v913 = vshll.u32 %v896, 16
        %v915 = vrot.slane %v913, 5
        %v916 = vsel %vm211, %v911, %v915
        %v918 = vshrl.u32 %v897, 16
        %v920 = vrot.slane %v918, 4
        %v921 = vshll.u32 %v897, 16
        %v923 = vrot.slane %v921, 5
        %v924 = vor.u32 %v920, %v923
        %v925 = vrot.slane %v924, 4
        %v927 = vshll.u32 %v898, 16
        %v929 = vrot.slane %v927, 5
        %v930 = vsel %vm211, %v925, %v929
        %v932 = vshrl.u32 %v899, 16
        %v934 = vrot.slane %v932, 4
        %v935 = vshll.u32 %v899, 16
        %v937 = vrot.slane %v935, 5
        %v938 = vor.u32 %v934, %v937
        %v939 = vrot.slane %v938, 4
        %v941 = vshll.u32 %v900, 16
        %v943 = vrot.slane %v941, 5
        %v944 = vsel %vm211, %v939, %v943
        %v946 = vshrl.u32 %v901, 16
        %v948 = vrot.slane %v946, 4
        %v949 = vshll.u32 %v901, 16
        %v951 = vrot.slane %v949, 5
        %v952 = vor.u32 %v948, %v951
        %v953 = vrot.slane %v952, 4
        %v955 = vshll.u32 %v902, 16
        %v957 = vrot.slane %v955, 5
        %v958 = vsel %vm211, %v953, %v957
        %v959 = vld [vmem:[%s1 + $0x90] sm:$0xf]
        %v960 = vld [vmem:[%s1 + $0x94] sm:$0xf]
        %v961 = vld [vmem:[%s1 + $0x98] sm:$0xf]
        %v962 = vld [vmem:[%s1 + $0x9c] sm:$0xf]
        %v963 = vld [vmem:[%s1 + $0xa0] sm:$0xf]
        %v964 = vld [vmem:[%s1 + $0xa4] sm:$0xf]
        %v965 = vunpack.c.l.b16 %v916
        %v966 = vunpack.c.l.b16 %v930
        %v967 = vunpack.c.l.b16 %v944
        %v968 = vunpack.c.l.b16 %v958
        %v969 = vpack.c.b16 %v966, %v965
        %v970 = vpack.c.b16 %v968, %v967
        %v977 = vunpack.c.l.b16 %v959
        %v978 = vunpack.c.l.b16 %v960
        %v979 = vunpack.c.l.b16 %v961
        %v980 = vunpack.c.l.b16 %v962
        %v981 = vunpack.c.l.b16 %v963
        %v982 = vunpack.c.l.b16 %v964
        %v983 = vpack.c.b16 %v978, %v977
        %v984 = vpack.c.b16 %v980, %v979
        %v985 = vpack.c.b16 %v982, %v981
        %v990 = vsel %vm335, %v969, 0
        %v993 = vsel %vm335, %v970, 0
        %995 = vmatpush.bf16.msra.mxu0 0
        %996 = vmatpush.bf16.msra.mxu0 0
        %997 = vmatpush.bf16.msra.mxu0 0
        %998 = vmatpush.bf16.msra.mxu0 0
        %999 = vmatpush.bf16.msra.mxu0 0
        %1000 = vmatpush.bf16.msra.mxu0 %v985
        %1001 = vmatpush.bf16.msra.mxu0 %v984
        %1002 = vmatpush.bf16.msra.mxu0 %v983
        %1003 = vmatmul.bf16.gmra.mxu0 %v990
        %v1004 = vpop.f32.mrf.mxu0
        %v1005 = vadd.f32 0.0, %v1004
        %v1006 = vpop.f32.mrf.mxu0
        %v1007 = vadd.f32 0.0, %v1006
        %1008 = vmatmul.bf16.gmra.mxu0 %v993
        %v1009 = vpop.f32.mrf.mxu0
        %v1010 = vadd.f32 0.0, %v1009
        %v1011 = vpop.f32.mrf.mxu0
        %v1012 = vadd.f32 0.0, %v1011
        %1013 = vdwg.mxu0
        %v1014 = vadd.f32 %v890, %v1005
        %v1015 = vadd.f32 %v891, %v1007
        %v1016 = vadd.f32 %v892, %v1010
        %v1017 = vadd.f32 %v893, %v1012
        %v1018 = vld [vmem:[%s894] sm:$0xe]
        %v1019 = vld [vmem:[%s894 + $0x8] sm:$0xe]
        %v1020 = vld [vmem:[%s894 + $0x10] sm:$0xe]
        %v1021 = vld [vmem:[%s894 + $0x18] sm:$0xe]
        %v1030 = vrot.slane %v1018, 5
        %v1031 = vrot.slane %v1030, 4
        %v1032 = vrot.slane %v896, 5
        %v1033 = vsel %vm288, %v1031, %v1032
        %v1034 = vrot.slane %v1019, 5
        %v1035 = vrot.slane %v1034, 4
        %v1036 = vrot.slane %v898, 5
        %v1037 = vsel %vm288, %v1035, %v1036
        %v1038 = vrot.slane %v1020, 5
        %v1039 = vrot.slane %v1038, 4
        %v1040 = vrot.slane %v900, 5
        %v1041 = vsel %vm288, %v1039, %v1040
        %v1042 = vrot.slane %v1021, 5
        %v1043 = vrot.slane %v1042, 4
        %v1044 = vrot.slane %v902, 5
        %v1045 = vsel %vm288, %v1043, %v1044
        %v1046 = vld [vmem:[%s1 + $0xa8] sm:$0xf]
        %v1047 = vld [vmem:[%s1 + $0xac] sm:$0xf]
        %v1048 = vld [vmem:[%s1 + $0xb0] sm:$0xf]
        %v1049 = vld [vmem:[%s1 + $0xb4] sm:$0xf]
        %v1050 = vld [vmem:[%s1 + $0xb8] sm:$0xf]
        %v1051 = vld [vmem:[%s1 + $0xbc] sm:$0xf]
        %v1052 = vunpack.c.l.b16 %v1033
        %v1053 = vunpack.c.l.b16 %v1037
        %v1054 = vunpack.c.l.b16 %v1041
        %v1055 = vunpack.c.l.b16 %v1045
        %v1056 = vpack.c.b16 %v1053, %v1052
        %v1057 = vpack.c.b16 %v1055, %v1054
        %v1064 = vunpack.c.l.b16 %v1046
        %v1065 = vunpack.c.l.b16 %v1047
        %v1066 = vunpack.c.l.b16 %v1048
        %v1067 = vunpack.c.l.b16 %v1049
        %v1068 = vunpack.c.l.b16 %v1050
        %v1069 = vunpack.c.l.b16 %v1051
        %v1070 = vpack.c.b16 %v1065, %v1064
        %v1071 = vpack.c.b16 %v1067, %v1066
        %v1072 = vpack.c.b16 %v1069, %v1068
        %v1077 = vsel %vm335, %v1056, 0
        %v1080 = vsel %vm335, %v1057, 0
        %1082 = vmatpush.bf16.msra.mxu0 0
        %1083 = vmatpush.bf16.msra.mxu0 0
        %1084 = vmatpush.bf16.msra.mxu0 0
        %1085 = vmatpush.bf16.msra.mxu0 0
        %1086 = vmatpush.bf16.msra.mxu0 0
        %1087 = vmatpush.bf16.msra.mxu0 %v1072
        %1088 = vmatpush.bf16.msra.mxu0 %v1071
        %1089 = vmatpush.bf16.msra.mxu0 %v1070
        %1090 = vmatmul.bf16.gmra.mxu0 %v1077
        %v1091 = vpop.f32.mrf.mxu0
        %v1092 = vadd.f32 0.0, %v1091
        %v1093 = vpop.f32.mrf.mxu0
        %v1094 = vadd.f32 0.0, %v1093
        %1095 = vmatmul.bf16.gmra.mxu0 %v1080
        %v1096 = vpop.f32.mrf.mxu0
        %v1097 = vadd.f32 0.0, %v1096
        %v1098 = vpop.f32.mrf.mxu0
        %v1099 = vadd.f32 0.0, %v1098
        %1100 = vdwg.mxu0
        %v1101 = vadd.f32 %v1014, %v1092
        %v1102 = vadd.f32 %v1015, %v1094
        %v1103 = vadd.f32 %v1016, %v1097
        %v1104 = vadd.f32 %v1017, %v1099
        %v1105 = vld [vmem:[%s894 + $0x4] sm:$0x3]
        %v1106 = vld [vmem:[%s894 + $0xc] sm:$0x3]
        %v1107 = vld [vmem:[%s894 + $0x14] sm:$0x3]
        %v1108 = vld [vmem:[%s894 + $0x1c] sm:$0x3]
        %v1110 = vshrl.u32 %v1018, 16
        %v1112 = vrot.slane %v1110, 5
        %v1113 = vshll.u32 %v1018, 16
        %v1115 = vrot.slane %v1113, 6
        %v1116 = vor.u32 %v1112, %v1115
        %v1117 = vrot.slane %v1116, 4
        %v1119 = vshrl.u32 %v1105, 16
        %v1121 = vrot.slane %v1119, 5
        %v1122 = vshll.u32 %v1105, 16
        %v1124 = vrot.slane %v1122, 6
        %v1125 = vor.u32 %v1121, %v1124
        %v1126 = vsel %vm416, %v1117, %v1125
        %v1128 = vshrl.u32 %v1019, 16
        %v1130 = vrot.slane %v1128, 5
        %v1131 = vshll.u32 %v1019, 16
        %v1133 = vrot.slane %v1131, 6
        %v1134 = vor.u32 %v1130, %v1133
        %v1135 = vrot.slane %v1134, 4
        %v1137 = vshrl.u32 %v1106, 16
        %v1139 = vrot.slane %v1137, 5
        %v1140 = vshll.u32 %v1106, 16
        %v1142 = vrot.slane %v1140, 6
        %v1143 = vor.u32 %v1139, %v1142
        %v1144 = vsel %vm416, %v1135, %v1143
        %v1146 = vshrl.u32 %v1020, 16
        %v1148 = vrot.slane %v1146, 5
        %v1149 = vshll.u32 %v1020, 16
        %v1151 = vrot.slane %v1149, 6
        %v1152 = vor.u32 %v1148, %v1151
        %v1153 = vrot.slane %v1152, 4
        %v1155 = vshrl.u32 %v1107, 16
        %v1157 = vrot.slane %v1155, 5
        %v1158 = vshll.u32 %v1107, 16
        %v1160 = vrot.slane %v1158, 6
        %v1161 = vor.u32 %v1157, %v1160
        %v1162 = vsel %vm416, %v1153, %v1161
        %v1164 = vshrl.u32 %v1021, 16
        %v1166 = vrot.slane %v1164, 5
        %v1167 = vshll.u32 %v1021, 16
        %v1169 = vrot.slane %v1167, 6
        %v1170 = vor.u32 %v1166, %v1169
        %v1171 = vrot.slane %v1170, 4
        %v1173 = vshrl.u32 %v1108, 16
        %v1175 = vrot.slane %v1173, 5
        %v1176 = vshll.u32 %v1108, 16
        %v1178 = vrot.slane %v1176, 6
        %v1179 = vor.u32 %v1175, %v1178
        %v1180 = vsel %vm416, %v1171, %v1179
        %v1181 = vld [vmem:[%s1 + $0xc0] sm:$0xf]
        %v1182 = vld [vmem:[%s1 + $0xc4] sm:$0xf]
        %v1183 = vld [vmem:[%s1 + $0xc8] sm:$0xf]
        %v1184 = vld [vmem:[%s1 + $0xcc] sm:$0xf]
        %v1185 = vld [vmem:[%s1 + $0xd0] sm:$0xf]
        %v1186 = vld [vmem:[%s1 + $0xd4] sm:$0xf]
        %v1187 = vunpack.c.l.b16 %v1126
        %v1188 = vunpack.c.l.b16 %v1144
        %v1189 = vunpack.c.l.b16 %v1162
        %v1190 = vunpack.c.l.b16 %v1180
        %v1191 = vpack.c.b16 %v1188, %v1187
        %v1192 = vpack.c.b16 %v1190, %v1189
        %v1199 = vunpack.c.l.b16 %v1181
        %v1200 = vunpack.c.l.b16 %v1182
        %v1201 = vunpack.c.l.b16 %v1183
        %v1202 = vunpack.c.l.b16 %v1184
        %v1203 = vunpack.c.l.b16 %v1185
        %v1204 = vunpack.c.l.b16 %v1186
        %v1205 = vpack.c.b16 %v1200, %v1199
        %v1206 = vpack.c.b16 %v1202, %v1201
        %v1207 = vpack.c.b16 %v1204, %v1203
        %v1212 = vsel %vm335, %v1191, 0
        %v1215 = vsel %vm335, %v1192, 0
        %1217 = vmatpush.bf16.msra.mxu0 0
        %1218 = vmatpush.bf16.msra.mxu0 0
        %1219 = vmatpush.bf16.msra.mxu0 0
        %1220 = vmatpush.bf16.msra.mxu0 0
        %1221 = vmatpush.bf16.msra.mxu0 0
        %1222 = vmatpush.bf16.msra.mxu0 %v1207
        %1223 = vmatpush.bf16.msra.mxu0 %v1206
        %1224 = vmatpush.bf16.msra.mxu0 %v1205
        %1225 = vmatmul.bf16.gmra.mxu0 %v1212
        %v1226 = vpop.f32.mrf.mxu0
        %v1227 = vadd.f32 0.0, %v1226
        %v1228 = vpop.f32.mrf.mxu0
        %v1229 = vadd.f32 0.0, %v1228
        %1230 = vmatmul.bf16.gmra.mxu0 %v1215
        %v1231 = vpop.f32.mrf.mxu0
        %v1232 = vadd.f32 0.0, %v1231
        %v1233 = vpop.f32.mrf.mxu0
        %v1234 = vadd.f32 0.0, %v1233
        %1235 = vdwg.mxu0
        %v1236 = vadd.f32 %v1101, %v1227
        %v1237 = vadd.f32 %v1102, %v1229
        %v1238 = vadd.f32 %v1103, %v1232
        %v1239 = vadd.f32 %v1104, %v1234
        %v1241 = vperm.slane %v199, 0
        %v1243 = vadd.f32 %v1236, %v1241
        %v1244 = vadd.f32 %v1237, %v1241
        %v1245 = vadd.f32 %v1238, %v1241
        %v1246 = vadd.f32 %v1239, %v1241
        %v1247 = vmax.f32 %v1243, 0.0
        %v1248 = vmax.f32 %v1244, 0.0
        %v1249 = vmax.f32 %v1245, 0.0
        %v1250 = vmax.f32 %v1246, 0.0
        %v1251 = vld [vmem:[%s200] sm:$0xf]
        %v1252 = vld [vmem:[%s200 + $0x8] sm:$0xf]
        %v1253 = vld [vmem:[%s200 + $0x10] sm:$0xf]
        %v1254 = vld [vmem:[%s200 + $0x18] sm:$0xf]
        %s1255 = scalar_lea.vmem %s1, 216
        %v1256 = vld [vmem:[%s1255] sm:$0xf]
        %v1257 = vld [vmem:[%s1255 + $0x4] sm:$0xf]
        %v1258 = vld [vmem:[%s1255 + $0x8] sm:$0xf]
        %v1259 = vld [vmem:[%s1255 + $0xc] sm:$0xf]
        %v1260 = vld [vmem:[%s1255 + $0x10] sm:$0xf]
        %v1261 = vld [vmem:[%s1255 + $0x14] sm:$0xf]
        %v1262 = vld [vmem:[%s1255 + $0x18] sm:$0xf]
        %v1263 = vld [vmem:[%s1255 + $0x1c] sm:$0xf]
        %v1264 = vld [vmem:[%s1255 + $0x20] sm:$0xf]
        %v1265 = vld [vmem:[%s1255 + $0x24] sm:$0xf]
        %v1266 = vld [vmem:[%s1255 + $0x28] sm:$0xf]
        %v1267 = vld [vmem:[%s1255 + $0x2c] sm:$0xf]
        %v1274 = vunpack.c.l.b16 %v1262
        %v1275 = vunpack.c.l.b16 %v1263
        %v1276 = vunpack.c.l.b16 %v1264
        %v1277 = vunpack.c.l.b16 %v1265
        %v1278 = vunpack.c.l.b16 %v1266
        %v1279 = vunpack.c.l.b16 %v1267
        %v1280 = vpack.c.b16 %v1275, %v1274
        %v1281 = vpack.c.b16 %v1277, %v1276
        %v1282 = vpack.c.b16 %v1279, %v1278
        %1286 = vmatpush.bf16.msra.mxu0 0
        %1287 = vmatpush.bf16.msra.mxu0 0
        %1288 = vmatpush.bf16.msra.mxu0 0
        %1289 = vmatpush.bf16.msra.mxu0 0
        %1290 = vmatpush.bf16.msra.mxu0 0
        %1291 = vmatpush.bf16.msra.mxu0 %v1282
        %1292 = vmatpush.bf16.msra.mxu0 %v1281
        %1293 = vmatpush.bf16.msra.mxu0 %v1280
        %1294 = vmatmul.bf16.gmra.mxu0 %v386
        %v1295 = vpop.f32.mrf.mxu0
        %v1296 = vadd.f32 0.0, %v1295
        %v1297 = vpop.f32.mrf.mxu0
        %v1298 = vadd.f32 0.0, %v1297
        %1299 = vmatmul.bf16.gmra.mxu0 %v389
        %v1300 = vpop.f32.mrf.mxu0
        %v1301 = vadd.f32 0.0, %v1300
        %v1302 = vpop.f32.mrf.mxu0
        %v1303 = vadd.f32 0.0, %v1302
        %1304 = vdwg.mxu0
        %v1309 = vunpack.c.l.b16 %v1251
        %v1310 = vunpack.c.l.b16 %v1252
        %v1311 = vunpack.c.l.b16 %v1253
        %v1312 = vunpack.c.l.b16 %v1254
        %v1313 = vpack.c.b16 %v1310, %v1309
        %v1314 = vpack.c.b16 %v1312, %v1311
        %v1321 = vunpack.c.l.b16 %v1256
        %v1322 = vunpack.c.l.b16 %v1257
        %v1323 = vunpack.c.l.b16 %v1258
        %v1324 = vunpack.c.l.b16 %v1259
        %v1325 = vunpack.c.l.b16 %v1260
        %v1326 = vunpack.c.l.b16 %v1261
        %v1327 = vpack.c.b16 %v1322, %v1321
        %v1328 = vpack.c.b16 %v1324, %v1323
        %v1329 = vpack.c.b16 %v1326, %v1325
        %v1334 = vsel %vm335, %v1313, 0
        %v1337 = vsel %vm335, %v1314, 0
        %1339 = vmatpush.bf16.msra.mxu0 0
        %1340 = vmatpush.bf16.msra.mxu0 0
        %1341 = vmatpush.bf16.msra.mxu0 0
        %1342 = vmatpush.bf16.msra.mxu0 0
        %1343 = vmatpush.bf16.msra.mxu0 0
        %1344 = vmatpush.bf16.msra.mxu0 %v1329
        %1345 = vmatpush.bf16.msra.mxu0 %v1328
        %1346 = vmatpush.bf16.msra.mxu0 %v1327
        %1347 = vmatmul.bf16.gmra.mxu0 %v1334
        %v1348 = vpop.f32.mrf.mxu0
        %v1349 = vadd.f32 %v1296, %v1348
        %v1350 = vpop.f32.mrf.mxu0
        %v1351 = vadd.f32 %v1298, %v1350
        %1352 = vmatmul.bf16.gmra.mxu0 %v1337
        %v1353 = vpop.f32.mrf.mxu0
        %v1354 = vadd.f32 %v1301, %v1353
        %v1355 = vpop.f32.mrf.mxu0
        %v1356 = vadd.f32 %v1303, %v1355
        %1357 = vdwg.mxu0
        %v1358 = vld [vmem:[%s1255 + $0x30] sm:$0xf]
        %v1359 = vld [vmem:[%s1255 + $0x34] sm:$0xf]
        %v1360 = vld [vmem:[%s1255 + $0x38] sm:$0xf]
        %v1361 = vld [vmem:[%s1255 + $0x3c] sm:$0xf]
        %v1362 = vld [vmem:[%s1255 + $0x40] sm:$0xf]
        %v1363 = vld [vmem:[%s1255 + $0x44] sm:$0xf]
        %v1370 = vunpack.c.l.b16 %v1358
        %v1371 = vunpack.c.l.b16 %v1359
        %v1372 = vunpack.c.l.b16 %v1360
        %v1373 = vunpack.c.l.b16 %v1361
        %v1374 = vunpack.c.l.b16 %v1362
        %v1375 = vunpack.c.l.b16 %v1363
        %v1376 = vpack.c.b16 %v1371, %v1370
        %v1377 = vpack.c.b16 %v1373, %v1372
        %v1378 = vpack.c.b16 %v1375, %v1374
        %1382 = vmatpush.bf16.msra.mxu0 0
        %1383 = vmatpush.bf16.msra.mxu0 0
        %1384 = vmatpush.bf16.msra.mxu0 0
        %1385 = vmatpush.bf16.msra.mxu0 0
        %1386 = vmatpush.bf16.msra.mxu0 0
        %1387 = vmatpush.bf16.msra.mxu0 %v1378
        %1388 = vmatpush.bf16.msra.mxu0 %v1377
        %1389 = vmatpush.bf16.msra.mxu0 %v1376
        %1390 = vmatmul.bf16.gmra.mxu0 %v337
        %v1391 = vpop.f32.mrf.mxu0
        %v1392 = vadd.f32 0.0, %v1391
        %v1393 = vpop.f32.mrf.mxu0
        %v1394 = vadd.f32 0.0, %v1393
        %1395 = vmatmul.bf16.gmra.mxu0 %v340
        %v1396 = vpop.f32.mrf.mxu0
        %v1397 = vadd.f32 0.0, %v1396
        %v1398 = vpop.f32.mrf.mxu0
        %v1399 = vadd.f32 0.0, %v1398
        %1400 = vdwg.mxu0
        %v1401 = vadd.f32 %v1349, %v1392
        %v1402 = vadd.f32 %v1351, %v1394
        %v1403 = vadd.f32 %v1354, %v1397
        %v1404 = vadd.f32 %v1356, %v1399
        %v1405 = vld [vmem:[%s548] sm:$0xf]
        %v1406 = vld [vmem:[%s548 + $0x8] sm:$0xf]
        %v1407 = vld [vmem:[%s548 + $0x10] sm:$0xf]
        %v1408 = vld [vmem:[%s548 + $0x18] sm:$0xf]
        %v1409 = vld [vmem:[%s1255 + $0x48] sm:$0xf]
        %v1410 = vld [vmem:[%s1255 + $0x4c] sm:$0xf]
        %v1411 = vld [vmem:[%s1255 + $0x50] sm:$0xf]
        %v1412 = vld [vmem:[%s1255 + $0x54] sm:$0xf]
        %v1413 = vld [vmem:[%s1255 + $0x58] sm:$0xf]
        %v1414 = vld [vmem:[%s1255 + $0x5c] sm:$0xf]
        %v1419 = vunpack.c.l.b16 %v1405
        %v1420 = vunpack.c.l.b16 %v1406
        %v1421 = vunpack.c.l.b16 %v1407
        %v1422 = vunpack.c.l.b16 %v1408
        %v1423 = vpack.c.b16 %v1420, %v1419
        %v1424 = vpack.c.b16 %v1422, %v1421
        %v1431 = vunpack.c.l.b16 %v1409
        %v1432 = vunpack.c.l.b16 %v1410
        %v1433 = vunpack.c.l.b16 %v1411
        %v1434 = vunpack.c.l.b16 %v1412
        %v1435 = vunpack.c.l.b16 %v1413
        %v1436 = vunpack.c.l.b16 %v1414
        %v1437 = vpack.c.b16 %v1432, %v1431
        %v1438 = vpack.c.b16 %v1434, %v1433
        %v1439 = vpack.c.b16 %v1436, %v1435
        %v1444 = vsel %vm335, %v1423, 0
        %v1447 = vsel %vm335, %v1424, 0
        %1449 = vmatpush.bf16.msra.mxu0 0
        %1450 = vmatpush.bf16.msra.mxu0 0
        %1451 = vmatpush.bf16.msra.mxu0 0
        %1452 = vmatpush.bf16.msra.mxu0 0
        %1453 = vmatpush.bf16.msra.mxu0 0
        %1454 = vmatpush.bf16.msra.mxu0 %v1439
        %1455 = vmatpush.bf16.msra.mxu0 %v1438
        %1456 = vmatpush.bf16.msra.mxu0 %v1437
        %1457 = vmatmul.bf16.gmra.mxu0 %v1444
        %v1458 = vpop.f32.mrf.mxu0
        %v1459 = vadd.f32 0.0, %v1458
        %v1460 = vpop.f32.mrf.mxu0
        %v1461 = vadd.f32 0.0, %v1460
        %1462 = vmatmul.bf16.gmra.mxu0 %v1447
        %v1463 = vpop.f32.mrf.mxu0
        %v1464 = vadd.f32 0.0, %v1463
        %v1465 = vpop.f32.mrf.mxu0
        %v1466 = vadd.f32 0.0, %v1465
        %1467 = vdwg.mxu0
        %v1468 = vadd.f32 %v1401, %v1459
        %v1469 = vadd.f32 %v1402, %v1461
        %v1470 = vadd.f32 %v1403, %v1464
        %v1471 = vadd.f32 %v1404, %v1466
        %v1472 = vld [vmem:[%s1255 + $0x60] sm:$0xf]
        %v1473 = vld [vmem:[%s1255 + $0x64] sm:$0xf]
        %v1474 = vld [vmem:[%s1255 + $0x68] sm:$0xf]
        %v1475 = vld [vmem:[%s1255 + $0x6c] sm:$0xf]
        %v1476 = vld [vmem:[%s1255 + $0x70] sm:$0xf]
        %v1477 = vld [vmem:[%s1255 + $0x74] sm:$0xf]
        %v1484 = vunpack.c.l.b16 %v1472
        %v1485 = vunpack.c.l.b16 %v1473
        %v1486 = vunpack.c.l.b16 %v1474
        %v1487 = vunpack.c.l.b16 %v1475
        %v1488 = vunpack.c.l.b16 %v1476
        %v1489 = vunpack.c.l.b16 %v1477
        %v1490 = vpack.c.b16 %v1485, %v1484
        %v1491 = vpack.c.b16 %v1487, %v1486
        %v1492 = vpack.c.b16 %v1489, %v1488
        %1496 = vmatpush.bf16.msra.mxu0 0
        %1497 = vmatpush.bf16.msra.mxu0 0
        %1498 = vmatpush.bf16.msra.mxu0 0
        %1499 = vmatpush.bf16.msra.mxu0 0
        %1500 = vmatpush.bf16.msra.mxu0 0
        %1501 = vmatpush.bf16.msra.mxu0 %v1492
        %1502 = vmatpush.bf16.msra.mxu0 %v1491
        %1503 = vmatpush.bf16.msra.mxu0 %v1490
        %1504 = vmatmul.bf16.gmra.mxu0 %v644
        %v1505 = vpop.f32.mrf.mxu0
        %v1506 = vadd.f32 0.0, %v1505
        %v1507 = vpop.f32.mrf.mxu0
        %v1508 = vadd.f32 0.0, %v1507
        %1509 = vmatmul.bf16.gmra.mxu0 %v647
        %v1510 = vpop.f32.mrf.mxu0
        %v1511 = vadd.f32 0.0, %v1510
        %v1512 = vpop.f32.mrf.mxu0
        %v1513 = vadd.f32 0.0, %v1512
        %1514 = vdwg.mxu0
        %v1515 = vadd.f32 %v1468, %v1506
        %v1516 = vadd.f32 %v1469, %v1508
        %v1517 = vadd.f32 %v1470, %v1511
        %v1518 = vadd.f32 %v1471, %v1513
        %v1519 = vld [vmem:[%s1255 + $0x78] sm:$0xf]
        %v1520 = vld [vmem:[%s1255 + $0x7c] sm:$0xf]
        %v1521 = vld [vmem:[%s1255 + $0x80] sm:$0xf]
        %v1522 = vld [vmem:[%s1255 + $0x84] sm:$0xf]
        %v1523 = vld [vmem:[%s1255 + $0x88] sm:$0xf]
        %v1524 = vld [vmem:[%s1255 + $0x8c] sm:$0xf]
        %v1531 = vunpack.c.l.b16 %v1519
        %v1532 = vunpack.c.l.b16 %v1520
        %v1533 = vunpack.c.l.b16 %v1521
        %v1534 = vunpack.c.l.b16 %v1522
        %v1535 = vunpack.c.l.b16 %v1523
        %v1536 = vunpack.c.l.b16 %v1524
        %v1537 = vpack.c.b16 %v1532, %v1531
        %v1538 = vpack.c.b16 %v1534, %v1533
        %v1539 = vpack.c.b16 %v1536, %v1535
        %1543 = vmatpush.bf16.msra.mxu0 0
        %1544 = vmatpush.bf16.msra.mxu0 0
        %1545 = vmatpush.bf16.msra.mxu0 0
        %1546 = vmatpush.bf16.msra.mxu0 0
        %1547 = vmatpush.bf16.msra.mxu0 0
        %1548 = vmatpush.bf16.msra.mxu0 %v1539
        %1549 = vmatpush.bf16.msra.mxu0 %v1538
        %1550 = vmatpush.bf16.msra.mxu0 %v1537
        %1551 = vmatmul.bf16.gmra.mxu0 %v731
        %v1552 = vpop.f32.mrf.mxu0
        %v1553 = vadd.f32 0.0, %v1552
        %v1554 = vpop.f32.mrf.mxu0
        %v1555 = vadd.f32 0.0, %v1554
        %1556 = vmatmul.bf16.gmra.mxu0 %v734
        %v1557 = vpop.f32.mrf.mxu0
        %v1558 = vadd.f32 0.0, %v1557
        %v1559 = vpop.f32.mrf.mxu0
        %v1560 = vadd.f32 0.0, %v1559
        %1561 = vdwg.mxu0
        %v1562 = vadd.f32 %v1515, %v1553
        %v1563 = vadd.f32 %v1516, %v1555
        %v1564 = vadd.f32 %v1517, %v1558
        %v1565 = vadd.f32 %v1518, %v1560
        %v1566 = vld [vmem:[%s894] sm:$0xf]
        %v1567 = vld [vmem:[%s894 + $0x8] sm:$0xf]
        %v1568 = vld [vmem:[%s894 + $0x10] sm:$0xf]
        %v1569 = vld [vmem:[%s894 + $0x18] sm:$0xf]
        %v1570 = vld [vmem:[%s1255 + $0x90] sm:$0xf]
        %v1571 = vld [vmem:[%s1255 + $0x94] sm:$0xf]
        %v1572 = vld [vmem:[%s1255 + $0x98] sm:$0xf]
        %v1573 = vld [vmem:[%s1255 + $0x9c] sm:$0xf]
        %v1574 = vld [vmem:[%s1255 + $0xa0] sm:$0xf]
        %v1575 = vld [vmem:[%s1255 + $0xa4] sm:$0xf]
        %v1580 = vunpack.c.l.b16 %v1566
        %v1581 = vunpack.c.l.b16 %v1567
        %v1582 = vunpack.c.l.b16 %v1568
        %v1583 = vunpack.c.l.b16 %v1569
        %v1584 = vpack.c.b16 %v1581, %v1580
        %v1585 = vpack.c.b16 %v1583, %v1582
        %v1592 = vunpack.c.l.b16 %v1570
        %v1593 = vunpack.c.l.b16 %v1571
        %v1594 = vunpack.c.l.b16 %v1572
        %v1595 = vunpack.c.l.b16 %v1573
        %v1596 = vunpack.c.l.b16 %v1574
        %v1597 = vunpack.c.l.b16 %v1575
        %v1598 = vpack.c.b16 %v1593, %v1592
        %v1599 = vpack.c.b16 %v1595, %v1594
        %v1600 = vpack.c.b16 %v1597, %v1596
        %v1605 = vsel %vm335, %v1584, 0
        %v1608 = vsel %vm335, %v1585, 0
        %1610 = vmatpush.bf16.msra.mxu0 0
        %1611 = vmatpush.bf16.msra.mxu0 0
        %1612 = vmatpush.bf16.msra.mxu0 0
        %1613 = vmatpush.bf16.msra.mxu0 0
        %1614 = vmatpush.bf16.msra.mxu0 0
        %1615 = vmatpush.bf16.msra.mxu0 %v1600
        %1616 = vmatpush.bf16.msra.mxu0 %v1599
        %1617 = vmatpush.bf16.msra.mxu0 %v1598
        %1618 = vmatmul.bf16.gmra.mxu0 %v1605
        %v1619 = vpop.f32.mrf.mxu0
        %v1620 = vadd.f32 0.0, %v1619
        %v1621 = vpop.f32.mrf.mxu0
        %v1622 = vadd.f32 0.0, %v1621
        %1623 = vmatmul.bf16.gmra.mxu0 %v1608
        %v1624 = vpop.f32.mrf.mxu0
        %v1625 = vadd.f32 0.0, %v1624
        %v1626 = vpop.f32.mrf.mxu0
        %v1627 = vadd.f32 0.0, %v1626
        %1628 = vdwg.mxu0
        %v1629 = vadd.f32 %v1562, %v1620
        %v1630 = vadd.f32 %v1563, %v1622
        %v1631 = vadd.f32 %v1564, %v1625
        %v1632 = vadd.f32 %v1565, %v1627
        %v1633 = vld [vmem:[%s1255 + $0xa8] sm:$0xf]
        %v1634 = vld [vmem:[%s1255 + $0xac] sm:$0xf]
        %v1635 = vld [vmem:[%s1255 + $0xb0] sm:$0xf]
        %v1636 = vld [vmem:[%s1255 + $0xb4] sm:$0xf]
        %v1637 = vld [vmem:[%s1255 + $0xb8] sm:$0xf]
        %v1638 = vld [vmem:[%s1255 + $0xbc] sm:$0xf]
        %v1645 = vunpack.c.l.b16 %v1633
        %v1646 = vunpack.c.l.b16 %v1634
        %v1647 = vunpack.c.l.b16 %v1635
        %v1648 = vunpack.c.l.b16 %v1636
        %v1649 = vunpack.c.l.b16 %v1637
        %v1650 = vunpack.c.l.b16 %v1638
        %v1651 = vpack.c.b16 %v1646, %v1645
        %v1652 = vpack.c.b16 %v1648, %v1647
        %v1653 = vpack.c.b16 %v1650, %v1649
        %1657 = vmatpush.bf16.msra.mxu0 0
        %1658 = vmatpush.bf16.msra.mxu0 0
        %1659 = vmatpush.bf16.msra.mxu0 0
        %1660 = vmatpush.bf16.msra.mxu0 0
        %1661 = vmatpush.bf16.msra.mxu0 0
        %1662 = vmatpush.bf16.msra.mxu0 %v1653
        %1663 = vmatpush.bf16.msra.mxu0 %v1652
        %1664 = vmatpush.bf16.msra.mxu0 %v1651
        %1665 = vmatmul.bf16.gmra.mxu0 %v990
        %v1666 = vpop.f32.mrf.mxu0
        %v1667 = vadd.f32 0.0, %v1666
        %v1668 = vpop.f32.mrf.mxu0
        %v1669 = vadd.f32 0.0, %v1668
        %1670 = vmatmul.bf16.gmra.mxu0 %v993
        %v1671 = vpop.f32.mrf.mxu0
        %v1672 = vadd.f32 0.0, %v1671
        %v1673 = vpop.f32.mrf.mxu0
        %v1674 = vadd.f32 0.0, %v1673
        %1675 = vdwg.mxu0
        %v1676 = vadd.f32 %v1629, %v1667
        %v1677 = vadd.f32 %v1630, %v1669
        %v1678 = vadd.f32 %v1631, %v1672
        %v1679 = vadd.f32 %v1632, %v1674
        %v1680 = vld [vmem:[%s1255 + $0xc0] sm:$0xf]
        %v1681 = vld [vmem:[%s1255 + $0xc4] sm:$0xf]
        %v1682 = vld [vmem:[%s1255 + $0xc8] sm:$0xf]
        %v1683 = vld [vmem:[%s1255 + $0xcc] sm:$0xf]
        %v1684 = vld [vmem:[%s1255 + $0xd0] sm:$0xf]
        %v1685 = vld [vmem:[%s1255 + $0xd4] sm:$0xf]
        %v1692 = vunpack.c.l.b16 %v1680
        %v1693 = vunpack.c.l.b16 %v1681
        %v1694 = vunpack.c.l.b16 %v1682
        %v1695 = vunpack.c.l.b16 %v1683
        %v1696 = vunpack.c.l.b16 %v1684
        %v1697 = vunpack.c.l.b16 %v1685
        %v1698 = vpack.c.b16 %v1693, %v1692
        %v1699 = vpack.c.b16 %v1695, %v1694
        %v1700 = vpack.c.b16 %v1697, %v1696
        %1704 = vmatpush.bf16.msra.mxu0 0
        %1705 = vmatpush.bf16.msra.mxu0 0
        %1706 = vmatpush.bf16.msra.mxu0 0
        %1707 = vmatpush.bf16.msra.mxu0 0
        %1708 = vmatpush.bf16.msra.mxu0 0
        %1709 = vmatpush.bf16.msra.mxu0 %v1700
        %1710 = vmatpush.bf16.msra.mxu0 %v1699
        %1711 = vmatpush.bf16.msra.mxu0 %v1698
        %1712 = vmatmul.bf16.gmra.mxu0 %v1077
        %v1713 = vpop.f32.mrf.mxu0
        %v1714 = vadd.f32 0.0, %v1713
        %v1715 = vpop.f32.mrf.mxu0
        %v1716 = vadd.f32 0.0, %v1715
        %1717 = vmatmul.bf16.gmra.mxu0 %v1080
        %v1718 = vpop.f32.mrf.mxu0
        %v1719 = vadd.f32 0.0, %v1718
        %v1720 = vpop.f32.mrf.mxu0
        %v1721 = vadd.f32 0.0, %v1720
        %1722 = vdwg.mxu0
        %v1723 = vadd.f32 %v1676, %v1714
        %v1724 = vadd.f32 %v1677, %v1716
        %v1725 = vadd.f32 %v1678, %v1719
        %v1726 = vadd.f32 %v1679, %v1721
        %v1727 = vadd.f32 %v1723, %v1241
        %v1728 = vadd.f32 %v1724, %v1241
        %v1729 = vadd.f32 %v1725, %v1241
        %v1730 = vadd.f32 %v1726, %v1241
        %v1731 = vmax.f32 %v1727, 0.0
        %v1732 = vmax.f32 %v1728, 0.0
        %v1733 = vmax.f32 %v1729, 0.0
        %v1734 = vmax.f32 %v1730, 0.0
        %v1735 = vlaneseq
        %v1736 = vshrl.u32 %v1735, 7
        %v1737 = vmul.u32 %v1736, 2
        %v1738 = vsub.s32 %v1737, 1
        %vm1739 = vcmp.ge.s32.totalorder %v1738, 0
        %vm1740 = vcmp.lt.s32.totalorder %v1738, 8
        %vm1741 = vmand %vm1739, %vm1740
        %v1742 = vsel %vm1741, %v1731, 0.0
        %v1743 = vsel %vm1741, %v1732, 0.0
        %v1744 = vsel %vm1741, %v1733, 0.0
        %v1745 = vsel %vm1741, %v1734, 0.0
        %v1746 = vld [vmem:[%s196] sm:$0xf]
        %v1747 = vld [vmem:[%s196 + $0x4] sm:$0x1]
        %v1748 = vld [vmem:[%s196 + $0x8] sm:$0xf]
        %v1749 = vld [vmem:[%s196 + $0xc] sm:$0x1]
        %v1750 = vld [vmem:[%s196 + $0x10] sm:$0xf]
        %v1751 = vld [vmem:[%s196 + $0x14] sm:$0x1]
        %v1752 = vld [vmem:[%s196 + $0x18] sm:$0xf]
        %v1753 = vld [vmem:[%s196 + $0x1c] sm:$0x1]
        %v1754 = vld [vmem:[%s196 + $0x20] sm:$0xf]
        %v1755 = vld [vmem:[%s196 + $0x24] sm:$0x1]
        %v1757 = vshrl.u32 %v1746, 16
        %v1759 = vrot.slane %v1757, 4
        %v1760 = vshll.u32 %v1746, 16
        %v1762 = vrot.slane %v1760, 5
        %v1763 = vor.u32 %v1759, %v1762
        %v1764 = vrot.slane %v1763, 4
        %v1766 = vshll.u32 %v1747, 16
        %v1768 = vrot.slane %v1766, 5
        %v1769 = vsel %vm211, %v1764, %v1768
        %v1771 = vshrl.u32 %v1748, 16
        %v1773 = vrot.slane %v1771, 4
        %v1774 = vshll.u32 %v1748, 16
        %v1776 = vrot.slane %v1774, 5
        %v1777 = vor.u32 %v1773, %v1776
        %v1778 = vrot.slane %v1777, 4
        %v1780 = vshll.u32 %v1749, 16
        %v1782 = vrot.slane %v1780, 5
        %v1783 = vsel %vm211, %v1778, %v1782
        %v1785 = vshrl.u32 %v1750, 16
        %v1787 = vrot.slane %v1785, 4
        %v1788 = vshll.u32 %v1750, 16
        %v1790 = vrot.slane %v1788, 5
        %v1791 = vor.u32 %v1787, %v1790
        %v1792 = vrot.slane %v1791, 4
        %v1794 = vshll.u32 %v1751, 16
        %v1796 = vrot.slane %v1794, 5
        %v1797 = vsel %vm211, %v1792, %v1796
        %v1799 = vshrl.u32 %v1752, 16
        %v1801 = vrot.slane %v1799, 4
        %v1802 = vshll.u32 %v1752, 16
        %v1804 = vrot.slane %v1802, 5
        %v1805 = vor.u32 %v1801, %v1804
        %v1806 = vrot.slane %v1805, 4
        %v1808 = vshll.u32 %v1753, 16
        %v1810 = vrot.slane %v1808, 5
        %v1811 = vsel %vm211, %v1806, %v1810
        %v1813 = vshrl.u32 %v1754, 16
        %v1815 = vrot.slane %v1813, 4
        %v1816 = vshll.u32 %v1754, 16
        %v1818 = vrot.slane %v1816, 5
        %v1819 = vor.u32 %v1815, %v1818
        %v1820 = vrot.slane %v1819, 4
        %v1822 = vshll.u32 %v1755, 16
        %v1824 = vrot.slane %v1822, 5
        %v1825 = vsel %vm211, %v1820, %v1824
        %s1826 = scalar_lea.vmem %s1, 432
        %v1827 = vld [vmem:[%s1826] sm:$0xf]
        %v1828 = vld [vmem:[%s1826 + $0x4] sm:$0xf]
        %v1829 = vld [vmem:[%s1826 + $0x8] sm:$0xf]
        %v1830 = vld [vmem:[%s1826 + $0xc] sm:$0xf]
        %v1831 = vld [vmem:[%s1826 + $0x10] sm:$0xf]
        %v1832 = vld [vmem:[%s1826 + $0x14] sm:$0xf]
        %v1833 = vld [vmem:[%s196] sm:$0xe]
        %v1834 = vld [vmem:[%s196 + $0x8] sm:$0xe]
        %v1835 = vld [vmem:[%s196 + $0x10] sm:$0xe]
        %v1836 = vld [vmem:[%s196 + $0x18] sm:$0xe]
        %v1837 = vld [vmem:[%s196 + $0x20] sm:$0xe]
        %v1848 = vrot.slane %v1833, 5
        %v1849 = vrot.slane %v1848, 4
        %v1850 = vrot.slane %v1747, 5
        %v1851 = vsel %vm288, %v1849, %v1850
        %v1852 = vrot.slane %v1834, 5
        %v1853 = vrot.slane %v1852, 4
        %v1854 = vrot.slane %v1749, 5
        %v1855 = vsel %vm288, %v1853, %v1854
        %v1856 = vrot.slane %v1835, 5
        %v1857 = vrot.slane %v1856, 4
        %v1858 = vrot.slane %v1751, 5
        %v1859 = vsel %vm288, %v1857, %v1858
        %v1860 = vrot.slane %v1836, 5
        %v1861 = vrot.slane %v1860, 4
        %v1862 = vrot.slane %v1753, 5
        %v1863 = vsel %vm288, %v1861, %v1862
        %v1864 = vrot.slane %v1837, 5
        %v1865 = vrot.slane %v1864, 4
        %v1866 = vrot.slane %v1755, 5
        %v1867 = vsel %vm288, %v1865, %v1866
        %v1868 = vld [vmem:[%s1826 + $0x18] sm:$0xf]
        %v1869 = vld [vmem:[%s1826 + $0x1c] sm:$0xf]
        %v1870 = vld [vmem:[%s1826 + $0x20] sm:$0xf]
        %v1871 = vld [vmem:[%s1826 + $0x24] sm:$0xf]
        %v1872 = vld [vmem:[%s1826 + $0x28] sm:$0xf]
        %v1873 = vld [vmem:[%s1826 + $0x2c] sm:$0xf]
        %v1874 = vunpack.c.l.b16 %v1851
        %v1875 = vunpack.c.l.b16 %v1855
        %v1876 = vunpack.c.l.b16 %v1859
        %v1877 = vunpack.c.l.b16 %v1863
        %v1878 = vunpack.c.l.b16 %v1867
        %v1879 = vpack.c.b16 %v1875, %v1874
        %v1880 = vpack.c.b16 %v1877, %v1876
        %v1881 = vpack.c.b16 %v1878, %v1878
        %v1888 = vunpack.c.l.b16 %v1868
        %v1889 = vunpack.c.l.b16 %v1869
        %v1890 = vunpack.c.l.b16 %v1870
        %v1891 = vunpack.c.l.b16 %v1871
        %v1892 = vunpack.c.l.b16 %v1872
        %v1893 = vunpack.c.l.b16 %v1873
        %v1894 = vpack.c.b16 %v1889, %v1888
        %v1895 = vpack.c.b16 %v1891, %v1890
        %v1896 = vpack.c.b16 %v1893, %v1892
        %v1901 = vsel %vm335, %v1879, 0
        %v1904 = vsel %vm335, %v1880, 0
        %v1907 = vsel %vm335, %v1881, 0
        %1909 = vmatpush.bf16.msra.mxu0 0
        %1910 = vmatpush.bf16.msra.mxu0 0
        %1911 = vmatpush.bf16.msra.mxu0 0
        %1912 = vmatpush.bf16.msra.mxu0 0
        %1913 = vmatpush.bf16.msra.mxu0 0
        %1914 = vmatpush.bf16.msra.mxu0 %v1896
        %1915 = vmatpush.bf16.msra.mxu0 %v1895
        %1916 = vmatpush.bf16.msra.mxu0 %v1894
        %1917 = vmatmul.bf16.gmra.mxu0 %v1901
        %v1918 = vpop.f32.mrf.mxu0
        %v1919 = vadd.f32 0.0, %v1918
        %v1920 = vpop.f32.mrf.mxu0
        %v1921 = vadd.f32 0.0, %v1920
        %1922 = vmatmul.bf16.gmra.mxu0 %v1904
        %v1923 = vpop.f32.mrf.mxu0
        %v1924 = vadd.f32 0.0, %v1923
        %v1925 = vpop.f32.mrf.mxu0
        %v1926 = vadd.f32 0.0, %v1925
        %1927 = vmatmul.bf16.gmra.mxu0 %v1907
        %v1928 = vpop.f32.mrf.mxu0
        %v1929 = vadd.f32 0.0, %v1928
        %v1930 = vpop.f32.mrf.mxu0
        %1931 = vdwg.mxu0
        %v1932 = vunpack.c.l.b16 %v1769
        %v1933 = vunpack.c.l.b16 %v1783
        %v1934 = vunpack.c.l.b16 %v1797
        %v1935 = vunpack.c.l.b16 %v1811
        %v1936 = vunpack.c.l.b16 %v1825
        %v1937 = vpack.c.b16 %v1933, %v1932
        %v1938 = vpack.c.b16 %v1935, %v1934
        %v1939 = vpack.c.b16 %v1936, %v1936
        %v1946 = vunpack.c.l.b16 %v1827
        %v1947 = vunpack.c.l.b16 %v1828
        %v1948 = vunpack.c.l.b16 %v1829
        %v1949 = vunpack.c.l.b16 %v1830
        %v1950 = vunpack.c.l.b16 %v1831
        %v1951 = vunpack.c.l.b16 %v1832
        %v1952 = vpack.c.b16 %v1947, %v1946
        %v1953 = vpack.c.b16 %v1949, %v1948
        %v1954 = vpack.c.b16 %v1951, %v1950
        %v1959 = vsel %vm335, %v1937, 0
        %v1962 = vsel %vm335, %v1938, 0
        %v1965 = vsel %vm335, %v1939, 0
        %1967 = vmatpush.bf16.msra.mxu0 0
        %1968 = vmatpush.bf16.msra.mxu0 0
        %1969 = vmatpush.bf16.msra.mxu0 0
        %1970 = vmatpush.bf16.msra.mxu0 0
        %1971 = vmatpush.bf16.msra.mxu0 0
        %1972 = vmatpush.bf16.msra.mxu0 %v1954
        %1973 = vmatpush.bf16.msra.mxu0 %v1953
        %1974 = vmatpush.bf16.msra.mxu0 %v1952
        %1975 = vmatmul.bf16.gmra.mxu0 %v1959
        %v1976 = vpop.f32.mrf.mxu0
        %v1977 = vadd.f32 %v1919, %v1976
        %v1978 = vpop.f32.mrf.mxu0
        %v1979 = vadd.f32 %v1921, %v1978
        %1980 = vmatmul.bf16.gmra.mxu0 %v1962
        %v1981 = vpop.f32.mrf.mxu0
        %v1982 = vadd.f32 %v1924, %v1981
        %v1983 = vpop.f32.mrf.mxu0
        %v1984 = vadd.f32 %v1926, %v1983
        %1985 = vmatmul.bf16.gmra.mxu0 %v1965
        %v1986 = vpop.f32.mrf.mxu0
        %v1987 = vadd.f32 %v1929, %v1986
        %v1988 = vpop.f32.mrf.mxu0
        %1989 = vdwg.mxu0
        %v1990 = vld [vmem:[%s196 + $0x4] sm:$0x3]
        %v1991 = vld [vmem:[%s196 + $0xc] sm:$0x3]
        %v1992 = vld [vmem:[%s196 + $0x14] sm:$0x3]
        %v1993 = vld [vmem:[%s196 + $0x1c] sm:$0x3]
        %v1994 = vld [vmem:[%s196 + $0x24] sm:$0x3]
        %v1996 = vshrl.u32 %v1833, 16
        %v1998 = vrot.slane %v1996, 5
        %v1999 = vshll.u32 %v1833, 16
        %v2001 = vrot.slane %v1999, 6
        %v2002 = vor.u32 %v1998, %v2001
        %v2003 = vrot.slane %v2002, 4
        %v2005 = vshrl.u32 %v1990, 16
        %v2007 = vrot.slane %v2005, 5
        %v2008 = vshll.u32 %v1990, 16
        %v2010 = vrot.slane %v2008, 6
        %v2011 = vor.u32 %v2007, %v2010
        %v2012 = vsel %vm416, %v2003, %v2011
        %v2014 = vshrl.u32 %v1834, 16
        %v2016 = vrot.slane %v2014, 5
        %v2017 = vshll.u32 %v1834, 16
        %v2019 = vrot.slane %v2017, 6
        %v2020 = vor.u32 %v2016, %v2019
        %v2021 = vrot.slane %v2020, 4
        %v2023 = vshrl.u32 %v1991, 16
        %v2025 = vrot.slane %v2023, 5
        %v2026 = vshll.u32 %v1991, 16
        %v2028 = vrot.slane %v2026, 6
        %v2029 = vor.u32 %v2025, %v2028
        %v2030 = vsel %vm416, %v2021, %v2029
        %v2032 = vshrl.u32 %v1835, 16
        %v2034 = vrot.slane %v2032, 5
        %v2035 = vshll.u32 %v1835, 16
        %v2037 = vrot.slane %v2035, 6
        %v2038 = vor.u32 %v2034, %v2037
        %v2039 = vrot.slane %v2038, 4
        %v2041 = vshrl.u32 %v1992, 16
        %v2043 = vrot.slane %v2041, 5
        %v2044 = vshll.u32 %v1992, 16
        %v2046 = vrot.slane %v2044, 6
        %v2047 = vor.u32 %v2043, %v2046
        %v2048 = vsel %vm416, %v2039, %v2047
        %v2050 = vshrl.u32 %v1836, 16
        %v2052 = vrot.slane %v2050, 5
        %v2053 = vshll.u32 %v1836, 16
        %v2055 = vrot.slane %v2053, 6
        %v2056 = vor.u32 %v2052, %v2055
        %v2057 = vrot.slane %v2056, 4
        %v2059 = vshrl.u32 %v1993, 16
        %v2061 = vrot.slane %v2059, 5
        %v2062 = vshll.u32 %v1993, 16
        %v2064 = vrot.slane %v2062, 6
        %v2065 = vor.u32 %v2061, %v2064
        %v2066 = vsel %vm416, %v2057, %v2065
        %v2068 = vshrl.u32 %v1837, 16
        %v2070 = vrot.slane %v2068, 5
        %v2071 = vshll.u32 %v1837, 16
        %v2073 = vrot.slane %v2071, 6
        %v2074 = vor.u32 %v2070, %v2073
        %v2075 = vrot.slane %v2074, 4
        %v2077 = vshrl.u32 %v1994, 16
        %v2079 = vrot.slane %v2077, 5
        %v2080 = vshll.u32 %v1994, 16
        %v2082 = vrot.slane %v2080, 6
        %v2083 = vor.u32 %v2079, %v2082
        %v2084 = vsel %vm416, %v2075, %v2083
        %v2085 = vld [vmem:[%s1826 + $0x30] sm:$0xf]
        %v2086 = vld [vmem:[%s1826 + $0x34] sm:$0xf]
        %v2087 = vld [vmem:[%s1826 + $0x38] sm:$0xf]
        %v2088 = vld [vmem:[%s1826 + $0x3c] sm:$0xf]
        %v2089 = vld [vmem:[%s1826 + $0x40] sm:$0xf]
        %v2090 = vld [vmem:[%s1826 + $0x44] sm:$0xf]
        %v2091 = vunpack.c.l.b16 %v2012
        %v2092 = vunpack.c.l.b16 %v2030
        %v2093 = vunpack.c.l.b16 %v2048
        %v2094 = vunpack.c.l.b16 %v2066
        %v2095 = vunpack.c.l.b16 %v2084
        %v2096 = vpack.c.b16 %v2092, %v2091
        %v2097 = vpack.c.b16 %v2094, %v2093
        %v2098 = vpack.c.b16 %v2095, %v2095
        %v2105 = vunpack.c.l.b16 %v2085
        %v2106 = vunpack.c.l.b16 %v2086
        %v2107 = vunpack.c.l.b16 %v2087
        %v2108 = vunpack.c.l.b16 %v2088
        %v2109 = vunpack.c.l.b16 %v2089
        %v2110 = vunpack.c.l.b16 %v2090
        %v2111 = vpack.c.b16 %v2106, %v2105
        %v2112 = vpack.c.b16 %v2108, %v2107
        %v2113 = vpack.c.b16 %v2110, %v2109
        %v2118 = vsel %vm335, %v2096, 0
        %v2121 = vsel %vm335, %v2097, 0
        %v2124 = vsel %vm335, %v2098, 0
        %2126 = vmatpush.bf16.msra.mxu0 0
        %2127 = vmatpush.bf16.msra.mxu0 0
        %2128 = vmatpush.bf16.msra.mxu0 0
        %2129 = vmatpush.bf16.msra.mxu0 0
        %2130 = vmatpush.bf16.msra.mxu0 0
        %2131 = vmatpush.bf16.msra.mxu0 %v2113
        %2132 = vmatpush.bf16.msra.mxu0 %v2112
        %2133 = vmatpush.bf16.msra.mxu0 %v2111
        %2134 = vmatmul.bf16.gmra.mxu0 %v2118
        %v2135 = vpop.f32.mrf.mxu0
        %v2136 = vadd.f32 0.0, %v2135
        %v2137 = vpop.f32.mrf.mxu0
        %v2138 = vadd.f32 0.0, %v2137
        %2139 = vmatmul.bf16.gmra.mxu0 %v2121
        %v2140 = vpop.f32.mrf.mxu0
        %v2141 = vadd.f32 0.0, %v2140
        %v2142 = vpop.f32.mrf.mxu0
        %v2143 = vadd.f32 0.0, %v2142
        %2144 = vmatmul.bf16.gmra.mxu0 %v2124
        %v2145 = vpop.f32.mrf.mxu0
        %v2146 = vadd.f32 0.0, %v2145
        %v2147 = vpop.f32.mrf.mxu0
        %2148 = vdwg.mxu0
        %v2149 = vadd.f32 %v1977, %v2136
        %v2150 = vadd.f32 %v1979, %v2138
        %v2151 = vadd.f32 %v1982, %v2141
        %v2152 = vadd.f32 %v1984, %v2143
        %v2153 = vadd.f32 %v1987, %v2146
        %v2154 = vld [vmem:[%s200] sm:$0xf]
        %v2155 = vld [vmem:[%s200 + $0x4] sm:$0x1]
        %v2156 = vld [vmem:[%s200 + $0x8] sm:$0xf]
        %v2157 = vld [vmem:[%s200 + $0xc] sm:$0x1]
        %v2158 = vld [vmem:[%s200 + $0x10] sm:$0xf]
        %v2159 = vld [vmem:[%s200 + $0x14] sm:$0x1]
        %v2160 = vld [vmem:[%s200 + $0x18] sm:$0xf]
        %v2161 = vld [vmem:[%s200 + $0x1c] sm:$0x1]
        %v2162 = vld [vmem:[%s200 + $0x20] sm:$0xf]
        %v2163 = vld [vmem:[%s200 + $0x24] sm:$0x1]
        %v2165 = vshrl.u32 %v2154, 16
        %v2167 = vrot.slane %v2165, 4
        %v2168 = vshll.u32 %v2154, 16
        %v2170 = vrot.slane %v2168, 5
        %v2171 = vor.u32 %v2167, %v2170
        %v2172 = vrot.slane %v2171, 4
        %v2174 = vshll.u32 %v2155, 16
        %v2176 = vrot.slane %v2174, 5
        %v2177 = vsel %vm211, %v2172, %v2176
        %v2179 = vshrl.u32 %v2156, 16
        %v2181 = vrot.slane %v2179, 4
        %v2182 = vshll.u32 %v2156, 16
        %v2184 = vrot.slane %v2182, 5
        %v2185 = vor.u32 %v2181, %v2184
        %v2186 = vrot.slane %v2185, 4
        %v2188 = vshll.u32 %v2157, 16
        %v2190 = vrot.slane %v2188, 5
        %v2191 = vsel %vm211, %v2186, %v2190
        %v2193 = vshrl.u32 %v2158, 16
        %v2195 = vrot.slane %v2193, 4
        %v2196 = vshll.u32 %v2158, 16
        %v2198 = vrot.slane %v2196, 5
        %v2199 = vor.u32 %v2195, %v2198
        %v2200 = vrot.slane %v2199, 4
        %v2202 = vshll.u32 %v2159, 16
        %v2204 = vrot.slane %v2202, 5
        %v2205 = vsel %vm211, %v2200, %v2204
        %v2207 = vshrl.u32 %v2160, 16
        %v2209 = vrot.slane %v2207, 4
        %v2210 = vshll.u32 %v2160, 16
        %v2212 = vrot.slane %v2210, 5
        %v2213 = vor.u32 %v2209, %v2212
        %v2214 = vrot.slane %v2213, 4
        %v2216 = vshll.u32 %v2161, 16
        %v2218 = vrot.slane %v2216, 5
        %v2219 = vsel %vm211, %v2214, %v2218
        %v2221 = vshrl.u32 %v2162, 16
        %v2223 = vrot.slane %v2221, 4
        %v2224 = vshll.u32 %v2162, 16
        %v2226 = vrot.slane %v2224, 5
        %v2227 = vor.u32 %v2223, %v2226
        %v2228 = vrot.slane %v2227, 4
        %v2230 = vshll.u32 %v2163, 16
        %v2232 = vrot.slane %v2230, 5
        %v2233 = vsel %vm211, %v2228, %v2232
        %v2234 = vld [vmem:[%s1826 + $0x48] sm:$0xf]
        %v2235 = vld [vmem:[%s1826 + $0x4c] sm:$0xf]
        %v2236 = vld [vmem:[%s1826 + $0x50] sm:$0xf]
        %v2237 = vld [vmem:[%s1826 + $0x54] sm:$0xf]
        %v2238 = vld [vmem:[%s1826 + $0x58] sm:$0xf]
        %v2239 = vld [vmem:[%s1826 + $0x5c] sm:$0xf]
        %v2240 = vunpack.c.l.b16 %v2177
        %v2241 = vunpack.c.l.b16 %v2191
        %v2242 = vunpack.c.l.b16 %v2205
        %v2243 = vunpack.c.l.b16 %v2219
        %v2244 = vunpack.c.l.b16 %v2233
        %v2245 = vpack.c.b16 %v2241, %v2240
        %v2246 = vpack.c.b16 %v2243, %v2242
        %v2247 = vpack.c.b16 %v2244, %v2244
        %v2254 = vunpack.c.l.b16 %v2234
        %v2255 = vunpack.c.l.b16 %v2235
        %v2256 = vunpack.c.l.b16 %v2236
        %v2257 = vunpack.c.l.b16 %v2237
        %v2258 = vunpack.c.l.b16 %v2238
        %v2259 = vunpack.c.l.b16 %v2239
        %v2260 = vpack.c.b16 %v2255, %v2254
        %v2261 = vpack.c.b16 %v2257, %v2256
        %v2262 = vpack.c.b16 %v2259, %v2258
        %v2267 = vsel %vm335, %v2245, 0
        %v2270 = vsel %vm335, %v2246, 0
        %v2273 = vsel %vm335, %v2247, 0
        %2275 = vmatpush.bf16.msra.mxu0 0
        %2276 = vmatpush.bf16.msra.mxu0 0
        %2277 = vmatpush.bf16.msra.mxu0 0
        %2278 = vmatpush.bf16.msra.mxu0 0
        %2279 = vmatpush.bf16.msra.mxu0 0
        %2280 = vmatpush.bf16.msra.mxu0 %v2262
        %2281 = vmatpush.bf16.msra.mxu0 %v2261
        %2282 = vmatpush.bf16.msra.mxu0 %v2260
        %2283 = vmatmul.bf16.gmra.mxu0 %v2267
        %v2284 = vpop.f32.mrf.mxu0
        %v2285 = vadd.f32 0.0, %v2284
        %v2286 = vpop.f32.mrf.mxu0
        %v2287 = vadd.f32 0.0, %v2286
        %2288 = vmatmul.bf16.gmra.mxu0 %v2270
        %v2289 = vpop.f32.mrf.mxu0
        %v2290 = vadd.f32 0.0, %v2289
        %v2291 = vpop.f32.mrf.mxu0
        %v2292 = vadd.f32 0.0, %v2291
        %2293 = vmatmul.bf16.gmra.mxu0 %v2273
        %v2294 = vpop.f32.mrf.mxu0
        %v2295 = vadd.f32 0.0, %v2294
        %v2296 = vpop.f32.mrf.mxu0
        %2297 = vdwg.mxu0
        %v2298 = vadd.f32 %v2149, %v2285
        %v2299 = vadd.f32 %v2150, %v2287
        %v2300 = vadd.f32 %v2151, %v2290
        %v2301 = vadd.f32 %v2152, %v2292
        %v2302 = vadd.f32 %v2153, %v2295
        %v2303 = vld [vmem:[%s200] sm:$0xe]
        %v2304 = vld [vmem:[%s200 + $0x8] sm:$0xe]
        %v2305 = vld [vmem:[%s200 + $0x10] sm:$0xe]
        %v2306 = vld [vmem:[%s200 + $0x18] sm:$0xe]
        %v2307 = vld [vmem:[%s200 + $0x20] sm:$0xe]
        %v2318 = vrot.slane %v2303, 5
        %v2319 = vrot.slane %v2318, 4
        %v2320 = vrot.slane %v2155, 5
        %v2321 = vsel %vm288, %v2319, %v2320
        %v2322 = vrot.slane %v2304, 5
        %v2323 = vrot.slane %v2322, 4
        %v2324 = vrot.slane %v2157, 5
        %v2325 = vsel %vm288, %v2323, %v2324
        %v2326 = vrot.slane %v2305, 5
        %v2327 = vrot.slane %v2326, 4
        %v2328 = vrot.slane %v2159, 5
        %v2329 = vsel %vm288, %v2327, %v2328
        %v2330 = vrot.slane %v2306, 5
        %v2331 = vrot.slane %v2330, 4
        %v2332 = vrot.slane %v2161, 5
        %v2333 = vsel %vm288, %v2331, %v2332
        %v2334 = vrot.slane %v2307, 5
        %v2335 = vrot.slane %v2334, 4
        %v2336 = vrot.slane %v2163, 5
        %v2337 = vsel %vm288, %v2335, %v2336
        %v2338 = vld [vmem:[%s1826 + $0x60] sm:$0xf]
        %v2339 = vld [vmem:[%s1826 + $0x64] sm:$0xf]
        %v2340 = vld [vmem:[%s1826 + $0x68] sm:$0xf]
        %v2341 = vld [vmem:[%s1826 + $0x6c] sm:$0xf]
        %v2342 = vld [vmem:[%s1826 + $0x70] sm:$0xf]
        %v2343 = vld [vmem:[%s1826 + $0x74] sm:$0xf]
        %v2344 = vunpack.c.l.b16 %v2321
        %v2345 = vunpack.c.l.b16 %v2325
        %v2346 = vunpack.c.l.b16 %v2329
        %v2347 = vunpack.c.l.b16 %v2333
        %v2348 = vunpack.c.l.b16 %v2337
        %v2349 = vpack.c.b16 %v2345, %v2344
        %v2350 = vpack.c.b16 %v2347, %v2346
        %v2351 = vpack.c.b16 %v2348, %v2348
        %v2358 = vunpack.c.l.b16 %v2338
        %v2359 = vunpack.c.l.b16 %v2339
        %v2360 = vunpack.c.l.b16 %v2340
        %v2361 = vunpack.c.l.b16 %v2341
        %v2362 = vunpack.c.l.b16 %v2342
        %v2363 = vunpack.c.l.b16 %v2343
        %v2364 = vpack.c.b16 %v2359, %v2358
        %v2365 = vpack.c.b16 %v2361, %v2360
        %v2366 = vpack.c.b16 %v2363, %v2362
        %v2371 = vsel %vm335, %v2349, 0
        %v2374 = vsel %vm335, %v2350, 0
        %v2377 = vsel %vm335, %v2351, 0
        %2379 = vmatpush.bf16.msra.mxu0 0
        %2380 = vmatpush.bf16.msra.mxu0 0
        %2381 = vmatpush.bf16.msra.mxu0 0
        %2382 = vmatpush.bf16.msra.mxu0 0
        %2383 = vmatpush.bf16.msra.mxu0 0
        %2384 = vmatpush.bf16.msra.mxu0 %v2366
        %2385 = vmatpush.bf16.msra.mxu0 %v2365
        %2386 = vmatpush.bf16.msra.mxu0 %v2364
        %2387 = vmatmul.bf16.gmra.mxu0 %v2371
        %v2388 = vpop.f32.mrf.mxu0
        %v2389 = vadd.f32 0.0, %v2388
        %v2390 = vpop.f32.mrf.mxu0
        %v2391 = vadd.f32 0.0, %v2390
        %2392 = vmatmul.bf16.gmra.mxu0 %v2374
        %v2393 = vpop.f32.mrf.mxu0
        %v2394 = vadd.f32 0.0, %v2393
        %v2395 = vpop.f32.mrf.mxu0
        %v2396 = vadd.f32 0.0, %v2395
        %2397 = vmatmul.bf16.gmra.mxu0 %v2377
        %v2398 = vpop.f32.mrf.mxu0
        %v2399 = vadd.f32 0.0, %v2398
        %v2400 = vpop.f32.mrf.mxu0
        %2401 = vdwg.mxu0
        %v2402 = vadd.f32 %v2298, %v2389
        %v2403 = vadd.f32 %v2299, %v2391
        %v2404 = vadd.f32 %v2300, %v2394
        %v2405 = vadd.f32 %v2301, %v2396
        %v2406 = vadd.f32 %v2302, %v2399
        %v2407 = vld [vmem:[%s200 + $0x4] sm:$0x3]
        %v2408 = vld [vmem:[%s200 + $0xc] sm:$0x3]
        %v2409 = vld [vmem:[%s200 + $0x14] sm:$0x3]
        %v2410 = vld [vmem:[%s200 + $0x1c] sm:$0x3]
        %v2411 = vld [vmem:[%s200 + $0x24] sm:$0x3]
        %v2413 = vshrl.u32 %v2303, 16
        %v2415 = vrot.slane %v2413, 5
        %v2416 = vshll.u32 %v2303, 16
        %v2418 = vrot.slane %v2416, 6
        %v2419 = vor.u32 %v2415, %v2418
        %v2420 = vrot.slane %v2419, 4
        %v2422 = vshrl.u32 %v2407, 16
        %v2424 = vrot.slane %v2422, 5
        %v2425 = vshll.u32 %v2407, 16
        %v2427 = vrot.slane %v2425, 6
        %v2428 = vor.u32 %v2424, %v2427
        %v2429 = vsel %vm416, %v2420, %v2428
        %v2431 = vshrl.u32 %v2304, 16
        %v2433 = vrot.slane %v2431, 5
        %v2434 = vshll.u32 %v2304, 16
        %v2436 = vrot.slane %v2434, 6
        %v2437 = vor.u32 %v2433, %v2436
        %v2438 = vrot.slane %v2437, 4
        %v2440 = vshrl.u32 %v2408, 16
        %v2442 = vrot.slane %v2440, 5
        %v2443 = vshll.u32 %v2408, 16
        %v2445 = vrot.slane %v2443, 6
        %v2446 = vor.u32 %v2442, %v2445
        %v2447 = vsel %vm416, %v2438, %v2446
        %v2449 = vshrl.u32 %v2305, 16
        %v2451 = vrot.slane %v2449, 5
        %v2452 = vshll.u32 %v2305, 16
        %v2454 = vrot.slane %v2452, 6
        %v2455 = vor.u32 %v2451, %v2454
        %v2456 = vrot.slane %v2455, 4
        %v2458 = vshrl.u32 %v2409, 16
        %v2460 = vrot.slane %v2458, 5
        %v2461 = vshll.u32 %v2409, 16
        %v2463 = vrot.slane %v2461, 6
        %v2464 = vor.u32 %v2460, %v2463
        %v2465 = vsel %vm416, %v2456, %v2464
        %v2467 = vshrl.u32 %v2306, 16
        %v2469 = vrot.slane %v2467, 5
        %v2470 = vshll.u32 %v2306, 16
        %v2472 = vrot.slane %v2470, 6
        %v2473 = vor.u32 %v2469, %v2472
        %v2474 = vrot.slane %v2473, 4
        %v2476 = vshrl.u32 %v2410, 16
        %v2478 = vrot.slane %v2476, 5
        %v2479 = vshll.u32 %v2410, 16
        %v2481 = vrot.slane %v2479, 6
        %v2482 = vor.u32 %v2478, %v2481
        %v2483 = vsel %vm416, %v2474, %v2482
        %v2485 = vshrl.u32 %v2307, 16
        %v2487 = vrot.slane %v2485, 5
        %v2488 = vshll.u32 %v2307, 16
        %v2490 = vrot.slane %v2488, 6
        %v2491 = vor.u32 %v2487, %v2490
        %v2492 = vrot.slane %v2491, 4
        %v2494 = vshrl.u32 %v2411, 16
        %v2496 = vrot.slane %v2494, 5
        %v2497 = vshll.u32 %v2411, 16
        %v2499 = vrot.slane %v2497, 6
        %v2500 = vor.u32 %v2496, %v2499
        %v2501 = vsel %vm416, %v2492, %v2500
        %v2502 = vld [vmem:[%s1826 + $0x78] sm:$0xf]
        %v2503 = vld [vmem:[%s1826 + $0x7c] sm:$0xf]
        %v2504 = vld [vmem:[%s1826 + $0x80] sm:$0xf]
        %v2505 = vld [vmem:[%s1826 + $0x84] sm:$0xf]
        %v2506 = vld [vmem:[%s1826 + $0x88] sm:$0xf]
        %v2507 = vld [vmem:[%s1826 + $0x8c] sm:$0xf]
        %v2508 = vunpack.c.l.b16 %v2429
        %v2509 = vunpack.c.l.b16 %v2447
        %v2510 = vunpack.c.l.b16 %v2465
        %v2511 = vunpack.c.l.b16 %v2483
        %v2512 = vunpack.c.l.b16 %v2501
        %v2513 = vpack.c.b16 %v2509, %v2508
        %v2514 = vpack.c.b16 %v2511, %v2510
        %v2515 = vpack.c.b16 %v2512, %v2512
        %v2522 = vunpack.c.l.b16 %v2502
        %v2523 = vunpack.c.l.b16 %v2503
        %v2524 = vunpack.c.l.b16 %v2504
        %v2525 = vunpack.c.l.b16 %v2505
        %v2526 = vunpack.c.l.b16 %v2506
        %v2527 = vunpack.c.l.b16 %v2507
        %v2528 = vpack.c.b16 %v2523, %v2522
        %v2529 = vpack.c.b16 %v2525, %v2524
        %v2530 = vpack.c.b16 %v2527, %v2526
        %v2535 = vsel %vm335, %v2513, 0
        %v2538 = vsel %vm335, %v2514, 0
        %v2541 = vsel %vm335, %v2515, 0
        %2543 = vmatpush.bf16.msra.mxu0 0
        %2544 = vmatpush.bf16.msra.mxu0 0
        %2545 = vmatpush.bf16.msra.mxu0 0
        %2546 = vmatpush.bf16.msra.mxu0 0
        %2547 = vmatpush.bf16.msra.mxu0 0
        %2548 = vmatpush.bf16.msra.mxu0 %v2530
        %2549 = vmatpush.bf16.msra.mxu0 %v2529
        %2550 = vmatpush.bf16.msra.mxu0 %v2528
        %2551 = vmatmul.bf16.gmra.mxu0 %v2535
        %v2552 = vpop.f32.mrf.mxu0
        %v2553 = vadd.f32 0.0, %v2552
        %v2554 = vpop.f32.mrf.mxu0
        %v2555 = vadd.f32 0.0, %v2554
        %2556 = vmatmul.bf16.gmra.mxu0 %v2538
        %v2557 = vpop.f32.mrf.mxu0
        %v2558 = vadd.f32 0.0, %v2557
        %v2559 = vpop.f32.mrf.mxu0
        %v2560 = vadd.f32 0.0, %v2559
        %2561 = vmatmul.bf16.gmra.mxu0 %v2541
        %v2562 = vpop.f32.mrf.mxu0
        %v2563 = vadd.f32 0.0, %v2562
        %v2564 = vpop.f32.mrf.mxu0
        %2565 = vdwg.mxu0
        %v2566 = vadd.f32 %v2402, %v2553
        %v2567 = vadd.f32 %v2403, %v2555
        %v2568 = vadd.f32 %v2404, %v2558
        %v2569 = vadd.f32 %v2405, %v2560
        %v2570 = vadd.f32 %v2406, %v2563
        %v2571 = vld [vmem:[%s548] sm:$0xf]
        %v2572 = vld [vmem:[%s548 + $0x4] sm:$0x1]
        %v2573 = vld [vmem:[%s548 + $0x8] sm:$0xf]
        %v2574 = vld [vmem:[%s548 + $0xc] sm:$0x1]
        %v2575 = vld [vmem:[%s548 + $0x10] sm:$0xf]
        %v2576 = vld [vmem:[%s548 + $0x14] sm:$0x1]
        %v2577 = vld [vmem:[%s548 + $0x18] sm:$0xf]
        %v2578 = vld [vmem:[%s548 + $0x1c] sm:$0x1]
        %v2579 = vld [vmem:[%s548 + $0x20] sm:$0xf]
        %v2580 = vld [vmem:[%s548 + $0x24] sm:$0x1]
        %v2582 = vshrl.u32 %v2571, 16
        %v2584 = vrot.slane %v2582, 4
        %v2585 = vshll.u32 %v2571, 16
        %v2587 = vrot.slane %v2585, 5
        %v2588 = vor.u32 %v2584, %v2587
        %v2589 = vrot.slane %v2588, 4
        %v2591 = vshll.u32 %v2572, 16
        %v2593 = vrot.slane %v2591, 5
        %v2594 = vsel %vm211, %v2589, %v2593
        %v2596 = vshrl.u32 %v2573, 16
        %v2598 = vrot.slane %v2596, 4
        %v2599 = vshll.u32 %v2573, 16
        %v2601 = vrot.slane %v2599, 5
        %v2602 = vor.u32 %v2598, %v2601
        %v2603 = vrot.slane %v2602, 4
        %v2605 = vshll.u32 %v2574, 16
        %v2607 = vrot.slane %v2605, 5
        %v2608 = vsel %vm211, %v2603, %v2607
        %v2610 = vshrl.u32 %v2575, 16
        %v2612 = vrot.slane %v2610, 4
        %v2613 = vshll.u32 %v2575, 16
        %v2615 = vrot.slane %v2613, 5
        %v2616 = vor.u32 %v2612, %v2615
        %v2617 = vrot.slane %v2616, 4
        %v2619 = vshll.u32 %v2576, 16
        %v2621 = vrot.slane %v2619, 5
        %v2622 = vsel %vm211, %v2617, %v2621
        %v2624 = vshrl.u32 %v2577, 16
        %v2626 = vrot.slane %v2624, 4
        %v2627 = vshll.u32 %v2577, 16
        %v2629 = vrot.slane %v2627, 5
        %v2630 = vor.u32 %v2626, %v2629
        %v2631 = vrot.slane %v2630, 4
        %v2633 = vshll.u32 %v2578, 16
        %v2635 = vrot.slane %v2633, 5
        %v2636 = vsel %vm211, %v2631, %v2635
        %v2638 = vshrl.u32 %v2579, 16
        %v2640 = vrot.slane %v2638, 4
        %v2641 = vshll.u32 %v2579, 16
        %v2643 = vrot.slane %v2641, 5
        %v2644 = vor.u32 %v2640, %v2643
        %v2645 = vrot.slane %v2644, 4
        %v2647 = vshll.u32 %v2580, 16
        %v2649 = vrot.slane %v2647, 5
        %v2650 = vsel %vm211, %v2645, %v2649
        %v2651 = vld [vmem:[%s1826 + $0x90] sm:$0xf]
        %v2652 = vld [vmem:[%s1826 + $0x94] sm:$0xf]
        %v2653 = vld [vmem:[%s1826 + $0x98] sm:$0xf]
        %v2654 = vld [vmem:[%s1826 + $0x9c] sm:$0xf]
        %v2655 = vld [vmem:[%s1826 + $0xa0] sm:$0xf]
        %v2656 = vld [vmem:[%s1826 + $0xa4] sm:$0xf]
        %v2657 = vunpack.c.l.b16 %v2594
        %v2658 = vunpack.c.l.b16 %v2608
        %v2659 = vunpack.c.l.b16 %v2622
        %v2660 = vunpack.c.l.b16 %v2636
        %v2661 = vunpack.c.l.b16 %v2650
        %v2662 = vpack.c.b16 %v2658, %v2657
        %v2663 = vpack.c.b16 %v2660, %v2659
        %v2664 = vpack.c.b16 %v2661, %v2661
        %v2671 = vunpack.c.l.b16 %v2651
        %v2672 = vunpack.c.l.b16 %v2652
        %v2673 = vunpack.c.l.b16 %v2653
        %v2674 = vunpack.c.l.b16 %v2654
        %v2675 = vunpack.c.l.b16 %v2655
        %v2676 = vunpack.c.l.b16 %v2656
        %v2677 = vpack.c.b16 %v2672, %v2671
        %v2678 = vpack.c.b16 %v2674, %v2673
        %v2679 = vpack.c.b16 %v2676, %v2675
        %v2684 = vsel %vm335, %v2662, 0
        %v2687 = vsel %vm335, %v2663, 0
        %v2690 = vsel %vm335, %v2664, 0
        %2692 = vmatpush.bf16.msra.mxu0 0
        %2693 = vmatpush.bf16.msra.mxu0 0
        %2694 = vmatpush.bf16.msra.mxu0 0
        %2695 = vmatpush.bf16.msra.mxu0 0
        %2696 = vmatpush.bf16.msra.mxu0 0
        %2697 = vmatpush.bf16.msra.mxu0 %v2679
        %2698 = vmatpush.bf16.msra.mxu0 %v2678
        %2699 = vmatpush.bf16.msra.mxu0 %v2677
        %2700 = vmatmul.bf16.gmra.mxu0 %v2684
        %v2701 = vpop.f32.mrf.mxu0
        %v2702 = vadd.f32 0.0, %v2701
        %v2703 = vpop.f32.mrf.mxu0
        %v2704 = vadd.f32 0.0, %v2703
        %2705 = vmatmul.bf16.gmra.mxu0 %v2687
        %v2706 = vpop.f32.mrf.mxu0
        %v2707 = vadd.f32 0.0, %v2706
        %v2708 = vpop.f32.mrf.mxu0
        %v2709 = vadd.f32 0.0, %v2708
        %2710 = vmatmul.bf16.gmra.mxu0 %v2690
        %v2711 = vpop.f32.mrf.mxu0
        %v2712 = vadd.f32 0.0, %v2711
        %v2713 = vpop.f32.mrf.mxu0
        %2714 = vdwg.mxu0
        %v2715 = vadd.f32 %v2566, %v2702
        %v2716 = vadd.f32 %v2567, %v2704
        %v2717 = vadd.f32 %v2568, %v2707
        %v2718 = vadd.f32 %v2569, %v2709
        %v2719 = vadd.f32 %v2570, %v2712
        %v2720 = vld [vmem:[%s548] sm:$0xe]
        %v2721 = vld [vmem:[%s548 + $0x8] sm:$0xe]
        %v2722 = vld [vmem:[%s548 + $0x10] sm:$0xe]
        %v2723 = vld [vmem:[%s548 + $0x18] sm:$0xe]
        %v2724 = vld [vmem:[%s548 + $0x20] sm:$0xe]
        %v2735 = vrot.slane %v2720, 5
        %v2736 = vrot.slane %v2735, 4
        %v2737 = vrot.slane %v2572, 5
        %v2738 = vsel %vm288, %v2736, %v2737
        %v2739 = vrot.slane %v2721, 5
        %v2740 = vrot.slane %v2739, 4
        %v2741 = vrot.slane %v2574, 5
        %v2742 = vsel %vm288, %v2740, %v2741
        %v2743 = vrot.slane %v2722, 5
        %v2744 = vrot.slane %v2743, 4
        %v2745 = vrot.slane %v2576, 5
        %v2746 = vsel %vm288, %v2744, %v2745
        %v2747 = vrot.slane %v2723, 5
        %v2748 = vrot.slane %v2747, 4
        %v2749 = vrot.slane %v2578, 5
        %v2750 = vsel %vm288, %v2748, %v2749
        %v2751 = vrot.slane %v2724, 5
        %v2752 = vrot.slane %v2751, 4
        %v2753 = vrot.slane %v2580, 5
        %v2754 = vsel %vm288, %v2752, %v2753
        %v2755 = vld [vmem:[%s1826 + $0xa8] sm:$0xf]
        %v2756 = vld [vmem:[%s1826 + $0xac] sm:$0xf]
        %v2757 = vld [vmem:[%s1826 + $0xb0] sm:$0xf]
        %v2758 = vld [vmem:[%s1826 + $0xb4] sm:$0xf]
        %v2759 = vld [vmem:[%s1826 + $0xb8] sm:$0xf]
        %v2760 = vld [vmem:[%s1826 + $0xbc] sm:$0xf]
        %v2761 = vunpack.c.l.b16 %v2738
        %v2762 = vunpack.c.l.b16 %v2742
        %v2763 = vunpack.c.l.b16 %v2746
        %v2764 = vunpack.c.l.b16 %v2750
        %v2765 = vunpack.c.l.b16 %v2754
        %v2766 = vpack.c.b16 %v2762, %v2761
        %v2767 = vpack.c.b16 %v2764, %v2763
        %v2768 = vpack.c.b16 %v2765, %v2765
        %v2775 = vunpack.c.l.b16 %v2755
        %v2776 = vunpack.c.l.b16 %v2756
        %v2777 = vunpack.c.l.b16 %v2757
        %v2778 = vunpack.c.l.b16 %v2758
        %v2779 = vunpack.c.l.b16 %v2759
        %v2780 = vunpack.c.l.b16 %v2760
        %v2781 = vpack.c.b16 %v2776, %v2775
        %v2782 = vpack.c.b16 %v2778, %v2777
        %v2783 = vpack.c.b16 %v2780, %v2779
        %v2788 = vsel %vm335, %v2766, 0
        %v2791 = vsel %vm335, %v2767, 0
        %v2794 = vsel %vm335, %v2768, 0
        %2796 = vmatpush.bf16.msra.mxu0 0
        %2797 = vmatpush.bf16.msra.mxu0 0
        %2798 = vmatpush.bf16.msra.mxu0 0
        %2799 = vmatpush.bf16.msra.mxu0 0
        %2800 = vmatpush.bf16.msra.mxu0 0
        %2801 = vmatpush.bf16.msra.mxu0 %v2783
        %2802 = vmatpush.bf16.msra.mxu0 %v2782
        %2803 = vmatpush.bf16.msra.mxu0 %v2781
        %2804 = vmatmul.bf16.gmra.mxu0 %v2788
        %v2805 = vpop.f32.mrf.mxu0
        %v2806 = vadd.f32 0.0, %v2805
        %v2807 = vpop.f32.mrf.mxu0
        %v2808 = vadd.f32 0.0, %v2807
        %2809 = vmatmul.bf16.gmra.mxu0 %v2791
        %v2810 = vpop.f32.mrf.mxu0
        %v2811 = vadd.f32 0.0, %v2810
        %v2812 = vpop.f32.mrf.mxu0
        %v2813 = vadd.f32 0.0, %v2812
        %2814 = vmatmul.bf16.gmra.mxu0 %v2794
        %v2815 = vpop.f32.mrf.mxu0
        %v2816 = vadd.f32 0.0, %v2815
        %v2817 = vpop.f32.mrf.mxu0
        %2818 = vdwg.mxu0
        %v2819 = vadd.f32 %v2715, %v2806
        %v2820 = vadd.f32 %v2716, %v2808
        %v2821 = vadd.f32 %v2717, %v2811
        %v2822 = vadd.f32 %v2718, %v2813
        %v2823 = vadd.f32 %v2719, %v2816
        %v2824 = vld [vmem:[%s548 + $0x4] sm:$0x3]
        %v2825 = vld [vmem:[%s548 + $0xc] sm:$0x3]
        %v2826 = vld [vmem:[%s548 + $0x14] sm:$0x3]
        %v2827 = vld [vmem:[%s548 + $0x1c] sm:$0x3]
        %v2828 = vld [vmem:[%s548 + $0x24] sm:$0x3]
        %v2830 = vshrl.u32 %v2720, 16
        %v2832 = vrot.slane %v2830, 5
        %v2833 = vshll.u32 %v2720, 16
        %v2835 = vrot.slane %v2833, 6
        %v2836 = vor.u32 %v2832, %v2835
        %v2837 = vrot.slane %v2836, 4
        %v2839 = vshrl.u32 %v2824, 16
        %v2841 = vrot.slane %v2839, 5
        %v2842 = vshll.u32 %v2824, 16
        %v2844 = vrot.slane %v2842, 6
        %v2845 = vor.u32 %v2841, %v2844
        %v2846 = vsel %vm416, %v2837, %v2845
        %v2848 = vshrl.u32 %v2721, 16
        %v2850 = vrot.slane %v2848, 5
        %v2851 = vshll.u32 %v2721, 16
        %v2853 = vrot.slane %v2851, 6
        %v2854 = vor.u32 %v2850, %v2853
        %v2855 = vrot.slane %v2854, 4
        %v2857 = vshrl.u32 %v2825, 16
        %v2859 = vrot.slane %v2857, 5
        %v2860 = vshll.u32 %v2825, 16
        %v2862 = vrot.slane %v2860, 6
        %v2863 = vor.u32 %v2859, %v2862
        %v2864 = vsel %vm416, %v2855, %v2863
        %v2866 = vshrl.u32 %v2722, 16
        %v2868 = vrot.slane %v2866, 5
        %v2869 = vshll.u32 %v2722, 16
        %v2871 = vrot.slane %v2869, 6
        %v2872 = vor.u32 %v2868, %v2871
        %v2873 = vrot.slane %v2872, 4
        %v2875 = vshrl.u32 %v2826, 16
        %v2877 = vrot.slane %v2875, 5
        %v2878 = vshll.u32 %v2826, 16
        %v2880 = vrot.slane %v2878, 6
        %v2881 = vor.u32 %v2877, %v2880
        %v2882 = vsel %vm416, %v2873, %v2881
        %v2884 = vshrl.u32 %v2723, 16
        %v2886 = vrot.slane %v2884, 5
        %v2887 = vshll.u32 %v2723, 16
        %v2889 = vrot.slane %v2887, 6
        %v2890 = vor.u32 %v2886, %v2889
        %v2891 = vrot.slane %v2890, 4
        %v2893 = vshrl.u32 %v2827, 16
        %v2895 = vrot.slane %v2893, 5
        %v2896 = vshll.u32 %v2827, 16
        %v2898 = vrot.slane %v2896, 6
        %v2899 = vor.u32 %v2895, %v2898
        %v2900 = vsel %vm416, %v2891, %v2899
        %v2902 = vshrl.u32 %v2724, 16
        %v2904 = vrot.slane %v2902, 5
        %v2905 = vshll.u32 %v2724, 16
        %v2907 = vrot.slane %v2905, 6
        %v2908 = vor.u32 %v2904, %v2907
        %v2909 = vrot.slane %v2908, 4
        %v2911 = vshrl.u32 %v2828, 16
        %v2913 = vrot.slane %v2911, 5
        %v2914 = vshll.u32 %v2828, 16
        %v2916 = vrot.slane %v2914, 6
        %v2917 = vor.u32 %v2913, %v2916
        %v2918 = vsel %vm416, %v2909, %v2917
        %v2919 = vld [vmem:[%s1826 + $0xc0] sm:$0xf]
        %v2920 = vld [vmem:[%s1826 + $0xc4] sm:$0xf]
        %v2921 = vld [vmem:[%s1826 + $0xc8] sm:$0xf]
        %v2922 = vld [vmem:[%s1826 + $0xcc] sm:$0xf]
        %v2923 = vld [vmem:[%s1826 + $0xd0] sm:$0xf]
        %v2924 = vld [vmem:[%s1826 + $0xd4] sm:$0xf]
        %v2925 = vunpack.c.l.b16 %v2846
        %v2926 = vunpack.c.l.b16 %v2864
        %v2927 = vunpack.c.l.b16 %v2882
        %v2928 = vunpack.c.l.b16 %v2900
        %v2929 = vunpack.c.l.b16 %v2918
        %v2930 = vpack.c.b16 %v2926, %v2925
        %v2931 = vpack.c.b16 %v2928, %v2927
        %v2932 = vpack.c.b16 %v2929, %v2929
        %v2939 = vunpack.c.l.b16 %v2919
        %v2940 = vunpack.c.l.b16 %v2920
        %v2941 = vunpack.c.l.b16 %v2921
        %v2942 = vunpack.c.l.b16 %v2922
        %v2943 = vunpack.c.l.b16 %v2923
        %v2944 = vunpack.c.l.b16 %v2924
        %v2945 = vpack.c.b16 %v2940, %v2939
        %v2946 = vpack.c.b16 %v2942, %v2941
        %v2947 = vpack.c.b16 %v2944, %v2943
        %v2952 = vsel %vm335, %v2930, 0
        %v2955 = vsel %vm335, %v2931, 0
        %v2958 = vsel %vm335, %v2932, 0
        %2960 = vmatpush.bf16.msra.mxu0 0
        %2961 = vmatpush.bf16.msra.mxu0 0
        %2962 = vmatpush.bf16.msra.mxu0 0
        %2963 = vmatpush.bf16.msra.mxu0 0
        %2964 = vmatpush.bf16.msra.mxu0 0
        %2965 = vmatpush.bf16.msra.mxu0 %v2947
        %2966 = vmatpush.bf16.msra.mxu0 %v2946
        %2967 = vmatpush.bf16.msra.mxu0 %v2945
        %2968 = vmatmul.bf16.gmra.mxu0 %v2952
        %v2969 = vpop.f32.mrf.mxu0
        %v2970 = vadd.f32 0.0, %v2969
        %v2971 = vpop.f32.mrf.mxu0
        %v2972 = vadd.f32 0.0, %v2971
        %2973 = vmatmul.bf16.gmra.mxu0 %v2955
        %v2974 = vpop.f32.mrf.mxu0
        %v2975 = vadd.f32 0.0, %v2974
        %v2976 = vpop.f32.mrf.mxu0
        %v2977 = vadd.f32 0.0, %v2976
        %2978 = vmatmul.bf16.gmra.mxu0 %v2958
        %v2979 = vpop.f32.mrf.mxu0
        %v2980 = vadd.f32 0.0, %v2979
        %v2981 = vpop.f32.mrf.mxu0
        %2982 = vdwg.mxu0
        %v2983 = vadd.f32 %v2819, %v2970
        %v2984 = vadd.f32 %v2820, %v2972
        %v2985 = vadd.f32 %v2821, %v2975
        %v2986 = vadd.f32 %v2822, %v2977
        %v2987 = vadd.f32 %v2823, %v2980
        %v2988 = vadd.f32 %v2983, %v1241
        %v2989 = vadd.f32 %v2984, %v1241
        %v2990 = vadd.f32 %v2985, %v1241
        %v2991 = vadd.f32 %v2986, %v1241
        %v2992 = vadd.f32 %v2987, %v1241
        %v2993 = vmax.f32 %v2988, 0.0
        %v2994 = vmax.f32 %v2989, 0.0
        %v2995 = vmax.f32 %v2990, 0.0
        %v2996 = vmax.f32 %v2991, 0.0
        %v2997 = vmax.f32 %v2992, 0.0
        %s2998 = smul.u32 %s22, 4
        %v2999 = vstv %s2998
        %v3000 = vadd.s32 %v2999, 1
        %v3001 = vadd.s32 %v2999, 2
        %v3002 = vadd.s32 %v2999, 3
        %v3003 = vadd.s32 %v2999, 4
        %v3004 = vmul.u32 %v2999, 2
        %v3005 = vmul.u32 %v3000, 2
        %v3006 = vmul.u32 %v3001, 2
        %v3007 = vmul.u32 %v3002, 2
        %v3008 = vmul.u32 %v3003, 2
        %v3009 = vsub.s32 %v3004, 1
        %v3010 = vsub.s32 %v3005, 1
        %v3011 = vsub.s32 %v3006, 1
        %v3012 = vsub.s32 %v3007, 1
        %v3013 = vsub.s32 %v3008, 1
        %vm3014 = vcmp.ge.s32.totalorder %v3009, 0
        %vm3015 = vcmp.ge.s32.totalorder %v3010, 0
        %vm3016 = vcmp.ge.s32.totalorder %v3011, 0
        %vm3017 = vcmp.ge.s32.totalorder %v3012, 0
        %vm3018 = vcmp.ge.s32.totalorder %v3013, 0
        %vm3019 = vcmp.lt.s32.totalorder %v3009, 8
        %vm3020 = vcmp.lt.s32.totalorder %v3010, 8
        %vm3021 = vcmp.lt.s32.totalorder %v3011, 8
        %vm3022 = vcmp.lt.s32.totalorder %v3012, 8
        %vm3023 = vcmp.lt.s32.totalorder %v3013, 8
        %vm3024 = vmand %vm3014, %vm3019
        %vm3025 = vmand %vm3015, %vm3020
        %vm3026 = vmand %vm3016, %vm3021
        %vm3027 = vmand %vm3017, %vm3022
        %vm3028 = vmand %vm3018, %vm3023
        %v3029 = vsel %vm3024, %v2993, 0.0
        %v3030 = vsel %vm3025, %v2994, 0.0
        %v3031 = vsel %vm3026, %v2995, 0.0
        %v3032 = vsel %vm3027, %v2996, 0.0
        %v3033 = vsel %vm3028, %v2997, 0.0
        %v3034 = vld [vmem:[%s196] sm:$0xf]
        %v3035 = vld [vmem:[%s196 + $0x8] sm:$0xf]
        %v3036 = vld [vmem:[%s196 + $0x10] sm:$0xf]
        %v3037 = vld [vmem:[%s196 + $0x18] sm:$0xf]
        %v3038 = vld [vmem:[%s196 + $0x20] sm:$0xf]
        %s3039 = scalar_lea.vmem %s1, 648
        %v3040 = vld [vmem:[%s3039] sm:$0xf]
        %v3041 = vld [vmem:[%s3039 + $0x4] sm:$0xf]
        %v3042 = vld [vmem:[%s3039 + $0x8] sm:$0xf]
        %v3043 = vld [vmem:[%s3039 + $0xc] sm:$0xf]
        %v3044 = vld [vmem:[%s3039 + $0x10] sm:$0xf]
        %v3045 = vld [vmem:[%s3039 + $0x14] sm:$0xf]
        %v3046 = vld [vmem:[%s3039 + $0x18] sm:$0xf]
        %v3047 = vld [vmem:[%s3039 + $0x1c] sm:$0xf]
        %v3048 = vld [vmem:[%s3039 + $0x20] sm:$0xf]
        %v3049 = vld [vmem:[%s3039 + $0x24] sm:$0xf]
        %v3050 = vld [vmem:[%s3039 + $0x28] sm:$0xf]
        %v3051 = vld [vmem:[%s3039 + $0x2c] sm:$0xf]
        %v3058 = vunpack.c.l.b16 %v3046
        %v3059 = vunpack.c.l.b16 %v3047
        %v3060 = vunpack.c.l.b16 %v3048
        %v3061 = vunpack.c.l.b16 %v3049
        %v3062 = vunpack.c.l.b16 %v3050
        %v3063 = vunpack.c.l.b16 %v3051
        %v3064 = vpack.c.b16 %v3059, %v3058
        %v3065 = vpack.c.b16 %v3061, %v3060
        %v3066 = vpack.c.b16 %v3063, %v3062
        %3070 = vmatpush.bf16.msra.mxu0 0
        %3071 = vmatpush.bf16.msra.mxu0 0
        %3072 = vmatpush.bf16.msra.mxu0 0
        %3073 = vmatpush.bf16.msra.mxu0 0
        %3074 = vmatpush.bf16.msra.mxu0 0
        %3075 = vmatpush.bf16.msra.mxu0 %v3066
        %3076 = vmatpush.bf16.msra.mxu0 %v3065
        %3077 = vmatpush.bf16.msra.mxu0 %v3064
        %3078 = vmatmul.bf16.gmra.mxu0 %v1959
        %v3079 = vpop.f32.mrf.mxu0
        %v3080 = vadd.f32 0.0, %v3079
        %v3081 = vpop.f32.mrf.mxu0
        %v3082 = vadd.f32 0.0, %v3081
        %3083 = vmatmul.bf16.gmra.mxu0 %v1962
        %v3084 = vpop.f32.mrf.mxu0
        %v3085 = vadd.f32 0.0, %v3084
        %v3086 = vpop.f32.mrf.mxu0
        %v3087 = vadd.f32 0.0, %v3086
        %3088 = vmatmul.bf16.gmra.mxu0 %v1965
        %v3089 = vpop.f32.mrf.mxu0
        %v3090 = vadd.f32 0.0, %v3089
        %v3091 = vpop.f32.mrf.mxu0
        %3092 = vdwg.mxu0
        %v3098 = vunpack.c.l.b16 %v3034
        %v3099 = vunpack.c.l.b16 %v3035
        %v3100 = vunpack.c.l.b16 %v3036
        %v3101 = vunpack.c.l.b16 %v3037
        %v3102 = vunpack.c.l.b16 %v3038
        %v3103 = vpack.c.b16 %v3099, %v3098
        %v3104 = vpack.c.b16 %v3101, %v3100
        %v3105 = vpack.c.b16 %v3102, %v3102
        %v3112 = vunpack.c.l.b16 %v3040
        %v3113 = vunpack.c.l.b16 %v3041
        %v3114 = vunpack.c.l.b16 %v3042
        %v3115 = vunpack.c.l.b16 %v3043
        %v3116 = vunpack.c.l.b16 %v3044
        %v3117 = vunpack.c.l.b16 %v3045
        %v3118 = vpack.c.b16 %v3113, %v3112
        %v3119 = vpack.c.b16 %v3115, %v3114
        %v3120 = vpack.c.b16 %v3117, %v3116
        %v3125 = vsel %vm335, %v3103, 0
        %v3128 = vsel %vm335, %v3104, 0
        %v3131 = vsel %vm335, %v3105, 0
        %3133 = vmatpush.bf16.msra.mxu0 0
        %3134 = vmatpush.bf16.msra.mxu0 0
        %3135 = vmatpush.bf16.msra.mxu0 0
        %3136 = vmatpush.bf16.msra.mxu0 0
        %3137 = vmatpush.bf16.msra.mxu0 0
        %3138 = vmatpush.bf16.msra.mxu0 %v3120
        %3139 = vmatpush.bf16.msra.mxu0 %v3119
        %3140 = vmatpush.bf16.msra.mxu0 %v3118
        %3141 = vmatmul.bf16.gmra.mxu0 %v3125
        %v3142 = vpop.f32.mrf.mxu0
        %v3143 = vadd.f32 %v3080, %v3142
        %v3144 = vpop.f32.mrf.mxu0
        %v3145 = vadd.f32 %v3082, %v3144
        %3146 = vmatmul.bf16.gmra.mxu0 %v3128
        %v3147 = vpop.f32.mrf.mxu0
        %v3148 = vadd.f32 %v3085, %v3147
        %v3149 = vpop.f32.mrf.mxu0
        %v3150 = vadd.f32 %v3087, %v3149
        %3151 = vmatmul.bf16.gmra.mxu0 %v3131
        %v3152 = vpop.f32.mrf.mxu0
        %v3153 = vadd.f32 %v3090, %v3152
        %v3154 = vpop.f32.mrf.mxu0
        %3155 = vdwg.mxu0
        %v3156 = vld [vmem:[%s3039 + $0x30] sm:$0xf]
        %v3157 = vld [vmem:[%s3039 + $0x34] sm:$0xf]
        %v3158 = vld [vmem:[%s3039 + $0x38] sm:$0xf]
        %v3159 = vld [vmem:[%s3039 + $0x3c] sm:$0xf]
        %v3160 = vld [vmem:[%s3039 + $0x40] sm:$0xf]
        %v3161 = vld [vmem:[%s3039 + $0x44] sm:$0xf]
        %v3168 = vunpack.c.l.b16 %v3156
        %v3169 = vunpack.c.l.b16 %v3157
        %v3170 = vunpack.c.l.b16 %v3158
        %v3171 = vunpack.c.l.b16 %v3159
        %v3172 = vunpack.c.l.b16 %v3160
        %v3173 = vunpack.c.l.b16 %v3161
        %v3174 = vpack.c.b16 %v3169, %v3168
        %v3175 = vpack.c.b16 %v3171, %v3170
        %v3176 = vpack.c.b16 %v3173, %v3172
        %3180 = vmatpush.bf16.msra.mxu0 0
        %3181 = vmatpush.bf16.msra.mxu0 0
        %3182 = vmatpush.bf16.msra.mxu0 0
        %3183 = vmatpush.bf16.msra.mxu0 0
        %3184 = vmatpush.bf16.msra.mxu0 0
        %3185 = vmatpush.bf16.msra.mxu0 %v3176
        %3186 = vmatpush.bf16.msra.mxu0 %v3175
        %3187 = vmatpush.bf16.msra.mxu0 %v3174
        %3188 = vmatmul.bf16.gmra.mxu0 %v1901
        %v3189 = vpop.f32.mrf.mxu0
        %v3190 = vadd.f32 0.0, %v3189
        %v3191 = vpop.f32.mrf.mxu0
        %v3192 = vadd.f32 0.0, %v3191
        %3193 = vmatmul.bf16.gmra.mxu0 %v1904
        %v3194 = vpop.f32.mrf.mxu0
        %v3195 = vadd.f32 0.0, %v3194
        %v3196 = vpop.f32.mrf.mxu0
        %v3197 = vadd.f32 0.0, %v3196
        %3198 = vmatmul.bf16.gmra.mxu0 %v1907
        %v3199 = vpop.f32.mrf.mxu0
        %v3200 = vadd.f32 0.0, %v3199
        %v3201 = vpop.f32.mrf.mxu0
        %3202 = vdwg.mxu0
        %v3203 = vadd.f32 %v3143, %v3190
        %v3204 = vadd.f32 %v3145, %v3192
        %v3205 = vadd.f32 %v3148, %v3195
        %v3206 = vadd.f32 %v3150, %v3197
        %v3207 = vadd.f32 %v3153, %v3200
        %v3208 = vld [vmem:[%s200] sm:$0xf]
        %v3209 = vld [vmem:[%s200 + $0x8] sm:$0xf]
        %v3210 = vld [vmem:[%s200 + $0x10] sm:$0xf]
        %v3211 = vld [vmem:[%s200 + $0x18] sm:$0xf]
        %v3212 = vld [vmem:[%s200 + $0x20] sm:$0xf]
        %v3213 = vld [vmem:[%s3039 + $0x48] sm:$0xf]
        %v3214 = vld [vmem:[%s3039 + $0x4c] sm:$0xf]
        %v3215 = vld [vmem:[%s3039 + $0x50] sm:$0xf]
        %v3216 = vld [vmem:[%s3039 + $0x54] sm:$0xf]
        %v3217 = vld [vmem:[%s3039 + $0x58] sm:$0xf]
        %v3218 = vld [vmem:[%s3039 + $0x5c] sm:$0xf]
        %v3224 = vunpack.c.l.b16 %v3208
        %v3225 = vunpack.c.l.b16 %v3209
        %v3226 = vunpack.c.l.b16 %v3210
        %v3227 = vunpack.c.l.b16 %v3211
        %v3228 = vunpack.c.l.b16 %v3212
        %v3229 = vpack.c.b16 %v3225, %v3224
        %v3230 = vpack.c.b16 %v3227, %v3226
        %v3231 = vpack.c.b16 %v3228, %v3228
        %v3238 = vunpack.c.l.b16 %v3213
        %v3239 = vunpack.c.l.b16 %v3214
        %v3240 = vunpack.c.l.b16 %v3215
        %v3241 = vunpack.c.l.b16 %v3216
        %v3242 = vunpack.c.l.b16 %v3217
        %v3243 = vunpack.c.l.b16 %v3218
        %v3244 = vpack.c.b16 %v3239, %v3238
        %v3245 = vpack.c.b16 %v3241, %v3240
        %v3246 = vpack.c.b16 %v3243, %v3242
        %v3251 = vsel %vm335, %v3229, 0
        %v3254 = vsel %vm335, %v3230, 0
        %v3257 = vsel %vm335, %v3231, 0
        %3259 = vmatpush.bf16.msra.mxu0 0
        %3260 = vmatpush.bf16.msra.mxu0 0
        %3261 = vmatpush.bf16.msra.mxu0 0
        %3262 = vmatpush.bf16.msra.mxu0 0
        %3263 = vmatpush.bf16.msra.mxu0 0
        %3264 = vmatpush.bf16.msra.mxu0 %v3246
        %3265 = vmatpush.bf16.msra.mxu0 %v3245
        %3266 = vmatpush.bf16.msra.mxu0 %v3244
        %3267 = vmatmul.bf16.gmra.mxu0 %v3251
        %v3268 = vpop.f32.mrf.mxu0
        %v3269 = vadd.f32 0.0, %v3268
        %v3270 = vpop.f32.mrf.mxu0
        %v3271 = vadd.f32 0.0, %v3270
        %3272 = vmatmul.bf16.gmra.mxu0 %v3254
        %v3273 = vpop.f32.mrf.mxu0
        %v3274 = vadd.f32 0.0, %v3273
        %v3275 = vpop.f32.mrf.mxu0
        %v3276 = vadd.f32 0.0, %v3275
        %3277 = vmatmul.bf16.gmra.mxu0 %v3257
        %v3278 = vpop.f32.mrf.mxu0
        %v3279 = vadd.f32 0.0, %v3278
        %v3280 = vpop.f32.mrf.mxu0
        %3281 = vdwg.mxu0
        %v3282 = vadd.f32 %v3203, %v3269
        %v3283 = vadd.f32 %v3204, %v3271
        %v3284 = vadd.f32 %v3205, %v3274
        %v3285 = vadd.f32 %v3206, %v3276
        %v3286 = vadd.f32 %v3207, %v3279
        %v3287 = vld [vmem:[%s3039 + $0x60] sm:$0xf]
        %v3288 = vld [vmem:[%s3039 + $0x64] sm:$0xf]
        %v3289 = vld [vmem:[%s3039 + $0x68] sm:$0xf]
        %v3290 = vld [vmem:[%s3039 + $0x6c] sm:$0xf]
        %v3291 = vld [vmem:[%s3039 + $0x70] sm:$0xf]
        %v3292 = vld [vmem:[%s3039 + $0x74] sm:$0xf]
        %v3299 = vunpack.c.l.b16 %v3287
        %v3300 = vunpack.c.l.b16 %v3288
        %v3301 = vunpack.c.l.b16 %v3289
        %v3302 = vunpack.c.l.b16 %v3290
        %v3303 = vunpack.c.l.b16 %v3291
        %v3304 = vunpack.c.l.b16 %v3292
        %v3305 = vpack.c.b16 %v3300, %v3299
        %v3306 = vpack.c.b16 %v3302, %v3301
        %v3307 = vpack.c.b16 %v3304, %v3303
        %3311 = vmatpush.bf16.msra.mxu0 0
        %3312 = vmatpush.bf16.msra.mxu0 0
        %3313 = vmatpush.bf16.msra.mxu0 0
        %3314 = vmatpush.bf16.msra.mxu0 0
        %3315 = vmatpush.bf16.msra.mxu0 0
        %3316 = vmatpush.bf16.msra.mxu0 %v3307
        %3317 = vmatpush.bf16.msra.mxu0 %v3306
        %3318 = vmatpush.bf16.msra.mxu0 %v3305
        %3319 = vmatmul.bf16.gmra.mxu0 %v2267
        %v3320 = vpop.f32.mrf.mxu0
        %v3321 = vadd.f32 0.0, %v3320
        %v3322 = vpop.f32.mrf.mxu0
        %v3323 = vadd.f32 0.0, %v3322
        %3324 = vmatmul.bf16.gmra.mxu0 %v2270
        %v3325 = vpop.f32.mrf.mxu0
        %v3326 = vadd.f32 0.0, %v3325
        %v3327 = vpop.f32.mrf.mxu0
        %v3328 = vadd.f32 0.0, %v3327
        %3329 = vmatmul.bf16.gmra.mxu0 %v2273
        %v3330 = vpop.f32.mrf.mxu0
        %v3331 = vadd.f32 0.0, %v3330
        %v3332 = vpop.f32.mrf.mxu0
        %3333 = vdwg.mxu0
        %v3334 = vadd.f32 %v3282, %v3321
        %v3335 = vadd.f32 %v3283, %v3323
        %v3336 = vadd.f32 %v3284, %v3326
        %v3337 = vadd.f32 %v3285, %v3328
        %v3338 = vadd.f32 %v3286, %v3331
        %v3339 = vld [vmem:[%s3039 + $0x78] sm:$0xf]
        %v3340 = vld [vmem:[%s3039 + $0x7c] sm:$0xf]
        %v3341 = vld [vmem:[%s3039 + $0x80] sm:$0xf]
        %v3342 = vld [vmem:[%s3039 + $0x84] sm:$0xf]
        %v3343 = vld [vmem:[%s3039 + $0x88] sm:$0xf]
        %v3344 = vld [vmem:[%s3039 + $0x8c] sm:$0xf]
        %v3351 = vunpack.c.l.b16 %v3339
        %v3352 = vunpack.c.l.b16 %v3340
        %v3353 = vunpack.c.l.b16 %v3341
        %v3354 = vunpack.c.l.b16 %v3342
        %v3355 = vunpack.c.l.b16 %v3343
        %v3356 = vunpack.c.l.b16 %v3344
        %v3357 = vpack.c.b16 %v3352, %v3351
        %v3358 = vpack.c.b16 %v3354, %v3353
        %v3359 = vpack.c.b16 %v3356, %v3355
        %3363 = vmatpush.bf16.msra.mxu0 0
        %3364 = vmatpush.bf16.msra.mxu0 0
        %3365 = vmatpush.bf16.msra.mxu0 0
        %3366 = vmatpush.bf16.msra.mxu0 0
        %3367 = vmatpush.bf16.msra.mxu0 0
        %3368 = vmatpush.bf16.msra.mxu0 %v3359
        %3369 = vmatpush.bf16.msra.mxu0 %v3358
        %3370 = vmatpush.bf16.msra.mxu0 %v3357
        %3371 = vmatmul.bf16.gmra.mxu0 %v2371
        %v3372 = vpop.f32.mrf.mxu0
        %v3373 = vadd.f32 0.0, %v3372
        %v3374 = vpop.f32.mrf.mxu0
        %v3375 = vadd.f32 0.0, %v3374
        %3376 = vmatmul.bf16.gmra.mxu0 %v2374
        %v3377 = vpop.f32.mrf.mxu0
        %v3378 = vadd.f32 0.0, %v3377
        %v3379 = vpop.f32.mrf.mxu0
        %v3380 = vadd.f32 0.0, %v3379
        %3381 = vmatmul.bf16.gmra.mxu0 %v2377
        %v3382 = vpop.f32.mrf.mxu0
        %v3383 = vadd.f32 0.0, %v3382
        %v3384 = vpop.f32.mrf.mxu0
        %3385 = vdwg.mxu0
        %v3386 = vadd.f32 %v3334, %v3373
        %v3387 = vadd.f32 %v3335, %v3375
        %v3388 = vadd.f32 %v3336, %v3378
        %v3389 = vadd.f32 %v3337, %v3380
        %v3390 = vadd.f32 %v3338, %v3383
        %v3391 = vld [vmem:[%s548] sm:$0xf]
        %v3392 = vld [vmem:[%s548 + $0x8] sm:$0xf]
        %v3393 = vld [vmem:[%s548 + $0x10] sm:$0xf]
        %v3394 = vld [vmem:[%s548 + $0x18] sm:$0xf]
        %v3395 = vld [vmem:[%s548 + $0x20] sm:$0xf]
        %v3396 = vld [vmem:[%s3039 + $0x90] sm:$0xf]
        %v3397 = vld [vmem:[%s3039 + $0x94] sm:$0xf]
        %v3398 = vld [vmem:[%s3039 + $0x98] sm:$0xf]
        %v3399 = vld [vmem:[%s3039 + $0x9c] sm:$0xf]
        %v3400 = vld [vmem:[%s3039 + $0xa0] sm:$0xf]
        %v3401 = vld [vmem:[%s3039 + $0xa4] sm:$0xf]
        %v3407 = vunpack.c.l.b16 %v3391
        %v3408 = vunpack.c.l.b16 %v3392
        %v3409 = vunpack.c.l.b16 %v3393
        %v3410 = vunpack.c.l.b16 %v3394
        %v3411 = vunpack.c.l.b16 %v3395
        %v3412 = vpack.c.b16 %v3408, %v3407
        %v3413 = vpack.c.b16 %v3410, %v3409
        %v3414 = vpack.c.b16 %v3411, %v3411
        %v3421 = vunpack.c.l.b16 %v3396
        %v3422 = vunpack.c.l.b16 %v3397
        %v3423 = vunpack.c.l.b16 %v3398
        %v3424 = vunpack.c.l.b16 %v3399
        %v3425 = vunpack.c.l.b16 %v3400
        %v3426 = vunpack.c.l.b16 %v3401
        %v3427 = vpack.c.b16 %v3422, %v3421
        %v3428 = vpack.c.b16 %v3424, %v3423
        %v3429 = vpack.c.b16 %v3426, %v3425
        %v3434 = vsel %vm335, %v3412, 0
        %v3437 = vsel %vm335, %v3413, 0
        %v3440 = vsel %vm335, %v3414, 0
        %3442 = vmatpush.bf16.msra.mxu0 0
        %3443 = vmatpush.bf16.msra.mxu0 0
        %3444 = vmatpush.bf16.msra.mxu0 0
        %3445 = vmatpush.bf16.msra.mxu0 0
        %3446 = vmatpush.bf16.msra.mxu0 0
        %3447 = vmatpush.bf16.msra.mxu0 %v3429
        %3448 = vmatpush.bf16.msra.mxu0 %v3428
        %3449 = vmatpush.bf16.msra.mxu0 %v3427
        %3450 = vmatmul.bf16.gmra.mxu0 %v3434
        %v3451 = vpop.f32.mrf.mxu0
        %v3452 = vadd.f32 0.0, %v3451
        %v3453 = vpop.f32.mrf.mxu0
        %v3454 = vadd.f32 0.0, %v3453
        %3455 = vmatmul.bf16.gmra.mxu0 %v3437
        %v3456 = vpop.f32.mrf.mxu0
        %v3457 = vadd.f32 0.0, %v3456
        %v3458 = vpop.f32.mrf.mxu0
        %v3459 = vadd.f32 0.0, %v3458
        %3460 = vmatmul.bf16.gmra.mxu0 %v3440
        %v3461 = vpop.f32.mrf.mxu0
        %v3462 = vadd.f32 0.0, %v3461
        %v3463 = vpop.f32.mrf.mxu0
        %3464 = vdwg.mxu0
        %v3465 = vadd.f32 %v3386, %v3452
        %v3466 = vadd.f32 %v3387, %v3454
        %v3467 = vadd.f32 %v3388, %v3457
        %v3468 = vadd.f32 %v3389, %v3459
        %v3469 = vadd.f32 %v3390, %v3462
        %v3470 = vld [vmem:[%s3039 + $0xa8] sm:$0xf]
        %v3471 = vld [vmem:[%s3039 + $0xac] sm:$0xf]
        %v3472 = vld [vmem:[%s3039 + $0xb0] sm:$0xf]
        %v3473 = vld [vmem:[%s3039 + $0xb4] sm:$0xf]
        %v3474 = vld [vmem:[%s3039 + $0xb8] sm:$0xf]
        %v3475 = vld [vmem:[%s3039 + $0xbc] sm:$0xf]
        %v3482 = vunpack.c.l.b16 %v3470
        %v3483 = vunpack.c.l.b16 %v3471
        %v3484 = vunpack.c.l.b16 %v3472
        %v3485 = vunpack.c.l.b16 %v3473
        %v3486 = vunpack.c.l.b16 %v3474
        %v3487 = vunpack.c.l.b16 %v3475
        %v3488 = vpack.c.b16 %v3483, %v3482
        %v3489 = vpack.c.b16 %v3485, %v3484
        %v3490 = vpack.c.b16 %v3487, %v3486
        %3494 = vmatpush.bf16.msra.mxu0 0
        %3495 = vmatpush.bf16.msra.mxu0 0
        %3496 = vmatpush.bf16.msra.mxu0 0
        %3497 = vmatpush.bf16.msra.mxu0 0
        %3498 = vmatpush.bf16.msra.mxu0 0
        %3499 = vmatpush.bf16.msra.mxu0 %v3490
        %3500 = vmatpush.bf16.msra.mxu0 %v3489
        %3501 = vmatpush.bf16.msra.mxu0 %v3488
        %3502 = vmatmul.bf16.gmra.mxu0 %v2684
        %v3503 = vpop.f32.mrf.mxu0
        %v3504 = vadd.f32 0.0, %v3503
        %v3505 = vpop.f32.mrf.mxu0
        %v3506 = vadd.f32 0.0, %v3505
        %3507 = vmatmul.bf16.gmra.mxu0 %v2687
        %v3508 = vpop.f32.mrf.mxu0
        %v3509 = vadd.f32 0.0, %v3508
        %v3510 = vpop.f32.mrf.mxu0
        %v3511 = vadd.f32 0.0, %v3510
        %3512 = vmatmul.bf16.gmra.mxu0 %v2690
        %v3513 = vpop.f32.mrf.mxu0
        %v3514 = vadd.f32 0.0, %v3513
        %v3515 = vpop.f32.mrf.mxu0
        %3516 = vdwg.mxu0
        %v3517 = vadd.f32 %v3465, %v3504
        %v3518 = vadd.f32 %v3466, %v3506
        %v3519 = vadd.f32 %v3467, %v3509
        %v3520 = vadd.f32 %v3468, %v3511
        %v3521 = vadd.f32 %v3469, %v3514
        %v3522 = vld [vmem:[%s3039 + $0xc0] sm:$0xf]
        %v3523 = vld [vmem:[%s3039 + $0xc4] sm:$0xf]
        %v3524 = vld [vmem:[%s3039 + $0xc8] sm:$0xf]
        %v3525 = vld [vmem:[%s3039 + $0xcc] sm:$0xf]
        %v3526 = vld [vmem:[%s3039 + $0xd0] sm:$0xf]
        %v3527 = vld [vmem:[%s3039 + $0xd4] sm:$0xf]
        %v3534 = vunpack.c.l.b16 %v3522
        %v3535 = vunpack.c.l.b16 %v3523
        %v3536 = vunpack.c.l.b16 %v3524
        %v3537 = vunpack.c.l.b16 %v3525
        %v3538 = vunpack.c.l.b16 %v3526
        %v3539 = vunpack.c.l.b16 %v3527
        %v3540 = vpack.c.b16 %v3535, %v3534
        %v3541 = vpack.c.b16 %v3537, %v3536
        %v3542 = vpack.c.b16 %v3539, %v3538
        %3546 = vmatpush.bf16.msra.mxu0 0
        %3547 = vmatpush.bf16.msra.mxu0 0
        %3548 = vmatpush.bf16.msra.mxu0 0
        %3549 = vmatpush.bf16.msra.mxu0 0
        %3550 = vmatpush.bf16.msra.mxu0 0
        %3551 = vmatpush.bf16.msra.mxu0 %v3542
        %3552 = vmatpush.bf16.msra.mxu0 %v3541
        %3553 = vmatpush.bf16.msra.mxu0 %v3540
        %3554 = vmatmul.bf16.gmra.mxu0 %v2788
        %v3555 = vpop.f32.mrf.mxu0
        %v3556 = vadd.f32 0.0, %v3555
        %v3557 = vpop.f32.mrf.mxu0
        %v3558 = vadd.f32 0.0, %v3557
        %3559 = vmatmul.bf16.gmra.mxu0 %v2791
        %v3560 = vpop.f32.mrf.mxu0
        %v3561 = vadd.f32 0.0, %v3560
        %v3562 = vpop.f32.mrf.mxu0
        %v3563 = vadd.f32 0.0, %v3562
        %3564 = vmatmul.bf16.gmra.mxu0 %v2794
        %v3565 = vpop.f32.mrf.mxu0
        %v3566 = vadd.f32 0.0, %v3565
        %v3567 = vpop.f32.mrf.mxu0
        %3568 = vdwg.mxu0
        %v3569 = vadd.f32 %v3517, %v3556
        %v3570 = vadd.f32 %v3518, %v3558
        %v3571 = vadd.f32 %v3519, %v3561
        %v3572 = vadd.f32 %v3520, %v3563
        %v3573 = vadd.f32 %v3521, %v3566
        %v3574 = vadd.f32 %v3569, %v1241
        %v3575 = vadd.f32 %v3570, %v1241
        %v3576 = vadd.f32 %v3571, %v1241
        %v3577 = vadd.f32 %v3572, %v1241
        %v3578 = vadd.f32 %v3573, %v1241
        %v3579 = vmax.f32 %v3574, 0.0
        %v3580 = vmax.f32 %v3575, 0.0
        %v3581 = vmax.f32 %v3576, 0.0
        %v3582 = vmax.f32 %v3577, 0.0
        %v3583 = vmax.f32 %v3578, 0.0
        %v3584 = vsel %vm3024, %v3579, 0.0
        %v3585 = vsel %vm3025, %v3580, 0.0
        %v3586 = vsel %vm3026, %v3581, 0.0
        %v3587 = vsel %vm3027, %v3582, 0.0
        %v3588 = vsel %vm3028, %v3583, 0.0
        %v3589 = vsel %vm1741, %v3584, 0.0
        %v3590 = vsel %vm1741, %v3585, 0.0
        %v3591 = vsel %vm1741, %v3586, 0.0
        %v3592 = vsel %vm1741, %v3587, 0.0
        %v3593 = vsel %vm1741, %v3588, 0.0
        %v3594 = vmax.f32 %v1247, %v1742
        %v3595 = vmax.f32 %v1248, %v1743
        %v3596 = vmax.f32 %v1249, %v1744
        %v3597 = vmax.f32 %v1250, %v1745
        %v3602 = vrot.slane %v1742, 1
        %v3603 = vrot.slane %v1743, 1
        %v3604 = vrot.slane %v1744, 1
        %v3605 = vrot.slane %v1745, 1
        %v3610 = vmax.f32 %v3594, %v3602
        %v3611 = vmax.f32 %v3595, %v3603
        %v3612 = vmax.f32 %v3596, %v3604
        %v3613 = vmax.f32 %v3597, %v3605
        %v3614 = vmax.f32 %v3610, %v3029
        %v3615 = vmax.f32 %v3611, %v3030
        %v3616 = vmax.f32 %v3612, %v3031
        %v3617 = vmax.f32 %v3613, %v3032
        %v3618 = vmax.f32 %v3614, %v3030
        %v3619 = vmax.f32 %v3615, %v3031
        %v3620 = vmax.f32 %v3616, %v3032
        %v3621 = vmax.f32 %v3617, %v3033
        %v3622 = vmax.f32 %v3618, %v3589
        %v3623 = vmax.f32 %v3619, %v3590
        %v3624 = vmax.f32 %v3620, %v3591
        %v3625 = vmax.f32 %v3621, %v3592
        %v3630 = vrot.slane %v3589, 1
        %v3631 = vrot.slane %v3590, 1
        %v3632 = vrot.slane %v3591, 1
        %v3633 = vrot.slane %v3592, 1
        %v3638 = vmax.f32 %v3622, %v3630
        %v3639 = vmax.f32 %v3623, %v3631
        %v3640 = vmax.f32 %v3624, %v3632
        %v3641 = vmax.f32 %v3625, %v3633
        %v3642 = vmax.f32 %v3638, %v3590
        %v3643 = vmax.f32 %v3639, %v3591
        %v3644 = vmax.f32 %v3640, %v3592
        %v3645 = vmax.f32 %v3641, %v3593
        %v3647 = vrot.slane %v3593, 1
        %v3649 = vmax.f32 %v3642, %v3631
        %v3650 = vmax.f32 %v3643, %v3632
        %v3651 = vmax.f32 %v3644, %v3633
        %v3652 = vmax.f32 %v3645, %v3647
        %vm3653 = vcmask 519168
        %3654 = vst.msk [vmem:[%s187] sm:$0xf] %vm3653, %v3649
        %3655 = vst.msk [vmem:[%s187 + $0x4] sm:$0xf] %vm3653, %v3650
        %3656 = vst.msk [vmem:[%s187 + $0x8] sm:$0xf] %vm3653, %v3651
        %3657 = vst.msk [vmem:[%s187 + $0xc] sm:$0xf] %vm3653, %v3652
        %s3658 = sand.u32 %s109, 1
        %s3659 = scalar_lea.sflag [#allocation3], %s3658
        %s3660 = sand.u32 %s109, 1
        %s3661 = smul.addr %s3660, 16
        %s3662 = scalar_lea.vmem [#allocation2], %s3661
        // Predicated region
        $region33: #{tpu_custom_call.1} parent=31 // pred_check
          %p3663 = pneg %p119
        $region34: #{tpu_custom_call.1} parent=31 // pred_check_branch
          %3665 = sbr.rel (%p3663) target = $region36
        $region35: #{tpu_custom_call.1} parent=31 // pred_region
          %s3666 = smul.u32 4, %s22
          %3668 = vsyncadd %s3659, 0
          %s3669 = smul.addr %s21, 4
          %s3670 = sadd.s32 %s3666, %s3669
          %s3671 = smul.addr %s3670, 4
          %s3672 = scalar_lea.hbm %s3, %s3671
          %s3673 = sshll.u32 %s3662, 4
          %s3674 = int_to_ptr.vmem [resolvable:$true] %s3673
          %s3675 = sshll.u32 %s3672, 4
          %s3676 = int_to_ptr.hbm [resolvable:$true] %s3675
          %3681 = dma.vmem_to_hbm [thread:$0]  %s3674, 256, %s3676, %s3659, 64, 64, 4
        $region36: #{tpu_custom_call.1} parent=31 // pred_fallthru
          _
      $region32: #{tpu_custom_call.1} parent=5 // pred_fallthru
        _
      %p3682 = scmp.le.s32.totalorder 2, %s12
      // Predicated region
      $region37: #{tpu_custom_call.1} parent=5 // pred_check
        %p3683 = pneg %p3682
      $region38: #{tpu_custom_call.1} parent=5 // pred_check_branch
        %3685 = sbr.rel (%p3683) target = $region40
      $region39: #{tpu_custom_call.1} parent=5 // pred_region
        %s3686 = ssub.s32 %s12, 2
        // Predicated region
        $region41: #{tpu_custom_call.1} parent=39 // pred_check
          %p3687 = pneg %p125
        $region42: #{tpu_custom_call.1} parent=39 // pred_check_branch
          %3689 = sbr.rel (%p3687) target = $region44
        $region43: #{tpu_custom_call.1} parent=39 // pred_region
          %s3690 = sand.u32 %s110, 1
          %s3691 = scalar_lea.sflag [#allocation3], %s3690
          %s3692 = sand.u32 %s110, 1
          %s3693 = smul.addr %s3692, 16
          %s3694 = scalar_lea.vmem [#allocation2], %s3693
          %3696 = dma.done %s3691, 256
        $region44: #{tpu_custom_call.1} parent=39 // pred_fallthru
          _
      $region40: #{tpu_custom_call.1} parent=5 // pred_fallthru
        _
    $region6: #{tpu_custom_call.1} parent=1 // loop_footer
      %s16 = sadd.s32 1, %s12
    $region7: #{tpu_custom_call.1} parent=1 // loop_footer_branch
      %11 = sbr.rel target = $region3
    $region8: #{tpu_custom_call.1} parent=1 // loop_exit
      _
    %3697 = vsyncpa [#allocation3], 1
    %s3698 = scalar_lea.sflag [#allocation3], 1
    %3699 = vsyncpa %s3698, 1

</llo_original>
